<compile_context>
chip_gen: v5e
topology: v5e:2x2
jax: 0.10.0
libtpu: 0.0.40
codegen_flags: <defaults>
</compile_context>

<pallas_src>
import jax
import jax.numpy as jnp
from jax.experimental import pallas as pl
from jax.experimental.pallas import tpu as pltpu

LAYER_SIZES = (512, 256, 128, 64, 32, 16)
LN_EPS = 1e-5  # nn.LayerNorm default


def _round_up(x: int, m: int) -> int:
    return (x + m - 1) // m * m


def _make_kernel(dropout_rate: float, num_layers: int):
    """Fused kernel: 6 x (Linear -> ReLU -> LayerNorm -> Dropout) -> Linear(16->1)."""

    def kernel(seed_ref, x_ref, *args):
        out_ref = args[-1]
        params = args[:-1]  # [w_bf16, b, gamma, beta]*num_layers, w_out(16,128) bf16, b_out(1,128)

        if dropout_rate > 0.0:
            # Decorrelate per-tile PRNG streams with a Knuth multiplicative hash
            # (0x9E3779B1 as signed int32); int32 multiply wraps, which is fine for hashing.
            salt = pl.program_id(0) * jnp.int32(-1640531535)
            pltpu.prng_seed(seed_ref[0] ^ salt)
            keep_scale = jnp.float32(1.0 / (1.0 - dropout_rate))
            # Threshold over [0, 2^32-1]: keep-probability is off by ~2^-32 and
            # bits == thresh lands on the "keep" side — negligible.
            drop_thresh = jnp.uint32(int(dropout_rate * float(2**32 - 1)))

        # Activations travel as bf16 between layers (matmul operand dtype); all
        # elementwise / LayerNorm math is done in f32 (accumulated by the MXU).
        h = x_ref[...].astype(jnp.bfloat16)

        idx = 0
        for _ in range(num_layers):
            w, b, g, beta = params[idx], params[idx + 1], params[idx + 2], params[idx + 3]
            idx += 4
            # Linear on the MXU: bf16 operands, f32 accumulation.
            y = jnp.dot(h, w[...], preferred_element_type=jnp.float32) + b[...]
            # ReLU
            y = jnp.maximum(y, 0.0)
            # LayerNorm over the feature (lane) axis: two independent reductions.
            inv_n = jnp.float32(1.0 / y.shape[-1])
            mu = jnp.sum(y, axis=-1, keepdims=True) * inv_n
            ex2 = jnp.sum(y * y, axis=-1, keepdims=True) * inv_n
            var = jnp.maximum(ex2 - mu * mu, 0.0)  # E[y^2]-mu^2 can round slightly < 0
            a = jax.lax.rsqrt(var + LN_EPS)
            z = (y - mu) * a * g[...] + beta[...]
            # Dropout (F.dropout with training=True default in the reference module);
            # keep_scale folded into the select so dropped elements cost no extra mul.
            if dropout_rate > 0.0:
                bits = pltpu.bitcast(pltpu.prng_random_bits(z.shape), jnp.uint32)
                z = z * jnp.where(bits >= drop_thresh, keep_scale, jnp.float32(0.0))
            # Cast to bf16 fused into the layer tail (feeds the next matmul).
            h = z.astype(jnp.bfloat16)

        # Final 16 -> 1 projection on the MXU against a lane-padded weight column
        # (only lane 0 is real): lane-dense unmasked stores, no XLU transpose of a
        # block_b-sized array.  The wrapper slices column 0.
        w_out, b_out = params[idx], params[idx + 1]
        out_ref[...] = jnp.dot(h, w_out[...], preferred_element_type=jnp.float32) + b_out[...]

    return kernel


def _pick_tiling(B: int, requested_block_b):
    """Generation-aware batch tile and VMEM budget."""
    try:
        vmem_cap = int(pltpu.get_tpu_info().vmem_capacity_bytes)
    except Exception:  # unknown chip / API drift -> conservative (v7x-sized) budget
        vmem_cap = 64 * 1024 * 1024

    if vmem_cap >= 100 * 1024 * 1024:       # v5e / v6e: 128 MiB physical VMEM
        max_block = 4096
    else:                                    # v7x: 64 MiB per TensorCore
        max_block = 2048
    vmem_limit = min(vmem_cap * 3 // 4, 96 * 1024 * 1024)

    if requested_block_b is not None:
        max_block = max(128, (int(requested_block_b) // 128) * 128)

    B128 = _round_up(B, 128)
    if B128 >= 256:
        # Target >= 2 grid blocks so a 2-TC chip (v7x) can shard the batch axis.
        block_b = max(128, min(max_block, (B128 // 2) // 128 * 128))
    else:
        block_b = 128
    B_pad = _round_up(B128, block_b)
    return block_b, B_pad, vmem_limit


def large_dense_nn_forward(x, layers, w_out, b_out, *, dropout_rate=0.0, seed=0,
                           block_b=None):
    """x: (B, D0) float32.  Returns (B,) float32 (matches torch's .squeeze())."""
    B, D0 = x.shape
    x = x.astype(jnp.float32)

    block_b, B_pad, vmem_limit = _pick_tiling(B, block_b)
    n_blocks = B_pad // block_b

    # Pad the input feature dim to a sublane multiple (zero-pad x cols and W1 K rows).
    D0_pad = _round_up(D0, 8)
    if B_pad != B or D0_pad != D0:
        x = jnp.pad(x, ((0, B_pad - B), (0, D0_pad - D0)))

    flat_params = []
    for li, (w, b, g, beta) in enumerate(layers):
        w = jnp.asarray(w, jnp.float32)
        if li == 0 and D0_pad != D0:
            w = jnp.pad(w, ((0, D0_pad - D0), (0, 0)))
        flat_params += [w.astype(jnp.bfloat16),
                        jnp.reshape(b, (1, -1)).astype(jnp.float32),
                        jnp.reshape(g, (1, -1)).astype(jnp.float32),
                        jnp.reshape(beta, (1, -1)).astype(jnp.float32)]
    # Final projection weight (16,1) zero-padded to a lane-dense (16,128) column;
    # bias tiled to (1,128) so the in-kernel add is the standard bias pattern.
    w_out_col = jnp.reshape(jnp.asarray(w_out, jnp.float32), (-1, 1))
    flat_params += [jnp.pad(w_out_col, ((0, 0), (0, 127))).astype(jnp.bfloat16),
                    jnp.tile(jnp.reshape(jnp.asarray(b_out, jnp.float32), (1, 1)), (1, 128))]

    # index_maps receive the scalar-prefetch seed ref as a trailing positional arg.
    in_specs = [pl.BlockSpec((block_b, D0_pad), lambda i, seed_ref: (i, 0))]
    # Constant-index full-array param blocks (fetched once, stay resident across steps).
    in_specs += [pl.BlockSpec(p.shape, lambda i, seed_ref: (0, 0)) for p in flat_params]
    # Lane-dense output: (block_b, 128) blocks of a (B_pad, 128) array (column 0 real).
    out_spec = pl.BlockSpec((block_b, 128), lambda i, seed_ref: (i, 0))

    kernel = _make_kernel(dropout_rate, num_layers=len(layers))
    seed_arr = jnp.array([seed], dtype=jnp.int32)

    out = pl.pallas_call(
        kernel,
        out_shape=jax.ShapeDtypeStruct((B_pad, 128), jnp.float32),
        grid_spec=pltpu.PrefetchScalarGridSpec(
            num_scalar_prefetch=1,
            grid=(n_blocks,),
            in_specs=in_specs,
            out_specs=out_spec,
        ),
        compiler_params=pltpu.CompilerParams(
            # Batch tiles are independent; lets a 2-TC chip split the grid.
            dimension_semantics=("parallel",),
            vmem_limit_bytes=int(vmem_limit),
        ),
    )(seed_arr, x, *flat_params)
    return out[:B, 0]


def init_params(key, input_dim: int, radius: int):
    """Deterministic PyTorch-style (uniform +-1/sqrt(fan_in)) init for all layers."""
    d0 = (2 * radius + 1) ** 2 * input_dim
    dims = [d0] + list(LAYER_SIZES)
    layers = []
    for i in range(len(LAYER_SIZES)):
        key, k1, k2 = jax.random.split(key, 3)
        fan_in, fan_out = dims[i], dims[i + 1]
        bound = 1.0 / (fan_in ** 0.5)
        w = jax.random.uniform(k1, (fan_in, fan_out), jnp.float32, -bound, bound)
        b = jax.random.uniform(k2, (1, fan_out), jnp.float32, -bound, bound)
        g = jnp.ones((1, fan_out), jnp.float32)       # nn.LayerNorm default weight
        beta = jnp.zeros((1, fan_out), jnp.float32)   # nn.LayerNorm default bias
        layers.append((w, b, g, beta))
    key, k1, k2 = jax.random.split(key, 3)
    bound = 1.0 / (LAYER_SIZES[-1] ** 0.5)
    w_out = jax.random.uniform(k1, (LAYER_SIZES[-1], 1), jnp.float32, -bound, bound)
    b_out = jax.random.uniform(k2, (1, 1), jnp.float32, -bound, bound)
    return layers, w_out, b_out


def reference_forward(x, layers, w_out, b_out):
    """Pure-JAX reference (dropout_rate=0) mirroring the kernel's bf16 matmul inputs."""
    h = x.astype(jnp.float32)
    for (w, b, g, beta) in layers:
        y = jnp.dot(h.astype(jnp.bfloat16), jnp.asarray(w, jnp.bfloat16),
                    preferred_element_type=jnp.float32) + jnp.reshape(b, (1, -1))
        y = jnp.maximum(y, 0.0)
        mu = jnp.mean(y, axis=-1, keepdims=True)
        var = jnp.mean(jnp.square(y - mu), axis=-1, keepdims=True)
        h = (y - mu) * jax.lax.rsqrt(var + LN_EPS) * jnp.reshape(g, (1, -1)) \
            + jnp.reshape(beta, (1, -1))
    out = jnp.dot(h.astype(jnp.bfloat16),
                  jnp.reshape(jnp.asarray(w_out, jnp.bfloat16), (-1, 1)),
                  preferred_element_type=jnp.float32) + jnp.reshape(b_out, (1, 1))
    return jnp.squeeze(out, axis=-1)


if __name__ == "__main__":
    # Small shapes consistent with the module: radius=1, input_dim=4 -> D0 = 9*4 = 36.
    input_dim, radius = 4, 1
    dropout_rate = 0.0  # eval-style deterministic run; set >0 to exercise the PRNG dropout path
    B = 16
    D0 = (2 * radius + 1) ** 2 * input_dim

    key = jax.random.PRNGKey(0)
    key, kx = jax.random.split(key)
    x = jax.random.normal(kx, (B, D0), jnp.float32)
    layers, w_out, b_out = init_params(key, input_dim, radius)

    out = large_dense_nn_forward(x, layers, w_out, b_out,
                                 dropout_rate=dropout_rate, seed=0)
    out = jax.block_until_ready(out)
    assert out.shape == (B,)

    ref = reference_forward(x, layers, w_out, b_out)
    assert jnp.allclose(out, ref, atol=1e-2, rtol=1e-2), "mismatch vs pure-JAX reference"

    print("KERNEL_OK")
</pallas_src>

<mosaic_0001>
module attributes {stable_mosaic.version = 11 : i64} {
  func.func @kernel(%arg0: i32, %arg1: memref<1xi32, #tpu.memory_space<smem>>, %arg2: memref<128x40xf32, #tpu.memory_space<vmem>>, %arg3: memref<40x512xbf16, #tpu.memory_space<vmem>>, %arg4: memref<1x512xf32, #tpu.memory_space<vmem>>, %arg5: memref<1x512xf32, #tpu.memory_space<vmem>>, %arg6: memref<1x512xf32, #tpu.memory_space<vmem>>, %arg7: memref<512x256xbf16, #tpu.memory_space<vmem>>, %arg8: memref<1x256xf32, #tpu.memory_space<vmem>>, %arg9: memref<1x256xf32, #tpu.memory_space<vmem>>, %arg10: memref<1x256xf32, #tpu.memory_space<vmem>>, %arg11: memref<256x128xbf16, #tpu.memory_space<vmem>>, %arg12: memref<1x128xf32, #tpu.memory_space<vmem>>, %arg13: memref<1x128xf32, #tpu.memory_space<vmem>>, %arg14: memref<1x128xf32, #tpu.memory_space<vmem>>, %arg15: memref<128x64xbf16, #tpu.memory_space<vmem>>, %arg16: memref<1x64xf32, #tpu.memory_space<vmem>>, %arg17: memref<1x64xf32, #tpu.memory_space<vmem>>, %arg18: memref<1x64xf32, #tpu.memory_space<vmem>>, %arg19: memref<64x32xbf16, #tpu.memory_space<vmem>>, %arg20: memref<1x32xf32, #tpu.memory_space<vmem>>, %arg21: memref<1x32xf32, #tpu.memory_space<vmem>>, %arg22: memref<1x32xf32, #tpu.memory_space<vmem>>, %arg23: memref<32x16xbf16, #tpu.memory_space<vmem>>, %arg24: memref<1x16xf32, #tpu.memory_space<vmem>>, %arg25: memref<1x16xf32, #tpu.memory_space<vmem>>, %arg26: memref<1x16xf32, #tpu.memory_space<vmem>>, %arg27: memref<16x128xbf16, #tpu.memory_space<vmem>>, %arg28: memref<1x128xf32, #tpu.memory_space<vmem>>, %arg29: memref<128x128xf32, #tpu.memory_space<vmem>>) attributes {dimension_semantics = [#tpu.dimension_semantics<parallel>], iteration_bounds = array<i64: 1>, scalar_prefetch = 1 : i64, scratch_operands = 0 : i64, tpu.core_type = #tpu.core_type<tc>, window_params = [{transform_indices = @transform_0, window_bounds = array<i64: 128, 40>}, {pipeline_mode = #tpu.pipeline_mode<synchronous>, transform_indices = @transform_1, window_bounds = array<i64: 40, 512>}, {pipeline_mode = #tpu.pipeline_mode<synchronous>, transform_indices = @transform_2, window_bounds = array<i64: 1, 512>}, {pipeline_mode = #tpu.pipeline_mode<synchronous>, transform_indices = @transform_3, window_bounds = array<i64: 1, 512>}, {pipeline_mode = #tpu.pipeline_mode<synchronous>, transform_indices = @transform_4, window_bounds = array<i64: 1, 512>}, {pipeline_mode = #tpu.pipeline_mode<synchronous>, transform_indices = @transform_5, window_bounds = array<i64: 512, 256>}, {pipeline_mode = #tpu.pipeline_mode<synchronous>, transform_indices = @transform_6, window_bounds = array<i64: 1, 256>}, {pipeline_mode = #tpu.pipeline_mode<synchronous>, transform_indices = @transform_7, window_bounds = array<i64: 1, 256>}, {pipeline_mode = #tpu.pipeline_mode<synchronous>, transform_indices = @transform_8, window_bounds = array<i64: 1, 256>}, {pipeline_mode = #tpu.pipeline_mode<synchronous>, transform_indices = @transform_9, window_bounds = array<i64: 256, 128>}, {pipeline_mode = #tpu.pipeline_mode<synchronous>, transform_indices = @transform_10, window_bounds = array<i64: 1, 128>}, {pipeline_mode = #tpu.pipeline_mode<synchronous>, transform_indices = @transform_11, window_bounds = array<i64: 1, 128>}, {pipeline_mode = #tpu.pipeline_mode<synchronous>, transform_indices = @transform_12, window_bounds = array<i64: 1, 128>}, {pipeline_mode = #tpu.pipeline_mode<synchronous>, transform_indices = @transform_13, window_bounds = array<i64: 128, 64>}, {pipeline_mode = #tpu.pipeline_mode<synchronous>, transform_indices = @transform_14, window_bounds = array<i64: 1, 64>}, {pipeline_mode = #tpu.pipeline_mode<synchronous>, transform_indices = @transform_15, window_bounds = array<i64: 1, 64>}, {pipeline_mode = #tpu.pipeline_mode<synchronous>, transform_indices = @transform_16, window_bounds = array<i64: 1, 64>}, {pipeline_mode = #tpu.pipeline_mode<synchronous>, transform_indices = @transform_17, window_bounds = array<i64: 64, 32>}, {pipeline_mode = #tpu.pipeline_mode<synchronous>, transform_indices = @transform_18, window_bounds = array<i64: 1, 32>}, {pipeline_mode = #tpu.pipeline_mode<synchronous>, transform_indices = @transform_19, window_bounds = array<i64: 1, 32>}, {pipeline_mode = #tpu.pipeline_mode<synchronous>, transform_indices = @transform_20, window_bounds = array<i64: 1, 32>}, {pipeline_mode = #tpu.pipeline_mode<synchronous>, transform_indices = @transform_21, window_bounds = array<i64: 32, 16>}, {pipeline_mode = #tpu.pipeline_mode<synchronous>, transform_indices = @transform_22, window_bounds = array<i64: 1, 16>}, {pipeline_mode = #tpu.pipeline_mode<synchronous>, transform_indices = @transform_23, window_bounds = array<i64: 1, 16>}, {pipeline_mode = #tpu.pipeline_mode<synchronous>, transform_indices = @transform_24, window_bounds = array<i64: 1, 16>}, {pipeline_mode = #tpu.pipeline_mode<synchronous>, transform_indices = @transform_25, window_bounds = array<i64: 16, 128>}, {pipeline_mode = #tpu.pipeline_mode<synchronous>, transform_indices = @transform_26, window_bounds = array<i64: 1, 128>}, {transform_indices = @transform_27, window_bounds = array<i64: 128, 128>}]} {
    %c0 = arith.constant 0 : index
    %c0_0 = arith.constant 0 : index
    %0 = vector.load %arg2[%c0, %c0_0] : memref<128x40xf32, #tpu.memory_space<vmem>>, vector<128x40xf32>
    %1 = arith.truncf %0 : vector<128x40xf32> to vector<128x40xbf16>
    %c0_1 = arith.constant 0 : index
    %c0_2 = arith.constant 0 : index
    %2 = vector.load %arg3[%c0_1, %c0_2] : memref<40x512xbf16, #tpu.memory_space<vmem>>, vector<40x512xbf16>
    %cst = arith.constant dense<0.000000e+00> : vector<128x512xf32>
    %3 = tpu.matmul %1, %2, %cst {dimension_numbers = #tpu.dot_dimension_numbers<[1], [0], [0], [1], [0, 0, 1, 1], [], []>} : vector<128x40xbf16>, vector<40x512xbf16>, vector<128x512xf32> -> vector<128x512xf32>
    %c0_3 = arith.constant 0 : index
    %c0_4 = arith.constant 0 : index
    %4 = vector.load %arg4[%c0_3, %c0_4] : memref<1x512xf32, #tpu.memory_space<vmem>>, vector<1x512xf32>
    %5 = vector.broadcast %4 : vector<1x512xf32> to vector<128x512xf32>
    %6 = arith.addf %3, %5 : vector<128x512xf32>
    %cst_5 = arith.constant 0.000000e+00 : f32
    %7 = vector.broadcast %cst_5 : f32 to vector<128x512xf32>
    %8 = arith.maximumf %6, %7 : vector<128x512xf32>
    %cst_6 = arith.constant dense<0.000000e+00> : vector<128xf32>
    %9 = vector.multi_reduction <add>, %8, %cst_6 [1] : vector<128x512xf32> to vector<128xf32>
    %10 = vector.shape_cast %9 : vector<128xf32> to vector<128x1xf32>
    %cst_7 = arith.constant 0.001953125 : f32
    %11 = vector.broadcast %cst_7 : f32 to vector<128x1xf32>
    %12 = arith.mulf %10, %11 : vector<128x1xf32>
    %13 = arith.mulf %8, %8 : vector<128x512xf32>
    %cst_8 = arith.constant dense<0.000000e+00> : vector<128xf32>
    %14 = vector.multi_reduction <add>, %13, %cst_8 [1] : vector<128x512xf32> to vector<128xf32>
    %15 = vector.shape_cast %14 : vector<128xf32> to vector<128x1xf32>
    %cst_9 = arith.constant 0.001953125 : f32
    %16 = vector.broadcast %cst_9 : f32 to vector<128x1xf32>
    %17 = arith.mulf %15, %16 : vector<128x1xf32>
    %18 = arith.mulf %12, %12 : vector<128x1xf32>
    %19 = arith.subf %17, %18 : vector<128x1xf32>
    %cst_10 = arith.constant 0.000000e+00 : f32
    %20 = vector.broadcast %cst_10 : f32 to vector<128x1xf32>
    %21 = arith.maximumf %19, %20 : vector<128x1xf32>
    %cst_11 = arith.constant 9.99999974E-6 : f32
    %22 = vector.broadcast %cst_11 : f32 to vector<128x1xf32>
    %23 = arith.addf %21, %22 : vector<128x1xf32>
    %24 = math.rsqrt %23 : vector<128x1xf32>
    %25 = vector.broadcast %12 : vector<128x1xf32> to vector<128x512xf32>
    %26 = arith.subf %8, %25 : vector<128x512xf32>
    %27 = vector.broadcast %24 : vector<128x1xf32> to vector<128x512xf32>
    %28 = arith.mulf %26, %27 : vector<128x512xf32>
    %c0_12 = arith.constant 0 : index
    %c0_13 = arith.constant 0 : index
    %29 = vector.load %arg5[%c0_12, %c0_13] : memref<1x512xf32, #tpu.memory_space<vmem>>, vector<1x512xf32>
    %30 = vector.broadcast %29 : vector<1x512xf32> to vector<128x512xf32>
    %31 = arith.mulf %28, %30 : vector<128x512xf32>
    %c0_14 = arith.constant 0 : index
    %c0_15 = arith.constant 0 : index
    %32 = vector.load %arg6[%c0_14, %c0_15] : memref<1x512xf32, #tpu.memory_space<vmem>>, vector<1x512xf32>
    %33 = vector.broadcast %32 : vector<1x512xf32> to vector<128x512xf32>
    %34 = arith.addf %31, %33 : vector<128x512xf32>
    %35 = arith.truncf %34 : vector<128x512xf32> to vector<128x512xbf16>
    %c0_16 = arith.constant 0 : index
    %c0_17 = arith.constant 0 : index
    %36 = vector.load %arg7[%c0_16, %c0_17] : memref<512x256xbf16, #tpu.memory_space<vmem>>, vector<512x256xbf16>
    %cst_18 = arith.constant dense<0.000000e+00> : vector<128x256xf32>
    %37 = tpu.matmul %35, %36, %cst_18 {dimension_numbers = #tpu.dot_dimension_numbers<[1], [0], [0], [1], [0, 0, 1, 1], [], []>} : vector<128x512xbf16>, vector<512x256xbf16>, vector<128x256xf32> -> vector<128x256xf32>
    %c0_19 = arith.constant 0 : index
    %c0_20 = arith.constant 0 : index
    %38 = vector.load %arg8[%c0_19, %c0_20] : memref<1x256xf32, #tpu.memory_space<vmem>>, vector<1x256xf32>
    %39 = vector.broadcast %38 : vector<1x256xf32> to vector<128x256xf32>
    %40 = arith.addf %37, %39 : vector<128x256xf32>
    %cst_21 = arith.constant 0.000000e+00 : f32
    %41 = vector.broadcast %cst_21 : f32 to vector<128x256xf32>
    %42 = arith.maximumf %40, %41 : vector<128x256xf32>
    %cst_22 = arith.constant dense<0.000000e+00> : vector<128xf32>
    %43 = vector.multi_reduction <add>, %42, %cst_22 [1] : vector<128x256xf32> to vector<128xf32>
    %44 = vector.shape_cast %43 : vector<128xf32> to vector<128x1xf32>
    %cst_23 = arith.constant 3.906250e-03 : f32
    %45 = vector.broadcast %cst_23 : f32 to vector<128x1xf32>
    %46 = arith.mulf %44, %45 : vector<128x1xf32>
    %47 = arith.mulf %42, %42 : vector<128x256xf32>
    %cst_24 = arith.constant dense<0.000000e+00> : vector<128xf32>
    %48 = vector.multi_reduction <add>, %47, %cst_24 [1] : vector<128x256xf32> to vector<128xf32>
    %49 = vector.shape_cast %48 : vector<128xf32> to vector<128x1xf32>
    %cst_25 = arith.constant 3.906250e-03 : f32
    %50 = vector.broadcast %cst_25 : f32 to vector<128x1xf32>
    %51 = arith.mulf %49, %50 : vector<128x1xf32>
    %52 = arith.mulf %46, %46 : vector<128x1xf32>
    %53 = arith.subf %51, %52 : vector<128x1xf32>
    %cst_26 = arith.constant 0.000000e+00 : f32
    %54 = vector.broadcast %cst_26 : f32 to vector<128x1xf32>
    %55 = arith.maximumf %53, %54 : vector<128x1xf32>
    %cst_27 = arith.constant 9.99999974E-6 : f32
    %56 = vector.broadcast %cst_27 : f32 to vector<128x1xf32>
    %57 = arith.addf %55, %56 : vector<128x1xf32>
    %58 = math.rsqrt %57 : vector<128x1xf32>
    %59 = vector.broadcast %46 : vector<128x1xf32> to vector<128x256xf32>
    %60 = arith.subf %42, %59 : vector<128x256xf32>
    %61 = vector.broadcast %58 : vector<128x1xf32> to vector<128x256xf32>
    %62 = arith.mulf %60, %61 : vector<128x256xf32>
    %c0_28 = arith.constant 0 : index
    %c0_29 = arith.constant 0 : index
    %63 = vector.load %arg9[%c0_28, %c0_29] : memref<1x256xf32, #tpu.memory_space<vmem>>, vector<1x256xf32>
    %64 = vector.broadcast %63 : vector<1x256xf32> to vector<128x256xf32>
    %65 = arith.mulf %62, %64 : vector<128x256xf32>
    %c0_30 = arith.constant 0 : index
    %c0_31 = arith.constant 0 : index
    %66 = vector.load %arg10[%c0_30, %c0_31] : memref<1x256xf32, #tpu.memory_space<vmem>>, vector<1x256xf32>
    %67 = vector.broadcast %66 : vector<1x256xf32> to vector<128x256xf32>
    %68 = arith.addf %65, %67 : vector<128x256xf32>
    %69 = arith.truncf %68 : vector<128x256xf32> to vector<128x256xbf16>
    %c0_32 = arith.constant 0 : index
    %c0_33 = arith.constant 0 : index
    %70 = vector.load %arg11[%c0_32, %c0_33] : memref<256x128xbf16, #tpu.memory_space<vmem>>, vector<256x128xbf16>
    %cst_34 = arith.constant dense<0.000000e+00> : vector<128x128xf32>
    %71 = tpu.matmul %69, %70, %cst_34 {dimension_numbers = #tpu.dot_dimension_numbers<[1], [0], [0], [1], [0, 0, 1, 1], [], []>} : vector<128x256xbf16>, vector<256x128xbf16>, vector<128x128xf32> -> vector<128x128xf32>
    %c0_35 = arith.constant 0 : index
    %c0_36 = arith.constant 0 : index
    %72 = vector.load %arg12[%c0_35, %c0_36] : memref<1x128xf32, #tpu.memory_space<vmem>>, vector<1x128xf32>
    %73 = vector.broadcast %72 : vector<1x128xf32> to vector<128x128xf32>
    %74 = arith.addf %71, %73 : vector<128x128xf32>
    %cst_37 = arith.constant 0.000000e+00 : f32
    %75 = vector.broadcast %cst_37 : f32 to vector<128x128xf32>
    %76 = arith.maximumf %74, %75 : vector<128x128xf32>
    %cst_38 = arith.constant dense<0.000000e+00> : vector<128xf32>
    %77 = vector.multi_reduction <add>, %76, %cst_38 [1] : vector<128x128xf32> to vector<128xf32>
    %78 = vector.shape_cast %77 : vector<128xf32> to vector<128x1xf32>
    %cst_39 = arith.constant 7.812500e-03 : f32
    %79 = vector.broadcast %cst_39 : f32 to vector<128x1xf32>
    %80 = arith.mulf %78, %79 : vector<128x1xf32>
    %81 = arith.mulf %76, %76 : vector<128x128xf32>
    %cst_40 = arith.constant dense<0.000000e+00> : vector<128xf32>
    %82 = vector.multi_reduction <add>, %81, %cst_40 [1] : vector<128x128xf32> to vector<128xf32>
    %83 = vector.shape_cast %82 : vector<128xf32> to vector<128x1xf32>
    %cst_41 = arith.constant 7.812500e-03 : f32
    %84 = vector.broadcast %cst_41 : f32 to vector<128x1xf32>
    %85 = arith.mulf %83, %84 : vector<128x1xf32>
    %86 = arith.mulf %80, %80 : vector<128x1xf32>
    %87 = arith.subf %85, %86 : vector<128x1xf32>
    %cst_42 = arith.constant 0.000000e+00 : f32
    %88 = vector.broadcast %cst_42 : f32 to vector<128x1xf32>
    %89 = arith.maximumf %87, %88 : vector<128x1xf32>
    %cst_43 = arith.constant 9.99999974E-6 : f32
    %90 = vector.broadcast %cst_43 : f32 to vector<128x1xf32>
    %91 = arith.addf %89, %90 : vector<128x1xf32>
    %92 = math.rsqrt %91 : vector<128x1xf32>
    %93 = vector.broadcast %80 : vector<128x1xf32> to vector<128x128xf32>
    %94 = arith.subf %76, %93 : vector<128x128xf32>
    %95 = vector.broadcast %92 : vector<128x1xf32> to vector<128x128xf32>
    %96 = arith.mulf %94, %95 : vector<128x128xf32>
    %c0_44 = arith.constant 0 : index
    %c0_45 = arith.constant 0 : index
    %97 = vector.load %arg13[%c0_44, %c0_45] : memref<1x128xf32, #tpu.memory_space<vmem>>, vector<1x128xf32>
    %98 = vector.broadcast %97 : vector<1x128xf32> to vector<128x128xf32>
    %99 = arith.mulf %96, %98 : vector<128x128xf32>
    %c0_46 = arith.constant 0 : index
    %c0_47 = arith.constant 0 : index
    %100 = vector.load %arg14[%c0_46, %c0_47] : memref<1x128xf32, #tpu.memory_space<vmem>>, vector<1x128xf32>
    %101 = vector.broadcast %100 : vector<1x128xf32> to vector<128x128xf32>
    %102 = arith.addf %99, %101 : vector<128x128xf32>
    %103 = arith.truncf %102 : vector<128x128xf32> to vector<128x128xbf16>
    %c0_48 = arith.constant 0 : index
    %c0_49 = arith.constant 0 : index
    %104 = vector.load %arg15[%c0_48, %c0_49] : memref<128x64xbf16, #tpu.memory_space<vmem>>, vector<128x64xbf16>
    %cst_50 = arith.constant dense<0.000000e+00> : vector<128x64xf32>
    %105 = tpu.matmul %103, %104, %cst_50 {dimension_numbers = #tpu.dot_dimension_numbers<[1], [0], [0], [1], [0, 0, 1, 1], [], []>} : vector<128x128xbf16>, vector<128x64xbf16>, vector<128x64xf32> -> vector<128x64xf32>
    %c0_51 = arith.constant 0 : index
    %c0_52 = arith.constant 0 : index
    %106 = vector.load %arg16[%c0_51, %c0_52] : memref<1x64xf32, #tpu.memory_space<vmem>>, vector<1x64xf32>
    %107 = vector.broadcast %106 : vector<1x64xf32> to vector<128x64xf32>
    %108 = arith.addf %105, %107 : vector<128x64xf32>
    %cst_53 = arith.constant 0.000000e+00 : f32
    %109 = vector.broadcast %cst_53 : f32 to vector<128x64xf32>
    %110 = arith.maximumf %108, %109 : vector<128x64xf32>
    %cst_54 = arith.constant dense<0.000000e+00> : vector<128xf32>
    %111 = vector.multi_reduction <add>, %110, %cst_54 [1] : vector<128x64xf32> to vector<128xf32>
    %112 = vector.shape_cast %111 : vector<128xf32> to vector<128x1xf32>
    %cst_55 = arith.constant 1.562500e-02 : f32
    %113 = vector.broadcast %cst_55 : f32 to vector<128x1xf32>
    %114 = arith.mulf %112, %113 : vector<128x1xf32>
    %115 = arith.mulf %110, %110 : vector<128x64xf32>
    %cst_56 = arith.constant dense<0.000000e+00> : vector<128xf32>
    %116 = vector.multi_reduction <add>, %115, %cst_56 [1] : vector<128x64xf32> to vector<128xf32>
    %117 = vector.shape_cast %116 : vector<128xf32> to vector<128x1xf32>
    %cst_57 = arith.constant 1.562500e-02 : f32
    %118 = vector.broadcast %cst_57 : f32 to vector<128x1xf32>
    %119 = arith.mulf %117, %118 : vector<128x1xf32>
    %120 = arith.mulf %114, %114 : vector<128x1xf32>
    %121 = arith.subf %119, %120 : vector<128x1xf32>
    %cst_58 = arith.constant 0.000000e+00 : f32
    %122 = vector.broadcast %cst_58 : f32 to vector<128x1xf32>
    %123 = arith.maximumf %121, %122 : vector<128x1xf32>
    %cst_59 = arith.constant 9.99999974E-6 : f32
    %124 = vector.broadcast %cst_59 : f32 to vector<128x1xf32>
    %125 = arith.addf %123, %124 : vector<128x1xf32>
    %126 = math.rsqrt %125 : vector<128x1xf32>
    %127 = vector.broadcast %114 : vector<128x1xf32> to vector<128x64xf32>
    %128 = arith.subf %110, %127 : vector<128x64xf32>
    %129 = vector.broadcast %126 : vector<128x1xf32> to vector<128x64xf32>
    %130 = arith.mulf %128, %129 : vector<128x64xf32>
    %c0_60 = arith.constant 0 : index
    %c0_61 = arith.constant 0 : index
    %131 = vector.load %arg17[%c0_60, %c0_61] : memref<1x64xf32, #tpu.memory_space<vmem>>, vector<1x64xf32>
    %132 = vector.broadcast %131 : vector<1x64xf32> to vector<128x64xf32>
    %133 = arith.mulf %130, %132 : vector<128x64xf32>
    %c0_62 = arith.constant 0 : index
    %c0_63 = arith.constant 0 : index
    %134 = vector.load %arg18[%c0_62, %c0_63] : memref<1x64xf32, #tpu.memory_space<vmem>>, vector<1x64xf32>
    %135 = vector.broadcast %134 : vector<1x64xf32> to vector<128x64xf32>
    %136 = arith.addf %133, %135 : vector<128x64xf32>
    %137 = arith.truncf %136 : vector<128x64xf32> to vector<128x64xbf16>
    %c0_64 = arith.constant 0 : index
    %c0_65 = arith.constant 0 : index
    %138 = vector.load %arg19[%c0_64, %c0_65] : memref<64x32xbf16, #tpu.memory_space<vmem>>, vector<64x32xbf16>
    %cst_66 = arith.constant dense<0.000000e+00> : vector<128x32xf32>
    %139 = tpu.matmul %137, %138, %cst_66 {dimension_numbers = #tpu.dot_dimension_numbers<[1], [0], [0], [1], [0, 0, 1, 1], [], []>} : vector<128x64xbf16>, vector<64x32xbf16>, vector<128x32xf32> -> vector<128x32xf32>
    %c0_67 = arith.constant 0 : index
    %c0_68 = arith.constant 0 : index
    %140 = vector.load %arg20[%c0_67, %c0_68] : memref<1x32xf32, #tpu.memory_space<vmem>>, vector<1x32xf32>
    %141 = vector.broadcast %140 : vector<1x32xf32> to vector<128x32xf32>
    %142 = arith.addf %139, %141 : vector<128x32xf32>
    %cst_69 = arith.constant 0.000000e+00 : f32
    %143 = vector.broadcast %cst_69 : f32 to vector<128x32xf32>
    %144 = arith.maximumf %142, %143 : vector<128x32xf32>
    %cst_70 = arith.constant dense<0.000000e+00> : vector<128xf32>
    %145 = vector.multi_reduction <add>, %144, %cst_70 [1] : vector<128x32xf32> to vector<128xf32>
    %146 = vector.shape_cast %145 : vector<128xf32> to vector<128x1xf32>
    %cst_71 = arith.constant 3.125000e-02 : f32
    %147 = vector.broadcast %cst_71 : f32 to vector<128x1xf32>
    %148 = arith.mulf %146, %147 : vector<128x1xf32>
    %149 = arith.mulf %144, %144 : vector<128x32xf32>
    %cst_72 = arith.constant dense<0.000000e+00> : vector<128xf32>
    %150 = vector.multi_reduction <add>, %149, %cst_72 [1] : vector<128x32xf32> to vector<128xf32>
    %151 = vector.shape_cast %150 : vector<128xf32> to vector<128x1xf32>
    %cst_73 = arith.constant 3.125000e-02 : f32
    %152 = vector.broadcast %cst_73 : f32 to vector<128x1xf32>
    %153 = arith.mulf %151, %152 : vector<128x1xf32>
    %154 = arith.mulf %148, %148 : vector<128x1xf32>
    %155 = arith.subf %153, %154 : vector<128x1xf32>
    %cst_74 = arith.constant 0.000000e+00 : f32
    %156 = vector.broadcast %cst_74 : f32 to vector<128x1xf32>
    %157 = arith.maximumf %155, %156 : vector<128x1xf32>
    %cst_75 = arith.constant 9.99999974E-6 : f32
    %158 = vector.broadcast %cst_75 : f32 to vector<128x1xf32>
    %159 = arith.addf %157, %158 : vector<128x1xf32>
    %160 = math.rsqrt %159 : vector<128x1xf32>
    %161 = vector.broadcast %148 : vector<128x1xf32> to vector<128x32xf32>
    %162 = arith.subf %144, %161 : vector<128x32xf32>
    %163 = vector.broadcast %160 : vector<128x1xf32> to vector<128x32xf32>
    %164 = arith.mulf %162, %163 : vector<128x32xf32>
    %c0_76 = arith.constant 0 : index
    %c0_77 = arith.constant 0 : index
    %165 = vector.load %arg21[%c0_76, %c0_77] : memref<1x32xf32, #tpu.memory_space<vmem>>, vector<1x32xf32>
    %166 = vector.broadcast %165 : vector<1x32xf32> to vector<128x32xf32>
    %167 = arith.mulf %164, %166 : vector<128x32xf32>
    %c0_78 = arith.constant 0 : index
    %c0_79 = arith.constant 0 : index
    %168 = vector.load %arg22[%c0_78, %c0_79] : memref<1x32xf32, #tpu.memory_space<vmem>>, vector<1x32xf32>
    %169 = vector.broadcast %168 : vector<1x32xf32> to vector<128x32xf32>
    %170 = arith.addf %167, %169 : vector<128x32xf32>
    %171 = arith.truncf %170 : vector<128x32xf32> to vector<128x32xbf16>
    %c0_80 = arith.constant 0 : index
    %c0_81 = arith.constant 0 : index
    %172 = vector.load %arg23[%c0_80, %c0_81] : memref<32x16xbf16, #tpu.memory_space<vmem>>, vector<32x16xbf16>
    %cst_82 = arith.constant dense<0.000000e+00> : vector<128x16xf32>
    %173 = tpu.matmul %171, %172, %cst_82 {dimension_numbers = #tpu.dot_dimension_numbers<[1], [0], [0], [1], [0, 0, 1, 1], [], []>} : vector<128x32xbf16>, vector<32x16xbf16>, vector<128x16xf32> -> vector<128x16xf32>
    %c0_83 = arith.constant 0 : index
    %c0_84 = arith.constant 0 : index
    %174 = vector.load %arg24[%c0_83, %c0_84] : memref<1x16xf32, #tpu.memory_space<vmem>>, vector<1x16xf32>
    %175 = vector.broadcast %174 : vector<1x16xf32> to vector<128x16xf32>
    %176 = arith.addf %173, %175 : vector<128x16xf32>
    %cst_85 = arith.constant 0.000000e+00 : f32
    %177 = vector.broadcast %cst_85 : f32 to vector<128x16xf32>
    %178 = arith.maximumf %176, %177 : vector<128x16xf32>
    %cst_86 = arith.constant dense<0.000000e+00> : vector<128xf32>
    %179 = vector.multi_reduction <add>, %178, %cst_86 [1] : vector<128x16xf32> to vector<128xf32>
    %180 = vector.shape_cast %179 : vector<128xf32> to vector<128x1xf32>
    %cst_87 = arith.constant 6.250000e-02 : f32
    %181 = vector.broadcast %cst_87 : f32 to vector<128x1xf32>
    %182 = arith.mulf %180, %181 : vector<128x1xf32>
    %183 = arith.mulf %178, %178 : vector<128x16xf32>
    %cst_88 = arith.constant dense<0.000000e+00> : vector<128xf32>
    %184 = vector.multi_reduction <add>, %183, %cst_88 [1] : vector<128x16xf32> to vector<128xf32>
    %185 = vector.shape_cast %184 : vector<128xf32> to vector<128x1xf32>
    %cst_89 = arith.constant 6.250000e-02 : f32
    %186 = vector.broadcast %cst_89 : f32 to vector<128x1xf32>
    %187 = arith.mulf %185, %186 : vector<128x1xf32>
    %188 = arith.mulf %182, %182 : vector<128x1xf32>
    %189 = arith.subf %187, %188 : vector<128x1xf32>
    %cst_90 = arith.constant 0.000000e+00 : f32
    %190 = vector.broadcast %cst_90 : f32 to vector<128x1xf32>
    %191 = arith.maximumf %189, %190 : vector<128x1xf32>
    %cst_91 = arith.constant 9.99999974E-6 : f32
    %192 = vector.broadcast %cst_91 : f32 to vector<128x1xf32>
    %193 = arith.addf %191, %192 : vector<128x1xf32>
    %194 = math.rsqrt %193 : vector<128x1xf32>
    %195 = vector.broadcast %182 : vector<128x1xf32> to vector<128x16xf32>
    %196 = arith.subf %178, %195 : vector<128x16xf32>
    %197 = vector.broadcast %194 : vector<128x1xf32> to vector<128x16xf32>
    %198 = arith.mulf %196, %197 : vector<128x16xf32>
    %c0_92 = arith.constant 0 : index
    %c0_93 = arith.constant 0 : index
    %199 = vector.load %arg25[%c0_92, %c0_93] : memref<1x16xf32, #tpu.memory_space<vmem>>, vector<1x16xf32>
    %200 = vector.broadcast %199 : vector<1x16xf32> to vector<128x16xf32>
    %201 = arith.mulf %198, %200 : vector<128x16xf32>
    %c0_94 = arith.constant 0 : index
    %c0_95 = arith.constant 0 : index
    %202 = vector.load %arg26[%c0_94, %c0_95] : memref<1x16xf32, #tpu.memory_space<vmem>>, vector<1x16xf32>
    %203 = vector.broadcast %202 : vector<1x16xf32> to vector<128x16xf32>
    %204 = arith.addf %201, %203 : vector<128x16xf32>
    %205 = arith.truncf %204 : vector<128x16xf32> to vector<128x16xbf16>
    %c0_96 = arith.constant 0 : index
    %c0_97 = arith.constant 0 : index
    %206 = vector.load %arg27[%c0_96, %c0_97] : memref<16x128xbf16, #tpu.memory_space<vmem>>, vector<16x128xbf16>
    %cst_98 = arith.constant dense<0.000000e+00> : vector<128x128xf32>
    %207 = tpu.matmul %205, %206, %cst_98 {dimension_numbers = #tpu.dot_dimension_numbers<[1], [0], [0], [1], [0, 0, 1, 1], [], []>} : vector<128x16xbf16>, vector<16x128xbf16>, vector<128x128xf32> -> vector<128x128xf32>
    %c0_99 = arith.constant 0 : index
    %c0_100 = arith.constant 0 : index
    %208 = vector.load %arg28[%c0_99, %c0_100] : memref<1x128xf32, #tpu.memory_space<vmem>>, vector<1x128xf32>
    %209 = vector.broadcast %208 : vector<1x128xf32> to vector<128x128xf32>
    %210 = arith.addf %207, %209 : vector<128x128xf32>
    %c0_101 = arith.constant 0 : index
    %c0_102 = arith.constant 0 : index
    %211 = vector.load %arg29[%c0_101, %c0_102] : memref<128x128xf32, #tpu.memory_space<vmem>>, vector<128x128xf32>
    tpu.vector_store %arg29[%c0_101, %c0_102], %210 {strides = array<i32>} : memref<128x128xf32, #tpu.memory_space<vmem>>, vector<128x128xf32>,
    return
  }
  func.func @transform_0(%arg0: i32, %arg1: memref<1xi32, #tpu.memory_space<smem>>) -> (i32, i32) {
    %c0_i32 = arith.constant 0 : i32
    %c0_i32_0 = arith.constant 0 : i32
    return %arg0, %c0_i32 : i32, i32
  }
  func.func @transform_1(%arg0: i32, %arg1: memref<1xi32, #tpu.memory_space<smem>>) -> (i32, i32) {
    %c0_i32 = arith.constant 0 : i32
    %c0_i32_0 = arith.constant 0 : i32
    %c0_i32_1 = arith.constant 0 : i32
    return %c0_i32, %c0_i32_0 : i32, i32
  }
  func.func @transform_2(%arg0: i32, %arg1: memref<1xi32, #tpu.memory_space<smem>>) -> (i32, i32) {
    %c0_i32 = arith.constant 0 : i32
    %c0_i32_0 = arith.constant 0 : i32
    %c0_i32_1 = arith.constant 0 : i32
    return %c0_i32, %c0_i32_0 : i32, i32
  }
  func.func @transform_3(%arg0: i32, %arg1: memref<1xi32, #tpu.memory_space<smem>>) -> (i32, i32) {
    %c0_i32 = arith.constant 0 : i32
    %c0_i32_0 = arith.constant 0 : i32
    %c0_i32_1 = arith.constant 0 : i32
    return %c0_i32, %c0_i32_0 : i32, i32
  }
  func.func @transform_4(%arg0: i32, %arg1: memref<1xi32, #tpu.memory_space<smem>>) -> (i32, i32) {
    %c0_i32 = arith.constant 0 : i32
    %c0_i32_0 = arith.constant 0 : i32
    %c0_i32_1 = arith.constant 0 : i32
    return %c0_i32, %c0_i32_0 : i32, i32
  }
  func.func @transform_5(%arg0: i32, %arg1: memref<1xi32, #tpu.memory_space<smem>>) -> (i32, i32) {
    %c0_i32 = arith.constant 0 : i32
    %c0_i32_0 = arith.constant 0 : i32
    %c0_i32_1 = arith.constant 0 : i32
    return %c0_i32, %c0_i32_0 : i32, i32
  }
  func.func @transform_6(%arg0: i32, %arg1: memref<1xi32, #tpu.memory_space<smem>>) -> (i32, i32) {
    %c0_i32 = arith.constant 0 : i32
    %c0_i32_0 = arith.constant 0 : i32
    %c0_i32_1 = arith.constant 0 : i32
    return %c0_i32, %c0_i32_0 : i32, i32
  }
  func.func @transform_7(%arg0: i32, %arg1: memref<1xi32, #tpu.memory_space<smem>>) -> (i32, i32) {
    %c0_i32 = arith.constant 0 : i32
    %c0_i32_0 = arith.constant 0 : i32
    %c0_i32_1 = arith.constant 0 : i32
    return %c0_i32, %c0_i32_0 : i32, i32
  }
  func.func @transform_8(%arg0: i32, %arg1: memref<1xi32, #tpu.memory_space<smem>>) -> (i32, i32) {
    %c0_i32 = arith.constant 0 : i32
    %c0_i32_0 = arith.constant 0 : i32
    %c0_i32_1 = arith.constant 0 : i32
    return %c0_i32, %c0_i32_0 : i32, i32
  }
  func.func @transform_9(%arg0: i32, %arg1: memref<1xi32, #tpu.memory_space<smem>>) -> (i32, i32) {
    %c0_i32 = arith.constant 0 : i32
    %c0_i32_0 = arith.constant 0 : i32
    %c0_i32_1 = arith.constant 0 : i32
    return %c0_i32, %c0_i32_0 : i32, i32
  }
  func.func @transform_10(%arg0: i32, %arg1: memref<1xi32, #tpu.memory_space<smem>>) -> (i32, i32) {
    %c0_i32 = arith.constant 0 : i32
    %c0_i32_0 = arith.constant 0 : i32
    %c0_i32_1 = arith.constant 0 : i32
    return %c0_i32, %c0_i32_0 : i32, i32
  }
  func.func @transform_11(%arg0: i32, %arg1: memref<1xi32, #tpu.memory_space<smem>>) -> (i32, i32) {
    %c0_i32 = arith.constant 0 : i32
    %c0_i32_0 = arith.constant 0 : i32
    %c0_i32_1 = arith.constant 0 : i32
    return %c0_i32, %c0_i32_0 : i32, i32
  }
  func.func @transform_12(%arg0: i32, %arg1: memref<1xi32, #tpu.memory_space<smem>>) -> (i32, i32) {
    %c0_i32 = arith.constant 0 : i32
    %c0_i32_0 = arith.constant 0 : i32
    %c0_i32_1 = arith.constant 0 : i32
    return %c0_i32, %c0_i32_0 : i32, i32
  }
  func.func @transform_13(%arg0: i32, %arg1: memref<1xi32, #tpu.memory_space<smem>>) -> (i32, i32) {
    %c0_i32 = arith.constant 0 : i32
    %c0_i32_0 = arith.constant 0 : i32
    %c0_i32_1 = arith.constant 0 : i32
    return %c0_i32, %c0_i32_0 : i32, i32
  }
  func.func @transform_14(%arg0: i32, %arg1: memref<1xi32, #tpu.memory_space<smem>>) -> (i32, i32) {
    %c0_i32 = arith.constant 0 : i32
    %c0_i32_0 = arith.constant 0 : i32
    %c0_i32_1 = arith.constant 0 : i32
    return %c0_i32, %c0_i32_0 : i32, i32
  }
  func.func @transform_15(%arg0: i32, %arg1: memref<1xi32, #tpu.memory_space<smem>>) -> (i32, i32) {
    %c0_i32 = arith.constant 0 : i32
    %c0_i32_0 = arith.constant 0 : i32
    %c0_i32_1 = arith.constant 0 : i32
    return %c0_i32, %c0_i32_0 : i32, i32
  }
  func.func @transform_16(%arg0: i32, %arg1: memref<1xi32, #tpu.memory_space<smem>>) -> (i32, i32) {
    %c0_i32 = arith.constant 0 : i32
    %c0_i32_0 = arith.constant 0 : i32
    %c0_i32_1 = arith.constant 0 : i32
    return %c0_i32, %c0_i32_0 : i32, i32
  }
  func.func @transform_17(%arg0: i32, %arg1: memref<1xi32, #tpu.memory_space<smem>>) -> (i32, i32) {
    %c0_i32 = arith.constant 0 : i32
    %c0_i32_0 = arith.constant 0 : i32
    %c0_i32_1 = arith.constant 0 : i32
    return %c0_i32, %c0_i32_0 : i32, i32
  }
  func.func @transform_18(%arg0: i32, %arg1: memref<1xi32, #tpu.memory_space<smem>>) -> (i32, i32) {
    %c0_i32 = arith.constant 0 : i32
    %c0_i32_0 = arith.constant 0 : i32
    %c0_i32_1 = arith.constant 0 : i32
    return %c0_i32, %c0_i32_0 : i32, i32
  }
  func.func @transform_19(%arg0: i32, %arg1: memref<1xi32, #tpu.memory_space<smem>>) -> (i32, i32) {
    %c0_i32 = arith.constant 0 : i32
    %c0_i32_0 = arith.constant 0 : i32
    %c0_i32_1 = arith.constant 0 : i32
    return %c0_i32, %c0_i32_0 : i32, i32
  }
  func.func @transform_20(%arg0: i32, %arg1: memref<1xi32, #tpu.memory_space<smem>>) -> (i32, i32) {
    %c0_i32 = arith.constant 0 : i32
    %c0_i32_0 = arith.constant 0 : i32
    %c0_i32_1 = arith.constant 0 : i32
    return %c0_i32, %c0_i32_0 : i32, i32
  }
  func.func @transform_21(%arg0: i32, %arg1: memref<1xi32, #tpu.memory_space<smem>>) -> (i32, i32) {
    %c0_i32 = arith.constant 0 : i32
    %c0_i32_0 = arith.constant 0 : i32
    %c0_i32_1 = arith.constant 0 : i32
    return %c0_i32, %c0_i32_0 : i32, i32
  }
  func.func @transform_22(%arg0: i32, %arg1: memref<1xi32, #tpu.memory_space<smem>>) -> (i32, i32) {
    %c0_i32 = arith.constant 0 : i32
    %c0_i32_0 = arith.constant 0 : i32
    %c0_i32_1 = arith.constant 0 : i32
    return %c0_i32, %c0_i32_0 : i32, i32
  }
  func.func @transform_23(%arg0: i32, %arg1: memref<1xi32, #tpu.memory_space<smem>>) -> (i32, i32) {
    %c0_i32 = arith.constant 0 : i32
    %c0_i32_0 = arith.constant 0 : i32
    %c0_i32_1 = arith.constant 0 : i32
    return %c0_i32, %c0_i32_0 : i32, i32
  }
  func.func @transform_24(%arg0: i32, %arg1: memref<1xi32, #tpu.memory_space<smem>>) -> (i32, i32) {
    %c0_i32 = arith.constant 0 : i32
    %c0_i32_0 = arith.constant 0 : i32
    %c0_i32_1 = arith.constant 0 : i32
    return %c0_i32, %c0_i32_0 : i32, i32
  }
  func.func @transform_25(%arg0: i32, %arg1: memref<1xi32, #tpu.memory_space<smem>>) -> (i32, i32) {
    %c0_i32 = arith.constant 0 : i32
    %c0_i32_0 = arith.constant 0 : i32
    %c0_i32_1 = arith.constant 0 : i32
    return %c0_i32, %c0_i32_0 : i32, i32
  }
  func.func @transform_26(%arg0: i32, %arg1: memref<1xi32, #tpu.memory_space<smem>>) -> (i32, i32) {
    %c0_i32 = arith.constant 0 : i32
    %c0_i32_0 = arith.constant 0 : i32
    %c0_i32_1 = arith.constant 0 : i32
    return %c0_i32, %c0_i32_0 : i32, i32
  }
  func.func @transform_27(%arg0: i32, %arg1: memref<1xi32, #tpu.memory_space<smem>>) -> (i32, i32) {
    %c0_i32 = arith.constant 0 : i32
    %c0_i32_0 = arith.constant 0 : i32
    return %arg0, %c0_i32 : i32, i32
  }
}

</mosaic_0001>

<llo_original>
// kernel: tpu_custom_call.1
$region0: #{tpu_custom_call.1}
  #allocation0 [shape = 'u32[]', space=smem, size = 0x4, offset = 0x4, fixed_abs, tag = 'smem constant byte address 0x4 - core index']
  #allocation1 [shape = 'u32[72,128]{1,0:T(1,128)}', space=vmem, size = 0x9000, scoped, tag = 'internal scratch']
  #allocation2 [shape = 's32[1]{0}', space=sflag, size = 0x4, scoped, tag = 'scoped memory for tpu_custom_call.1']
  #allocation3 [shape = 's32[1]{0:T(128)S(6)}', space=smem, size = 0x200, scoped, tag = 'prefetched SMEM operand 0']
  %s0 = inlined_call_operand.<no memory space> [shape: s32[1], index: 0, kind: input, shape index: {}]
  %s1 = inlined_call_operand.vmem [shape: f32[128,40], index: 1, kind: input, shape index: {}]
  %s2 = inlined_call_operand.vmem [shape: bf16[40,512], index: 2, kind: input, shape index: {}]
  %s3 = inlined_call_operand.vmem [shape: f32[1,512], index: 3, kind: input, shape index: {}]
  %s4 = inlined_call_operand.vmem [shape: f32[1,512], index: 4, kind: input, shape index: {}]
  %s5 = inlined_call_operand.vmem [shape: f32[1,512], index: 5, kind: input, shape index: {}]
  %s6 = inlined_call_operand.hbm [shape: bf16[512,256], index: 6, kind: input, shape index: {}]
  %s7 = inlined_call_operand.vmem [shape: f32[1,256], index: 7, kind: input, shape index: {}]
  %s8 = inlined_call_operand.vmem [shape: f32[1,256], index: 8, kind: input, shape index: {}]
  %s9 = inlined_call_operand.vmem [shape: f32[1,256], index: 9, kind: input, shape index: {}]
  %s10 = inlined_call_operand.vmem [shape: bf16[256,128], index: 10, kind: input, shape index: {}]
  %s11 = inlined_call_operand.vmem [shape: f32[1,128], index: 11, kind: input, shape index: {}]
  %s12 = inlined_call_operand.vmem [shape: f32[1,128], index: 12, kind: input, shape index: {}]
  %s13 = inlined_call_operand.vmem [shape: f32[1,128], index: 13, kind: input, shape index: {}]
  %s14 = inlined_call_operand.vmem [shape: bf16[128,64], index: 14, kind: input, shape index: {}]
  %s15 = inlined_call_operand.vmem [shape: f32[1,64], index: 15, kind: input, shape index: {}]
  %s16 = inlined_call_operand.vmem [shape: f32[1,64], index: 16, kind: input, shape index: {}]
  %s17 = inlined_call_operand.vmem [shape: f32[1,64], index: 17, kind: input, shape index: {}]
  %s18 = inlined_call_operand.vmem [shape: bf16[64,32], index: 18, kind: input, shape index: {}]
  %s19 = inlined_call_operand.vmem [shape: f32[1,32], index: 19, kind: input, shape index: {}]
  %s20 = inlined_call_operand.vmem [shape: f32[1,32], index: 20, kind: input, shape index: {}]
  %s21 = inlined_call_operand.vmem [shape: f32[1,32], index: 21, kind: input, shape index: {}]
  %s22 = inlined_call_operand.vmem [shape: bf16[32,16], index: 22, kind: input, shape index: {}]
  %s23 = inlined_call_operand.vmem [shape: f32[1,16], index: 23, kind: input, shape index: {}]
  %s24 = inlined_call_operand.vmem [shape: f32[1,16], index: 24, kind: input, shape index: {}]
  %s25 = inlined_call_operand.vmem [shape: f32[1,16], index: 25, kind: input, shape index: {}]
  %s26 = inlined_call_operand.vmem [shape: bf16[16,128], index: 26, kind: input, shape index: {}]
  %s27 = inlined_call_operand.vmem [shape: f32[1,128], index: 27, kind: input, shape index: {}]
  %s28 = inlined_call_operand.hbm [shape: f32[128,128], index: 28, kind: output, shape index: {}]
  %s29 = sld [smem:[#allocation0]]
  $region122: #{tpu_custom_call.1} parent=0
    _
  %s31 = ssub.s32 1, %s29
  %s32 = scalar_select 0, %s31, %s29
  %33 = sst [smem:[#allocation3]] %s0
  $region1: #{tpu_custom_call.1} parent=0
    #allocation4 [shape = 'u8[262144]{0}', space=vmem, size = 0x40000, scoped, tag = 'input window, operand 6, single buffered']
    #allocation5 [shape = 's32[1]{0}', space=sflag, size = 0x4, scoped, tag = 'scoped memory for tpu_custom_call.1']
    #allocation6 [shape = 's32[1]{0}', space=sflag, size = 0x4, scoped, tag = 'scoped memory for tpu_custom_call.1']
    #allocation7 [shape = 'u8[65536]{0}', space=vmem, size = 0x10000, scoped, tag = 'output window, operand 0, single buffered']
    %34 = vsyncpa [#allocation5], 0
    %35 = vsyncpa [#allocation6], 0
    // Predicated region
    $region2: #{tpu_custom_call.1} parent=1 // pred_check
      _
    $region3: #{tpu_custom_call.1} parent=1 // pred_check_branch
      %37 = sbr.rel (0) target = $region5
    $region4: #{tpu_custom_call.1} parent=1 // pred_region
      _
    $region5: #{tpu_custom_call.1} parent=1 // pred_fallthru
      _
    // Predicated region
    $region6: #{tpu_custom_call.1} parent=1 // pred_check
      _
    $region7: #{tpu_custom_call.1} parent=1 // pred_check_branch
      %39 = sbr.rel (0) target = $region9
    $region8: #{tpu_custom_call.1} parent=1 // pred_region
      _
    $region9: #{tpu_custom_call.1} parent=1 // pred_fallthru
      _
    // Predicated region
    $region10: #{tpu_custom_call.1} parent=1 // pred_check
      _
    $region11: #{tpu_custom_call.1} parent=1 // pred_check_branch
      %41 = sbr.rel (0) target = $region13
    $region12: #{tpu_custom_call.1} parent=1 // pred_region
      _
    $region13: #{tpu_custom_call.1} parent=1 // pred_fallthru
      _
    // Predicated region
    $region14: #{tpu_custom_call.1} parent=1 // pred_check
      _
    $region15: #{tpu_custom_call.1} parent=1 // pred_check_branch
      %43 = sbr.rel (0) target = $region17
    $region16: #{tpu_custom_call.1} parent=1 // pred_region
      _
    $region17: #{tpu_custom_call.1} parent=1 // pred_fallthru
      _
    // Predicated region
    $region18: #{tpu_custom_call.1} parent=1 // pred_check
      _
    $region19: #{tpu_custom_call.1} parent=1 // pred_check_branch
      %45 = sbr.rel (0) target = $region21
    $region20: #{tpu_custom_call.1} parent=1 // pred_region
      _
    $region21: #{tpu_custom_call.1} parent=1 // pred_fallthru
      _
    // Predicated region
    $region22: #{tpu_custom_call.1} parent=1 // pred_check
      _
    $region23: #{tpu_custom_call.1} parent=1 // pred_check_branch
      %47 = sbr.rel (0) target = $region25
    $region24: #{tpu_custom_call.1} parent=1 // pred_region
      %49 = vsyncadd [#allocation5], 0
      %s50 = sshll.u32 %s6, 4
      %s51 = int_to_ptr.hbm [resolvable:$true] %s50
      %s52 = sshll.u32 [#allocation4], 4
      %s53 = int_to_ptr.vmem [resolvable:$true] %s52
      %58 = dma.hbm_to_vmem [thread:$0]  %s51, 8192, %s53, [#allocation5], 128, 128, 8
    $region25: #{tpu_custom_call.1} parent=1 // pred_fallthru
      _
    // Predicated region
    $region26: #{tpu_custom_call.1} parent=1 // pred_check
      _
    $region27: #{tpu_custom_call.1} parent=1 // pred_check_branch
      %60 = sbr.rel (0) target = $region29
    $region28: #{tpu_custom_call.1} parent=1 // pred_region
      _
    $region29: #{tpu_custom_call.1} parent=1 // pred_fallthru
      _
    // Predicated region
    $region30: #{tpu_custom_call.1} parent=1 // pred_check
      _
    $region31: #{tpu_custom_call.1} parent=1 // pred_check_branch
      %62 = sbr.rel (0) target = $region33
    $region32: #{tpu_custom_call.1} parent=1 // pred_region
      _
    $region33: #{tpu_custom_call.1} parent=1 // pred_fallthru
      _
    // Predicated region
    $region34: #{tpu_custom_call.1} parent=1 // pred_check
      _
    $region35: #{tpu_custom_call.1} parent=1 // pred_check_branch
      %64 = sbr.rel (0) target = $region37
    $region36: #{tpu_custom_call.1} parent=1 // pred_region
      _
    $region37: #{tpu_custom_call.1} parent=1 // pred_fallthru
      _
    // Predicated region
    $region38: #{tpu_custom_call.1} parent=1 // pred_check
      _
    $region39: #{tpu_custom_call.1} parent=1 // pred_check_branch
      %66 = sbr.rel (0) target = $region41
    $region40: #{tpu_custom_call.1} parent=1 // pred_region
      _
    $region41: #{tpu_custom_call.1} parent=1 // pred_fallthru
      _
    // Predicated region
    $region42: #{tpu_custom_call.1} parent=1 // pred_check
      _
    $region43: #{tpu_custom_call.1} parent=1 // pred_check_branch
      %68 = sbr.rel (0) target = $region45
    $region44: #{tpu_custom_call.1} parent=1 // pred_region
      _
    $region45: #{tpu_custom_call.1} parent=1 // pred_fallthru
      _
    // Predicated region
    $region46: #{tpu_custom_call.1} parent=1 // pred_check
      _
    $region47: #{tpu_custom_call.1} parent=1 // pred_check_branch
      %70 = sbr.rel (0) target = $region49
    $region48: #{tpu_custom_call.1} parent=1 // pred_region
      _
    $region49: #{tpu_custom_call.1} parent=1 // pred_fallthru
      _
    // Predicated region
    $region50: #{tpu_custom_call.1} parent=1 // pred_check
      _
    $region51: #{tpu_custom_call.1} parent=1 // pred_check_branch
      %72 = sbr.rel (0) target = $region53
    $region52: #{tpu_custom_call.1} parent=1 // pred_region
      _
    $region53: #{tpu_custom_call.1} parent=1 // pred_fallthru
      _
    // Predicated region
    $region54: #{tpu_custom_call.1} parent=1 // pred_check
      _
    $region55: #{tpu_custom_call.1} parent=1 // pred_check_branch
      %74 = sbr.rel (0) target = $region57
    $region56: #{tpu_custom_call.1} parent=1 // pred_region
      _
    $region57: #{tpu_custom_call.1} parent=1 // pred_fallthru
      _
    // Predicated region
    $region58: #{tpu_custom_call.1} parent=1 // pred_check
      _
    $region59: #{tpu_custom_call.1} parent=1 // pred_check_branch
      %76 = sbr.rel (0) target = $region61
    $region60: #{tpu_custom_call.1} parent=1 // pred_region
      _
    $region61: #{tpu_custom_call.1} parent=1 // pred_fallthru
      _
    // Predicated region
    $region62: #{tpu_custom_call.1} parent=1 // pred_check
      _
    $region63: #{tpu_custom_call.1} parent=1 // pred_check_branch
      %78 = sbr.rel (0) target = $region65
    $region64: #{tpu_custom_call.1} parent=1 // pred_region
      _
    $region65: #{tpu_custom_call.1} parent=1 // pred_fallthru
      _
    // Predicated region
    $region66: #{tpu_custom_call.1} parent=1 // pred_check
      _
    $region67: #{tpu_custom_call.1} parent=1 // pred_check_branch
      %80 = sbr.rel (0) target = $region69
    $region68: #{tpu_custom_call.1} parent=1 // pred_region
      _
    $region69: #{tpu_custom_call.1} parent=1 // pred_fallthru
      _
    // Predicated region
    $region70: #{tpu_custom_call.1} parent=1 // pred_check
      _
    $region71: #{tpu_custom_call.1} parent=1 // pred_check_branch
      %82 = sbr.rel (0) target = $region73
    $region72: #{tpu_custom_call.1} parent=1 // pred_region
      _
    $region73: #{tpu_custom_call.1} parent=1 // pred_fallthru
      _
    // Predicated region
    $region74: #{tpu_custom_call.1} parent=1 // pred_check
      _
    $region75: #{tpu_custom_call.1} parent=1 // pred_check_branch
      %84 = sbr.rel (0) target = $region77
    $region76: #{tpu_custom_call.1} parent=1 // pred_region
      _
    $region77: #{tpu_custom_call.1} parent=1 // pred_fallthru
      _
    // Predicated region
    $region78: #{tpu_custom_call.1} parent=1 // pred_check
      _
    $region79: #{tpu_custom_call.1} parent=1 // pred_check_branch
      %86 = sbr.rel (0) target = $region81
    $region80: #{tpu_custom_call.1} parent=1 // pred_region
      _
    $region81: #{tpu_custom_call.1} parent=1 // pred_fallthru
      _
    // Predicated region
    $region82: #{tpu_custom_call.1} parent=1 // pred_check
      _
    $region83: #{tpu_custom_call.1} parent=1 // pred_check_branch
      %88 = sbr.rel (0) target = $region85
    $region84: #{tpu_custom_call.1} parent=1 // pred_region
      _
    $region85: #{tpu_custom_call.1} parent=1 // pred_fallthru
      _
    // Predicated region
    $region86: #{tpu_custom_call.1} parent=1 // pred_check
      _
    $region87: #{tpu_custom_call.1} parent=1 // pred_check_branch
      %90 = sbr.rel (0) target = $region89
    $region88: #{tpu_custom_call.1} parent=1 // pred_region
      _
    $region89: #{tpu_custom_call.1} parent=1 // pred_fallthru
      _
    // Predicated region
    $region90: #{tpu_custom_call.1} parent=1 // pred_check
      _
    $region91: #{tpu_custom_call.1} parent=1 // pred_check_branch
      %92 = sbr.rel (0) target = $region93
    $region92: #{tpu_custom_call.1} parent=1 // pred_region
      _
    $region93: #{tpu_custom_call.1} parent=1 // pred_fallthru
      _
    // Predicated region
    $region94: #{tpu_custom_call.1} parent=1 // pred_check
      _
    $region95: #{tpu_custom_call.1} parent=1 // pred_check_branch
      %94 = sbr.rel (0) target = $region97
    $region96: #{tpu_custom_call.1} parent=1 // pred_region
      _
    $region97: #{tpu_custom_call.1} parent=1 // pred_fallthru
      _
    // Predicated region
    $region98: #{tpu_custom_call.1} parent=1 // pred_check
      _
    $region99: #{tpu_custom_call.1} parent=1 // pred_check_branch
      %96 = sbr.rel (0) target = $region101
    $region100: #{tpu_custom_call.1} parent=1 // pred_region
      _
    $region101: #{tpu_custom_call.1} parent=1 // pred_fallthru
      _
    // Predicated region
    $region102: #{tpu_custom_call.1} parent=1 // pred_check
      _
    $region103: #{tpu_custom_call.1} parent=1 // pred_check_branch
      %98 = sbr.rel (0) target = $region105
    $region104: #{tpu_custom_call.1} parent=1 // pred_region
      _
    $region105: #{tpu_custom_call.1} parent=1 // pred_fallthru
      _
    // Predicated region
    $region106: #{tpu_custom_call.1} parent=1 // pred_check
      _
    $region107: #{tpu_custom_call.1} parent=1 // pred_check_branch
      %100 = sbr.rel (0) target = $region109
    $region108: #{tpu_custom_call.1} parent=1 // pred_region
      _
    $region109: #{tpu_custom_call.1} parent=1 // pred_fallthru
      _
    // Predicated region
    $region110: #{tpu_custom_call.1} parent=1 // pred_check
      _
    $region111: #{tpu_custom_call.1} parent=1 // pred_check_branch
      %102 = sbr.rel (0) target = $region113
    $region112: #{tpu_custom_call.1} parent=1 // pred_region
      %104 = dma.done [#allocation5], 8192
    $region113: #{tpu_custom_call.1} parent=1 // pred_fallthru
      _
    %v106 = vld [vmem:[%s1] sm:$0xff]
    %v107 = vld [vmem:[%s1 + $0x8] sm:$0xff]
    %v108 = vld [vmem:[%s1 + $0x10] sm:$0xff]
    %v109 = vld [vmem:[%s1 + $0x18] sm:$0xff]
    %v110 = vld [vmem:[%s1 + $0x20] sm:$0xff]
    %v111 = vld [vmem:[%s1 + $0x28] sm:$0xff]
    %v112 = vld [vmem:[%s1 + $0x30] sm:$0xff]
    %v113 = vld [vmem:[%s1 + $0x38] sm:$0xff]
    %v114 = vld [vmem:[%s1 + $0x40] sm:$0xff]
    %v115 = vld [vmem:[%s1 + $0x48] sm:$0xff]
    %v116 = vld [vmem:[%s1 + $0x50] sm:$0xff]
    %v117 = vld [vmem:[%s1 + $0x58] sm:$0xff]
    %v118 = vld [vmem:[%s1 + $0x60] sm:$0xff]
    %v119 = vld [vmem:[%s1 + $0x68] sm:$0xff]
    %v120 = vld [vmem:[%s1 + $0x70] sm:$0xff]
    %v121 = vld [vmem:[%s1 + $0x78] sm:$0xff]
    %v122 = vpack.c.bf16 %v107, %v106
    %v123 = vpack.c.bf16 %v109, %v108
    %v124 = vpack.c.bf16 %v111, %v110
    %v125 = vpack.c.bf16 %v113, %v112
    %v126 = vpack.c.bf16 %v115, %v114
    %v127 = vpack.c.bf16 %v117, %v116
    %v128 = vpack.c.bf16 %v119, %v118
    %v129 = vpack.c.bf16 %v121, %v120
    %v130 = vld [vmem:[%s2] sm:$0xff]
    %v131 = vld [vmem:[%s2 + $0x8] sm:$0xff]
    %v132 = vld [vmem:[%s2 + $0x10] sm:$0xff]
    %v133 = vld [vmem:[%s2 + $0x18] sm:$0xff]
    %v134 = vld [vmem:[%s2 + $0x20] sm:$0xff]
    %v135 = vld [vmem:[%s2 + $0x28] sm:$0xff]
    %v136 = vld [vmem:[%s2 + $0x30] sm:$0xff]
    %v137 = vld [vmem:[%s2 + $0x38] sm:$0xff]
    %v138 = vld [vmem:[%s2 + $0x40] sm:$0xff]
    %v139 = vld [vmem:[%s2 + $0x48] sm:$0xff]
    %v140 = vld [vmem:[%s3] sm:$0xf]
    %v142 = vperm.slane %v140, 0
    %v143 = vperm.slane %v140, 1
    %v144 = vperm.slane %v140, 2
    %v145 = vperm.slane %v140, 3
    %v160 = vunpack.c.l.b16 %v130
    %v161 = vunpack.c.h.b16 %v130
    %v162 = vunpack.c.l.b16 %v131
    %v163 = vunpack.c.h.b16 %v131
    %v164 = vunpack.c.l.b16 %v132
    %v165 = vunpack.c.h.b16 %v132
    %v166 = vunpack.c.l.b16 %v133
    %v167 = vunpack.c.h.b16 %v133
    %v168 = vunpack.c.l.b16 %v134
    %v169 = vunpack.c.h.b16 %v134
    %v170 = vunpack.c.l.b16 %v135
    %v171 = vunpack.c.h.b16 %v135
    %v172 = vunpack.c.l.b16 %v136
    %v173 = vunpack.c.h.b16 %v136
    %v174 = vunpack.c.l.b16 %v137
    %v175 = vunpack.c.h.b16 %v137
    %v176 = vunpack.c.l.b16 %v138
    %v177 = vunpack.c.h.b16 %v138
    %v178 = vunpack.c.l.b16 %v139
    %v179 = vunpack.c.h.b16 %v139
    %v180 = vpack.c.b16 %v164, %v160
    %v181 = vpack.c.b16 %v165, %v161
    %v182 = vpack.c.b16 %v166, %v162
    %v183 = vpack.c.b16 %v167, %v163
    %v184 = vpack.c.b16 %v172, %v168
    %v185 = vpack.c.b16 %v173, %v169
    %v186 = vpack.c.b16 %v174, %v170
    %v187 = vpack.c.b16 %v175, %v171
    %v188 = vpack.c.b16 %v176, %v176
    %v189 = vpack.c.b16 %v177, %v177
    %v190 = vpack.c.b16 %v178, %v178
    %v191 = vpack.c.b16 %v179, %v179
    %vm200 = vcmask 326656
    %v202 = vsel %vm200, %v122, 0
    %v205 = vsel %vm200, %v123, 0
    %v208 = vsel %vm200, %v124, 0
    %v211 = vsel %vm200, %v125, 0
    %v214 = vsel %vm200, %v126, 0
    %v217 = vsel %vm200, %v127, 0
    %v220 = vsel %vm200, %v128, 0
    %v223 = vsel %vm200, %v129, 0
    %vm225 = vcmask 1043456
    %v227 = vsel %vm225, %v188, 0
    %v230 = vsel %vm225, %v189, 0
    %v233 = vsel %vm225, %v190, 0
    %v236 = vsel %vm225, %v191, 0
    %238 = vmatpush.bf16.msra.mxu0 0
    %239 = vmatpush.bf16.msra.mxu0 0
    %240 = vmatpush.bf16.msra.mxu0 0
    %241 = vmatpush.bf16.msra.mxu0 0
    %242 = vmatpush.bf16.msra.mxu0 0
    %243 = vmatpush.bf16.msra.mxu0 %v227
    %244 = vmatpush.bf16.msra.mxu0 %v184
    %245 = vmatpush.bf16.msra.mxu0 %v180
    %246 = vmatmul.bf16.gmra.mxu0 %v202
    %v247 = vpop.f32.mrf.mxu0
    %v248 = vadd.f32 %v142, %v247
    %v249 = vpop.f32.mrf.mxu0
    %v250 = vadd.f32 %v142, %v249
    %251 = vmatmul.bf16.gmra.mxu0 %v205
    %v252 = vpop.f32.mrf.mxu0
    %v253 = vadd.f32 %v142, %v252
    %v254 = vpop.f32.mrf.mxu0
    %v255 = vadd.f32 %v142, %v254
    %256 = vmatmul.bf16.gmra.mxu0 %v208
    %v257 = vpop.f32.mrf.mxu0
    %v258 = vadd.f32 %v142, %v257
    %v259 = vpop.f32.mrf.mxu0
    %v260 = vadd.f32 %v142, %v259
    %261 = vmatmul.bf16.gmra.mxu0 %v211
    %v262 = vpop.f32.mrf.mxu0
    %v263 = vadd.f32 %v142, %v262
    %v264 = vpop.f32.mrf.mxu0
    %v265 = vadd.f32 %v142, %v264
    %266 = vmatmul.bf16.gmra.mxu0 %v214
    %v267 = vpop.f32.mrf.mxu0
    %v268 = vadd.f32 %v142, %v267
    %v269 = vpop.f32.mrf.mxu0
    %v270 = vadd.f32 %v142, %v269
    %271 = vmatmul.bf16.gmra.mxu0 %v217
    %v272 = vpop.f32.mrf.mxu0
    %v273 = vadd.f32 %v142, %v272
    %v274 = vpop.f32.mrf.mxu0
    %v275 = vadd.f32 %v142, %v274
    %276 = vmatmul.bf16.gmra.mxu0 %v220
    %v277 = vpop.f32.mrf.mxu0
    %v278 = vadd.f32 %v142, %v277
    %v279 = vpop.f32.mrf.mxu0
    %v280 = vadd.f32 %v142, %v279
    %281 = vmatmul.bf16.gmra.mxu0 %v223
    %v282 = vpop.f32.mrf.mxu0
    %v283 = vadd.f32 %v142, %v282
    %v284 = vpop.f32.mrf.mxu0
    %v285 = vadd.f32 %v142, %v284
    %286 = vdwg.mxu0
    %287 = vmatpush.bf16.msra.mxu0 0
    %288 = vmatpush.bf16.msra.mxu0 0
    %289 = vmatpush.bf16.msra.mxu0 0
    %290 = vmatpush.bf16.msra.mxu0 0
    %291 = vmatpush.bf16.msra.mxu0 0
    %292 = vmatpush.bf16.msra.mxu0 %v230
    %293 = vmatpush.bf16.msra.mxu0 %v185
    %294 = vmatpush.bf16.msra.mxu0 %v181
    %295 = vmatmul.bf16.gmra.mxu0 %v202
    %v296 = vpop.f32.mrf.mxu0
    %v297 = vadd.f32 %v143, %v296
    %v298 = vpop.f32.mrf.mxu0
    %v299 = vadd.f32 %v143, %v298
    %300 = vmatmul.bf16.gmra.mxu0 %v205
    %v301 = vpop.f32.mrf.mxu0
    %v302 = vadd.f32 %v143, %v301
    %v303 = vpop.f32.mrf.mxu0
    %v304 = vadd.f32 %v143, %v303
    %305 = vmatmul.bf16.gmra.mxu0 %v208
    %v306 = vpop.f32.mrf.mxu0
    %v307 = vadd.f32 %v143, %v306
    %v308 = vpop.f32.mrf.mxu0
    %v309 = vadd.f32 %v143, %v308
    %310 = vmatmul.bf16.gmra.mxu0 %v211
    %v311 = vpop.f32.mrf.mxu0
    %v312 = vadd.f32 %v143, %v311
    %v313 = vpop.f32.mrf.mxu0
    %v314 = vadd.f32 %v143, %v313
    %315 = vmatmul.bf16.gmra.mxu0 %v214
    %v316 = vpop.f32.mrf.mxu0
    %v317 = vadd.f32 %v143, %v316
    %v318 = vpop.f32.mrf.mxu0
    %v319 = vadd.f32 %v143, %v318
    %320 = vmatmul.bf16.gmra.mxu0 %v217
    %v321 = vpop.f32.mrf.mxu0
    %v322 = vadd.f32 %v143, %v321
    %v323 = vpop.f32.mrf.mxu0
    %v324 = vadd.f32 %v143, %v323
    %325 = vmatmul.bf16.gmra.mxu0 %v220
    %v326 = vpop.f32.mrf.mxu0
    %v327 = vadd.f32 %v143, %v326
    %v328 = vpop.f32.mrf.mxu0
    %v329 = vadd.f32 %v143, %v328
    %330 = vmatmul.bf16.gmra.mxu0 %v223
    %v331 = vpop.f32.mrf.mxu0
    %v332 = vadd.f32 %v143, %v331
    %v333 = vpop.f32.mrf.mxu0
    %v334 = vadd.f32 %v143, %v333
    %335 = vdwg.mxu0
    %336 = vmatpush.bf16.msra.mxu0 0
    %337 = vmatpush.bf16.msra.mxu0 0
    %338 = vmatpush.bf16.msra.mxu0 0
    %339 = vmatpush.bf16.msra.mxu0 0
    %340 = vmatpush.bf16.msra.mxu0 0
    %341 = vmatpush.bf16.msra.mxu0 %v233
    %342 = vmatpush.bf16.msra.mxu0 %v186
    %343 = vmatpush.bf16.msra.mxu0 %v182
    %344 = vmatmul.bf16.gmra.mxu0 %v202
    %v345 = vpop.f32.mrf.mxu0
    %v346 = vadd.f32 %v144, %v345
    %v347 = vpop.f32.mrf.mxu0
    %v348 = vadd.f32 %v144, %v347
    %349 = vmatmul.bf16.gmra.mxu0 %v205
    %v350 = vpop.f32.mrf.mxu0
    %v351 = vadd.f32 %v144, %v350
    %v352 = vpop.f32.mrf.mxu0
    %v353 = vadd.f32 %v144, %v352
    %354 = vmatmul.bf16.gmra.mxu0 %v208
    %v355 = vpop.f32.mrf.mxu0
    %v356 = vadd.f32 %v144, %v355
    %v357 = vpop.f32.mrf.mxu0
    %v358 = vadd.f32 %v144, %v357
    %359 = vmatmul.bf16.gmra.mxu0 %v211
    %v360 = vpop.f32.mrf.mxu0
    %v361 = vadd.f32 %v144, %v360
    %v362 = vpop.f32.mrf.mxu0
    %v363 = vadd.f32 %v144, %v362
    %364 = vmatmul.bf16.gmra.mxu0 %v214
    %v365 = vpop.f32.mrf.mxu0
    %v366 = vadd.f32 %v144, %v365
    %v367 = vpop.f32.mrf.mxu0
    %v368 = vadd.f32 %v144, %v367
    %369 = vmatmul.bf16.gmra.mxu0 %v217
    %v370 = vpop.f32.mrf.mxu0
    %v371 = vadd.f32 %v144, %v370
    %v372 = vpop.f32.mrf.mxu0
    %v373 = vadd.f32 %v144, %v372
    %374 = vmatmul.bf16.gmra.mxu0 %v220
    %v375 = vpop.f32.mrf.mxu0
    %v376 = vadd.f32 %v144, %v375
    %v377 = vpop.f32.mrf.mxu0
    %v378 = vadd.f32 %v144, %v377
    %379 = vmatmul.bf16.gmra.mxu0 %v223
    %v380 = vpop.f32.mrf.mxu0
    %v381 = vadd.f32 %v144, %v380
    %v382 = vpop.f32.mrf.mxu0
    %v383 = vadd.f32 %v144, %v382
    %384 = vdwg.mxu0
    %385 = vmatpush.bf16.msra.mxu0 0
    %386 = vmatpush.bf16.msra.mxu0 0
    %387 = vmatpush.bf16.msra.mxu0 0
    %388 = vmatpush.bf16.msra.mxu0 0
    %389 = vmatpush.bf16.msra.mxu0 0
    %390 = vmatpush.bf16.msra.mxu0 %v236
    %391 = vmatpush.bf16.msra.mxu0 %v187
    %392 = vmatpush.bf16.msra.mxu0 %v183
    %393 = vmatmul.bf16.gmra.mxu0 %v202
    %v394 = vpop.f32.mrf.mxu0
    %v395 = vadd.f32 %v145, %v394
    %v396 = vpop.f32.mrf.mxu0
    %v397 = vadd.f32 %v145, %v396
    %398 = vmatmul.bf16.gmra.mxu0 %v205
    %v399 = vpop.f32.mrf.mxu0
    %v400 = vadd.f32 %v145, %v399
    %v401 = vpop.f32.mrf.mxu0
    %v402 = vadd.f32 %v145, %v401
    %403 = vmatmul.bf16.gmra.mxu0 %v208
    %v404 = vpop.f32.mrf.mxu0
    %v405 = vadd.f32 %v145, %v404
    %v406 = vpop.f32.mrf.mxu0
    %v407 = vadd.f32 %v145, %v406
    %408 = vmatmul.bf16.gmra.mxu0 %v211
    %v409 = vpop.f32.mrf.mxu0
    %v410 = vadd.f32 %v145, %v409
    %v411 = vpop.f32.mrf.mxu0
    %v412 = vadd.f32 %v145, %v411
    %413 = vmatmul.bf16.gmra.mxu0 %v214
    %v414 = vpop.f32.mrf.mxu0
    %v415 = vadd.f32 %v145, %v414
    %v416 = vpop.f32.mrf.mxu0
    %v417 = vadd.f32 %v145, %v416
    %418 = vmatmul.bf16.gmra.mxu0 %v217
    %v419 = vpop.f32.mrf.mxu0
    %v420 = vadd.f32 %v145, %v419
    %v421 = vpop.f32.mrf.mxu0
    %v422 = vadd.f32 %v145, %v421
    %423 = vmatmul.bf16.gmra.mxu0 %v220
    %v424 = vpop.f32.mrf.mxu0
    %v425 = vadd.f32 %v145, %v424
    %v426 = vpop.f32.mrf.mxu0
    %v427 = vadd.f32 %v145, %v426
    %428 = vmatmul.bf16.gmra.mxu0 %v223
    %v429 = vpop.f32.mrf.mxu0
    %v430 = vadd.f32 %v145, %v429
    %v431 = vpop.f32.mrf.mxu0
    %v432 = vadd.f32 %v145, %v431
    %433 = vdwg.mxu0
    %v434 = vmax.f32 %v248, 0.0
    %v435 = vmax.f32 %v297, 0.0
    %v436 = vmax.f32 %v346, 0.0
    %v437 = vmax.f32 %v395, 0.0
    %v438 = vmax.f32 %v250, 0.0
    %v439 = vmax.f32 %v299, 0.0
    %v440 = vmax.f32 %v348, 0.0
    %v441 = vmax.f32 %v397, 0.0
    %v442 = vmax.f32 %v253, 0.0
    %v443 = vmax.f32 %v302, 0.0
    %v444 = vmax.f32 %v351, 0.0
    %v445 = vmax.f32 %v400, 0.0
    %v446 = vmax.f32 %v255, 0.0
    %v447 = vmax.f32 %v304, 0.0
    %v448 = vmax.f32 %v353, 0.0
    %v449 = vmax.f32 %v402, 0.0
    %v450 = vmax.f32 %v258, 0.0
    %v451 = vmax.f32 %v307, 0.0
    %v452 = vmax.f32 %v356, 0.0
    %v453 = vmax.f32 %v405, 0.0
    %v454 = vmax.f32 %v260, 0.0
    %v455 = vmax.f32 %v309, 0.0
    %v456 = vmax.f32 %v358, 0.0
    %v457 = vmax.f32 %v407, 0.0
    %v458 = vmax.f32 %v263, 0.0
    %v459 = vmax.f32 %v312, 0.0
    %v460 = vmax.f32 %v361, 0.0
    %v461 = vmax.f32 %v410, 0.0
    %v462 = vmax.f32 %v265, 0.0
    %v463 = vmax.f32 %v314, 0.0
    %v464 = vmax.f32 %v363, 0.0
    %v465 = vmax.f32 %v412, 0.0
    %v466 = vmax.f32 %v268, 0.0
    %v467 = vmax.f32 %v317, 0.0
    %v468 = vmax.f32 %v366, 0.0
    %v469 = vmax.f32 %v415, 0.0
    %v470 = vmax.f32 %v270, 0.0
    %v471 = vmax.f32 %v319, 0.0
    %v472 = vmax.f32 %v368, 0.0
    %v473 = vmax.f32 %v417, 0.0
    %v474 = vmax.f32 %v273, 0.0
    %v475 = vmax.f32 %v322, 0.0
    %v476 = vmax.f32 %v371, 0.0
    %v477 = vmax.f32 %v420, 0.0
    %v478 = vmax.f32 %v275, 0.0
    %v479 = vmax.f32 %v324, 0.0
    %v480 = vmax.f32 %v373, 0.0
    %v481 = vmax.f32 %v422, 0.0
    %v482 = vmax.f32 %v278, 0.0
    %v483 = vmax.f32 %v327, 0.0
    %v484 = vmax.f32 %v376, 0.0
    %v485 = vmax.f32 %v425, 0.0
    %v486 = vmax.f32 %v280, 0.0
    %v487 = vmax.f32 %v329, 0.0
    %v488 = vmax.f32 %v378, 0.0
    %v489 = vmax.f32 %v427, 0.0
    %v490 = vmax.f32 %v283, 0.0
    %v491 = vmax.f32 %v332, 0.0
    %v492 = vmax.f32 %v381, 0.0
    %v493 = vmax.f32 %v430, 0.0
    %v494 = vmax.f32 %v285, 0.0
    %v495 = vmax.f32 %v334, 0.0
    %v496 = vmax.f32 %v383, 0.0
    %v497 = vmax.f32 %v432, 0.0
    %v498 = vadd.f32 %v434, %v435
    %v499 = vadd.f32 %v498, %v436
    %v500 = vadd.f32 %v499, %v437
    %501 = vadd.xlane.f32.xlu0 %v500
    %v502 = vpop.xlane.xlu0 %501
    %v503 = vadd.f32 %v438, %v439
    %v504 = vadd.f32 %v503, %v440
    %v505 = vadd.f32 %v504, %v441
    %506 = vadd.xlane.f32.xlu0 %v505
    %v507 = vpop.xlane.xlu0 %506
    %v508 = vadd.f32 %v442, %v443
    %v509 = vadd.f32 %v508, %v444
    %v510 = vadd.f32 %v509, %v445
    %511 = vadd.xlane.f32.xlu0 %v510
    %v512 = vpop.xlane.xlu0 %511
    %v513 = vadd.f32 %v446, %v447
    %v514 = vadd.f32 %v513, %v448
    %v515 = vadd.f32 %v514, %v449
    %516 = vadd.xlane.f32.xlu0 %v515
    %v517 = vpop.xlane.xlu0 %516
    %v518 = vadd.f32 %v450, %v451
    %v519 = vadd.f32 %v518, %v452
    %v520 = vadd.f32 %v519, %v453
    %521 = vadd.xlane.f32.xlu0 %v520
    %v522 = vpop.xlane.xlu0 %521
    %v523 = vadd.f32 %v454, %v455
    %v524 = vadd.f32 %v523, %v456
    %v525 = vadd.f32 %v524, %v457
    %526 = vadd.xlane.f32.xlu0 %v525
    %v527 = vpop.xlane.xlu0 %526
    %v528 = vadd.f32 %v458, %v459
    %v529 = vadd.f32 %v528, %v460
    %v530 = vadd.f32 %v529, %v461
    %531 = vadd.xlane.f32.xlu0 %v530
    %v532 = vpop.xlane.xlu0 %531
    %v533 = vadd.f32 %v462, %v463
    %v534 = vadd.f32 %v533, %v464
    %v535 = vadd.f32 %v534, %v465
    %536 = vadd.xlane.f32.xlu0 %v535
    %v537 = vpop.xlane.xlu0 %536
    %v538 = vadd.f32 %v466, %v467
    %v539 = vadd.f32 %v538, %v468
    %v540 = vadd.f32 %v539, %v469
    %541 = vadd.xlane.f32.xlu0 %v540
    %v542 = vpop.xlane.xlu0 %541
    %v543 = vadd.f32 %v470, %v471
    %v544 = vadd.f32 %v543, %v472
    %v545 = vadd.f32 %v544, %v473
    %546 = vadd.xlane.f32.xlu0 %v545
    %v547 = vpop.xlane.xlu0 %546
    %v548 = vadd.f32 %v474, %v475
    %v549 = vadd.f32 %v548, %v476
    %v550 = vadd.f32 %v549, %v477
    %551 = vadd.xlane.f32.xlu0 %v550
    %v552 = vpop.xlane.xlu0 %551
    %v553 = vadd.f32 %v478, %v479
    %v554 = vadd.f32 %v553, %v480
    %v555 = vadd.f32 %v554, %v481
    %556 = vadd.xlane.f32.xlu0 %v555
    %v557 = vpop.xlane.xlu0 %556
    %v558 = vadd.f32 %v482, %v483
    %v559 = vadd.f32 %v558, %v484
    %v560 = vadd.f32 %v559, %v485
    %561 = vadd.xlane.f32.xlu0 %v560
    %v562 = vpop.xlane.xlu0 %561
    %v563 = vadd.f32 %v486, %v487
    %v564 = vadd.f32 %v563, %v488
    %v565 = vadd.f32 %v564, %v489
    %566 = vadd.xlane.f32.xlu0 %v565
    %v567 = vpop.xlane.xlu0 %566
    %v568 = vadd.f32 %v490, %v491
    %v569 = vadd.f32 %v568, %v492
    %v570 = vadd.f32 %v569, %v493
    %571 = vadd.xlane.f32.xlu0 %v570
    %v572 = vpop.xlane.xlu0 %571
    %v573 = vadd.f32 %v494, %v495
    %v574 = vadd.f32 %v573, %v496
    %v575 = vadd.f32 %v574, %v497
    %576 = vadd.xlane.f32.xlu0 %v575
    %v577 = vpop.xlane.xlu0 %576
    %v578 = vmul.f32 %v502, 0.001953125
    %v579 = vmul.f32 %v507, 0.001953125
    %v580 = vmul.f32 %v512, 0.001953125
    %v581 = vmul.f32 %v517, 0.001953125
    %v582 = vmul.f32 %v522, 0.001953125
    %v583 = vmul.f32 %v527, 0.001953125
    %v584 = vmul.f32 %v532, 0.001953125
    %v585 = vmul.f32 %v537, 0.001953125
    %v586 = vmul.f32 %v542, 0.001953125
    %v587 = vmul.f32 %v547, 0.001953125
    %v588 = vmul.f32 %v552, 0.001953125
    %v589 = vmul.f32 %v557, 0.001953125
    %v590 = vmul.f32 %v562, 0.001953125
    %v591 = vmul.f32 %v567, 0.001953125
    %v592 = vmul.f32 %v572, 0.001953125
    %v593 = vmul.f32 %v577, 0.001953125
    %v594 = vmul.f32 %v434, %v434
    %v595 = vmul.f32 %v435, %v435
    %v596 = vmul.f32 %v436, %v436
    %v597 = vmul.f32 %v437, %v437
    %v598 = vmul.f32 %v438, %v438
    %v599 = vmul.f32 %v439, %v439
    %v600 = vmul.f32 %v440, %v440
    %v601 = vmul.f32 %v441, %v441
    %v602 = vmul.f32 %v442, %v442
    %v603 = vmul.f32 %v443, %v443
    %v604 = vmul.f32 %v444, %v444
    %v605 = vmul.f32 %v445, %v445
    %v606 = vmul.f32 %v446, %v446
    %v607 = vmul.f32 %v447, %v447
    %v608 = vmul.f32 %v448, %v448
    %v609 = vmul.f32 %v449, %v449
    %v610 = vmul.f32 %v450, %v450
    %v611 = vmul.f32 %v451, %v451
    %v612 = vmul.f32 %v452, %v452
    %v613 = vmul.f32 %v453, %v453
    %v614 = vmul.f32 %v454, %v454
    %v615 = vmul.f32 %v455, %v455
    %v616 = vmul.f32 %v456, %v456
    %v617 = vmul.f32 %v457, %v457
    %v618 = vmul.f32 %v458, %v458
    %v619 = vmul.f32 %v459, %v459
    %v620 = vmul.f32 %v460, %v460
    %v621 = vmul.f32 %v461, %v461
    %v622 = vmul.f32 %v462, %v462
    %v623 = vmul.f32 %v463, %v463
    %v624 = vmul.f32 %v464, %v464
    %v625 = vmul.f32 %v465, %v465
    %v626 = vmul.f32 %v466, %v466
    %v627 = vmul.f32 %v467, %v467
    %v628 = vmul.f32 %v468, %v468
    %v629 = vmul.f32 %v469, %v469
    %v630 = vmul.f32 %v470, %v470
    %v631 = vmul.f32 %v471, %v471
    %v632 = vmul.f32 %v472, %v472
    %v633 = vmul.f32 %v473, %v473
    %v634 = vmul.f32 %v474, %v474
    %v635 = vmul.f32 %v475, %v475
    %v636 = vmul.f32 %v476, %v476
    %v637 = vmul.f32 %v477, %v477
    %v638 = vmul.f32 %v478, %v478
    %v639 = vmul.f32 %v479, %v479
    %v640 = vmul.f32 %v480, %v480
    %v641 = vmul.f32 %v481, %v481
    %v642 = vmul.f32 %v482, %v482
    %v643 = vmul.f32 %v483, %v483
    %v644 = vmul.f32 %v484, %v484
    %v645 = vmul.f32 %v485, %v485
    %v646 = vmul.f32 %v486, %v486
    %v647 = vmul.f32 %v487, %v487
    %v648 = vmul.f32 %v488, %v488
    %v649 = vmul.f32 %v489, %v489
    %v650 = vmul.f32 %v490, %v490
    %v651 = vmul.f32 %v491, %v491
    %v652 = vmul.f32 %v492, %v492
    %v653 = vmul.f32 %v493, %v493
    %v654 = vmul.f32 %v494, %v494
    %v655 = vmul.f32 %v495, %v495
    %v656 = vmul.f32 %v496, %v496
    %v657 = vmul.f32 %v497, %v497
    %v658 = vadd.f32 %v594, %v595
    %v659 = vadd.f32 %v658, %v596
    %v660 = vadd.f32 %v659, %v597
    %661 = vadd.xlane.f32.xlu0 %v660
    %v662 = vpop.xlane.xlu0 %661
    %v663 = vadd.f32 %v598, %v599
    %v664 = vadd.f32 %v663, %v600
    %v665 = vadd.f32 %v664, %v601
    %666 = vadd.xlane.f32.xlu0 %v665
    %v667 = vpop.xlane.xlu0 %666
    %v668 = vadd.f32 %v602, %v603
    %v669 = vadd.f32 %v668, %v604
    %v670 = vadd.f32 %v669, %v605
    %671 = vadd.xlane.f32.xlu0 %v670
    %v672 = vpop.xlane.xlu0 %671
    %v673 = vadd.f32 %v606, %v607
    %v674 = vadd.f32 %v673, %v608
    %v675 = vadd.f32 %v674, %v609
    %676 = vadd.xlane.f32.xlu0 %v675
    %v677 = vpop.xlane.xlu0 %676
    %v678 = vadd.f32 %v610, %v611
    %v679 = vadd.f32 %v678, %v612
    %v680 = vadd.f32 %v679, %v613
    %681 = vadd.xlane.f32.xlu0 %v680
    %v682 = vpop.xlane.xlu0 %681
    %v683 = vadd.f32 %v614, %v615
    %v684 = vadd.f32 %v683, %v616
    %v685 = vadd.f32 %v684, %v617
    %686 = vadd.xlane.f32.xlu0 %v685
    %v687 = vpop.xlane.xlu0 %686
    %v688 = vadd.f32 %v618, %v619
    %v689 = vadd.f32 %v688, %v620
    %v690 = vadd.f32 %v689, %v621
    %691 = vadd.xlane.f32.xlu0 %v690
    %v692 = vpop.xlane.xlu0 %691
    %v693 = vadd.f32 %v622, %v623
    %v694 = vadd.f32 %v693, %v624
    %v695 = vadd.f32 %v694, %v625
    %696 = vadd.xlane.f32.xlu0 %v695
    %v697 = vpop.xlane.xlu0 %696
    %v698 = vadd.f32 %v626, %v627
    %v699 = vadd.f32 %v698, %v628
    %v700 = vadd.f32 %v699, %v629
    %701 = vadd.xlane.f32.xlu0 %v700
    %v702 = vpop.xlane.xlu0 %701
    %v703 = vadd.f32 %v630, %v631
    %v704 = vadd.f32 %v703, %v632
    %v705 = vadd.f32 %v704, %v633
    %706 = vadd.xlane.f32.xlu0 %v705
    %v707 = vpop.xlane.xlu0 %706
    %v708 = vadd.f32 %v634, %v635
    %v709 = vadd.f32 %v708, %v636
    %v710 = vadd.f32 %v709, %v637
    %711 = vadd.xlane.f32.xlu0 %v710
    %v712 = vpop.xlane.xlu0 %711
    %v713 = vadd.f32 %v638, %v639
    %v714 = vadd.f32 %v713, %v640
    %v715 = vadd.f32 %v714, %v641
    %716 = vadd.xlane.f32.xlu0 %v715
    %v717 = vpop.xlane.xlu0 %716
    %v718 = vadd.f32 %v642, %v643
    %v719 = vadd.f32 %v718, %v644
    %v720 = vadd.f32 %v719, %v645
    %721 = vadd.xlane.f32.xlu0 %v720
    %v722 = vpop.xlane.xlu0 %721
    %v723 = vadd.f32 %v646, %v647
    %v724 = vadd.f32 %v723, %v648
    %v725 = vadd.f32 %v724, %v649
    %726 = vadd.xlane.f32.xlu0 %v725
    %v727 = vpop.xlane.xlu0 %726
    %v728 = vadd.f32 %v650, %v651
    %v729 = vadd.f32 %v728, %v652
    %v730 = vadd.f32 %v729, %v653
    %731 = vadd.xlane.f32.xlu0 %v730
    %v732 = vpop.xlane.xlu0 %731
    %v733 = vadd.f32 %v654, %v655
    %v734 = vadd.f32 %v733, %v656
    %v735 = vadd.f32 %v734, %v657
    %736 = vadd.xlane.f32.xlu0 %v735
    %v737 = vpop.xlane.xlu0 %736
    %v738 = vmul.f32 %v662, 0.001953125
    %v739 = vmul.f32 %v667, 0.001953125
    %v740 = vmul.f32 %v672, 0.001953125
    %v741 = vmul.f32 %v677, 0.001953125
    %v742 = vmul.f32 %v682, 0.001953125
    %v743 = vmul.f32 %v687, 0.001953125
    %v744 = vmul.f32 %v692, 0.001953125
    %v745 = vmul.f32 %v697, 0.001953125
    %v746 = vmul.f32 %v702, 0.001953125
    %v747 = vmul.f32 %v707, 0.001953125
    %v748 = vmul.f32 %v712, 0.001953125
    %v749 = vmul.f32 %v717, 0.001953125
    %v750 = vmul.f32 %v722, 0.001953125
    %v751 = vmul.f32 %v727, 0.001953125
    %v752 = vmul.f32 %v732, 0.001953125
    %v753 = vmul.f32 %v737, 0.001953125
    %v754 = vmul.f32 %v578, %v578
    %v755 = vmul.f32 %v579, %v579
    %v756 = vmul.f32 %v580, %v580
    %v757 = vmul.f32 %v581, %v581
    %v758 = vmul.f32 %v582, %v582
    %v759 = vmul.f32 %v583, %v583
    %v760 = vmul.f32 %v584, %v584
    %v761 = vmul.f32 %v585, %v585
    %v762 = vmul.f32 %v586, %v586
    %v763 = vmul.f32 %v587, %v587
    %v764 = vmul.f32 %v588, %v588
    %v765 = vmul.f32 %v589, %v589
    %v766 = vmul.f32 %v590, %v590
    %v767 = vmul.f32 %v591, %v591
    %v768 = vmul.f32 %v592, %v592
    %v769 = vmul.f32 %v593, %v593
    %v770 = vsub.f32 %v738, %v754
    %v771 = vsub.f32 %v739, %v755
    %v772 = vsub.f32 %v740, %v756
    %v773 = vsub.f32 %v741, %v757
    %v774 = vsub.f32 %v742, %v758
    %v775 = vsub.f32 %v743, %v759
    %v776 = vsub.f32 %v744, %v760
    %v777 = vsub.f32 %v745, %v761
    %v778 = vsub.f32 %v746, %v762
    %v779 = vsub.f32 %v747, %v763
    %v780 = vsub.f32 %v748, %v764
    %v781 = vsub.f32 %v749, %v765
    %v782 = vsub.f32 %v750, %v766
    %v783 = vsub.f32 %v751, %v767
    %v784 = vsub.f32 %v752, %v768
    %v785 = vsub.f32 %v753, %v769
    %v786 = vmax.f32 %v770, 0.0
    %v787 = vmax.f32 %v771, 0.0
    %v788 = vmax.f32 %v772, 0.0
    %v789 = vmax.f32 %v773, 0.0
    %v790 = vmax.f32 %v774, 0.0
    %v791 = vmax.f32 %v775, 0.0
    %v792 = vmax.f32 %v776, 0.0
    %v793 = vmax.f32 %v777, 0.0
    %v794 = vmax.f32 %v778, 0.0
    %v795 = vmax.f32 %v779, 0.0
    %v796 = vmax.f32 %v780, 0.0
    %v797 = vmax.f32 %v781, 0.0
    %v798 = vmax.f32 %v782, 0.0
    %v799 = vmax.f32 %v783, 0.0
    %v800 = vmax.f32 %v784, 0.0
    %v801 = vmax.f32 %v785, 0.0
    %v802 = vadd.f32 %v786, 1e-05
    %v803 = vadd.f32 %v787, 1e-05
    %v804 = vadd.f32 %v788, 1e-05
    %v805 = vadd.f32 %v789, 1e-05
    %v806 = vadd.f32 %v790, 1e-05
    %v807 = vadd.f32 %v791, 1e-05
    %v808 = vadd.f32 %v792, 1e-05
    %v809 = vadd.f32 %v793, 1e-05
    %v810 = vadd.f32 %v794, 1e-05
    %v811 = vadd.f32 %v795, 1e-05
    %v812 = vadd.f32 %v796, 1e-05
    %v813 = vadd.f32 %v797, 1e-05
    %v814 = vadd.f32 %v798, 1e-05
    %v815 = vadd.f32 %v799, 1e-05
    %v816 = vadd.f32 %v800, 1e-05
    %v817 = vadd.f32 %v801, 1e-05
    %v818 = vrsqrt.pop %v802
    %v819 = vmul.f32 %v818, %v802
    %v820 = vmul.f32 %v819, %v818
    %v821 = vmul.f32 0.5, %v820
    %v822 = vsub.f32 1.5, %v821
    %v823 = vmul.f32 %v818, %v822
    %vm824 = vweird.f32 %v802
    %vm825 = vweird.f32 %v818
    %vm826 = vmor %vm824, %vm825
    %v827 = vsel %vm826, %v818, %v823
    %v828 = vrsqrt.pop %v803
    %v829 = vmul.f32 %v828, %v803
    %v830 = vmul.f32 %v829, %v828
    %v831 = vmul.f32 0.5, %v830
    %v832 = vsub.f32 1.5, %v831
    %v833 = vmul.f32 %v828, %v832
    %vm834 = vweird.f32 %v803
    %vm835 = vweird.f32 %v828
    %vm836 = vmor %vm834, %vm835
    %v837 = vsel %vm836, %v828, %v833
    %v838 = vrsqrt.pop %v804
    %v839 = vmul.f32 %v838, %v804
    %v840 = vmul.f32 %v839, %v838
    %v841 = vmul.f32 0.5, %v840
    %v842 = vsub.f32 1.5, %v841
    %v843 = vmul.f32 %v838, %v842
    %vm844 = vweird.f32 %v804
    %vm845 = vweird.f32 %v838
    %vm846 = vmor %vm844, %vm845
    %v847 = vsel %vm846, %v838, %v843
    %v848 = vrsqrt.pop %v805
    %v849 = vmul.f32 %v848, %v805
    %v850 = vmul.f32 %v849, %v848
    %v851 = vmul.f32 0.5, %v850
    %v852 = vsub.f32 1.5, %v851
    %v853 = vmul.f32 %v848, %v852
    %vm854 = vweird.f32 %v805
    %vm855 = vweird.f32 %v848
    %vm856 = vmor %vm854, %vm855
    %v857 = vsel %vm856, %v848, %v853
    %v858 = vrsqrt.pop %v806
    %v859 = vmul.f32 %v858, %v806
    %v860 = vmul.f32 %v859, %v858
    %v861 = vmul.f32 0.5, %v860
    %v862 = vsub.f32 1.5, %v861
    %v863 = vmul.f32 %v858, %v862
    %vm864 = vweird.f32 %v806
    %vm865 = vweird.f32 %v858
    %vm866 = vmor %vm864, %vm865
    %v867 = vsel %vm866, %v858, %v863
    %v868 = vrsqrt.pop %v807
    %v869 = vmul.f32 %v868, %v807
    %v870 = vmul.f32 %v869, %v868
    %v871 = vmul.f32 0.5, %v870
    %v872 = vsub.f32 1.5, %v871
    %v873 = vmul.f32 %v868, %v872
    %vm874 = vweird.f32 %v807
    %vm875 = vweird.f32 %v868
    %vm876 = vmor %vm874, %vm875
    %v877 = vsel %vm876, %v868, %v873
    %v878 = vrsqrt.pop %v808
    %v879 = vmul.f32 %v878, %v808
    %v880 = vmul.f32 %v879, %v878
    %v881 = vmul.f32 0.5, %v880
    %v882 = vsub.f32 1.5, %v881
    %v883 = vmul.f32 %v878, %v882
    %vm884 = vweird.f32 %v808
    %vm885 = vweird.f32 %v878
    %vm886 = vmor %vm884, %vm885
    %v887 = vsel %vm886, %v878, %v883
    %v888 = vrsqrt.pop %v809
    %v889 = vmul.f32 %v888, %v809
    %v890 = vmul.f32 %v889, %v888
    %v891 = vmul.f32 0.5, %v890
    %v892 = vsub.f32 1.5, %v891
    %v893 = vmul.f32 %v888, %v892
    %vm894 = vweird.f32 %v809
    %vm895 = vweird.f32 %v888
    %vm896 = vmor %vm894, %vm895
    %v897 = vsel %vm896, %v888, %v893
    %v898 = vrsqrt.pop %v810
    %v899 = vmul.f32 %v898, %v810
    %v900 = vmul.f32 %v899, %v898
    %v901 = vmul.f32 0.5, %v900
    %v902 = vsub.f32 1.5, %v901
    %v903 = vmul.f32 %v898, %v902
    %vm904 = vweird.f32 %v810
    %vm905 = vweird.f32 %v898
    %vm906 = vmor %vm904, %vm905
    %v907 = vsel %vm906, %v898, %v903
    %v908 = vrsqrt.pop %v811
    %v909 = vmul.f32 %v908, %v811
    %v910 = vmul.f32 %v909, %v908
    %v911 = vmul.f32 0.5, %v910
    %v912 = vsub.f32 1.5, %v911
    %v913 = vmul.f32 %v908, %v912
    %vm914 = vweird.f32 %v811
    %vm915 = vweird.f32 %v908
    %vm916 = vmor %vm914, %vm915
    %v917 = vsel %vm916, %v908, %v913
    %v918 = vrsqrt.pop %v812
    %v919 = vmul.f32 %v918, %v812
    %v920 = vmul.f32 %v919, %v918
    %v921 = vmul.f32 0.5, %v920
    %v922 = vsub.f32 1.5, %v921
    %v923 = vmul.f32 %v918, %v922
    %vm924 = vweird.f32 %v812
    %vm925 = vweird.f32 %v918
    %vm926 = vmor %vm924, %vm925
    %v927 = vsel %vm926, %v918, %v923
    %v928 = vrsqrt.pop %v813
    %v929 = vmul.f32 %v928, %v813
    %v930 = vmul.f32 %v929, %v928
    %v931 = vmul.f32 0.5, %v930
    %v932 = vsub.f32 1.5, %v931
    %v933 = vmul.f32 %v928, %v932
    %vm934 = vweird.f32 %v813
    %vm935 = vweird.f32 %v928
    %vm936 = vmor %vm934, %vm935
    %v937 = vsel %vm936, %v928, %v933
    %v938 = vrsqrt.pop %v814
    %v939 = vmul.f32 %v938, %v814
    %v940 = vmul.f32 %v939, %v938
    %v941 = vmul.f32 0.5, %v940
    %v942 = vsub.f32 1.5, %v941
    %v943 = vmul.f32 %v938, %v942
    %vm944 = vweird.f32 %v814
    %vm945 = vweird.f32 %v938
    %vm946 = vmor %vm944, %vm945
    %v947 = vsel %vm946, %v938, %v943
    %v948 = vrsqrt.pop %v815
    %v949 = vmul.f32 %v948, %v815
    %v950 = vmul.f32 %v949, %v948
    %v951 = vmul.f32 0.5, %v950
    %v952 = vsub.f32 1.5, %v951
    %v953 = vmul.f32 %v948, %v952
    %vm954 = vweird.f32 %v815
    %vm955 = vweird.f32 %v948
    %vm956 = vmor %vm954, %vm955
    %v957 = vsel %vm956, %v948, %v953
    %v958 = vrsqrt.pop %v816
    %v959 = vmul.f32 %v958, %v816
    %v960 = vmul.f32 %v959, %v958
    %v961 = vmul.f32 0.5, %v960
    %v962 = vsub.f32 1.5, %v961
    %v963 = vmul.f32 %v958, %v962
    %vm964 = vweird.f32 %v816
    %vm965 = vweird.f32 %v958
    %vm966 = vmor %vm964, %vm965
    %v967 = vsel %vm966, %v958, %v963
    %v968 = vrsqrt.pop %v817
    %v969 = vmul.f32 %v968, %v817
    %v970 = vmul.f32 %v969, %v968
    %v971 = vmul.f32 0.5, %v970
    %v972 = vsub.f32 1.5, %v971
    %v973 = vmul.f32 %v968, %v972
    %vm974 = vweird.f32 %v817
    %vm975 = vweird.f32 %v968
    %vm976 = vmor %vm974, %vm975
    %v977 = vsel %vm976, %v968, %v973
    %v978 = vsub.f32 %v434, %v578
    %v979 = vsub.f32 %v435, %v578
    %v980 = vsub.f32 %v436, %v578
    %v981 = vsub.f32 %v437, %v578
    %v982 = vsub.f32 %v438, %v579
    %v983 = vsub.f32 %v439, %v579
    %v984 = vsub.f32 %v440, %v579
    %v985 = vsub.f32 %v441, %v579
    %v986 = vsub.f32 %v442, %v580
    %v987 = vsub.f32 %v443, %v580
    %v988 = vsub.f32 %v444, %v580
    %v989 = vsub.f32 %v445, %v580
    %v990 = vsub.f32 %v446, %v581
    %v991 = vsub.f32 %v447, %v581
    %v992 = vsub.f32 %v448, %v581
    %v993 = vsub.f32 %v449, %v581
    %v994 = vsub.f32 %v450, %v582
    %v995 = vsub.f32 %v451, %v582
    %v996 = vsub.f32 %v452, %v582
    %v997 = vsub.f32 %v453, %v582
    %v998 = vsub.f32 %v454, %v583
    %v999 = vsub.f32 %v455, %v583
    %v1000 = vsub.f32 %v456, %v583
    %v1001 = vsub.f32 %v457, %v583
    %v1002 = vsub.f32 %v458, %v584
    %v1003 = vsub.f32 %v459, %v584
    %v1004 = vsub.f32 %v460, %v584
    %v1005 = vsub.f32 %v461, %v584
    %v1006 = vsub.f32 %v462, %v585
    %v1007 = vsub.f32 %v463, %v585
    %v1008 = vsub.f32 %v464, %v585
    %v1009 = vsub.f32 %v465, %v585
    %v1010 = vsub.f32 %v466, %v586
    %v1011 = vsub.f32 %v467, %v586
    %v1012 = vsub.f32 %v468, %v586
    %v1013 = vsub.f32 %v469, %v586
    %v1014 = vsub.f32 %v470, %v587
    %v1015 = vsub.f32 %v471, %v587
    %v1016 = vsub.f32 %v472, %v587
    %v1017 = vsub.f32 %v473, %v587
    %v1018 = vsub.f32 %v474, %v588
    %v1019 = vsub.f32 %v475, %v588
    %v1020 = vsub.f32 %v476, %v588
    %v1021 = vsub.f32 %v477, %v588
    %v1022 = vsub.f32 %v478, %v589
    %v1023 = vsub.f32 %v479, %v589
    %v1024 = vsub.f32 %v480, %v589
    %v1025 = vsub.f32 %v481, %v589
    %v1026 = vsub.f32 %v482, %v590
    %v1027 = vsub.f32 %v483, %v590
    %v1028 = vsub.f32 %v484, %v590
    %v1029 = vsub.f32 %v485, %v590
    %v1030 = vsub.f32 %v486, %v591
    %v1031 = vsub.f32 %v487, %v591
    %v1032 = vsub.f32 %v488, %v591
    %v1033 = vsub.f32 %v489, %v591
    %v1034 = vsub.f32 %v490, %v592
    %v1035 = vsub.f32 %v491, %v592
    %v1036 = vsub.f32 %v492, %v592
    %v1037 = vsub.f32 %v493, %v592
    %v1038 = vsub.f32 %v494, %v593
    %v1039 = vsub.f32 %v495, %v593
    %v1040 = vsub.f32 %v496, %v593
    %v1041 = vsub.f32 %v497, %v593
    %v1042 = vmul.f32 %v978, %v827
    %v1043 = vmul.f32 %v979, %v827
    %v1044 = vmul.f32 %v980, %v827
    %v1045 = vmul.f32 %v981, %v827
    %v1046 = vmul.f32 %v982, %v837
    %v1047 = vmul.f32 %v983, %v837
    %v1048 = vmul.f32 %v984, %v837
    %v1049 = vmul.f32 %v985, %v837
    %v1050 = vmul.f32 %v986, %v847
    %v1051 = vmul.f32 %v987, %v847
    %v1052 = vmul.f32 %v988, %v847
    %v1053 = vmul.f32 %v989, %v847
    %v1054 = vmul.f32 %v990, %v857
    %v1055 = vmul.f32 %v991, %v857
    %v1056 = vmul.f32 %v992, %v857
    %v1057 = vmul.f32 %v993, %v857
    %v1058 = vmul.f32 %v994, %v867
    %v1059 = vmul.f32 %v995, %v867
    %v1060 = vmul.f32 %v996, %v867
    %v1061 = vmul.f32 %v997, %v867
    %v1062 = vmul.f32 %v998, %v877
    %v1063 = vmul.f32 %v999, %v877
    %v1064 = vmul.f32 %v1000, %v877
    %v1065 = vmul.f32 %v1001, %v877
    %v1066 = vmul.f32 %v1002, %v887
    %v1067 = vmul.f32 %v1003, %v887
    %v1068 = vmul.f32 %v1004, %v887
    %v1069 = vmul.f32 %v1005, %v887
    %v1070 = vmul.f32 %v1006, %v897
    %v1071 = vmul.f32 %v1007, %v897
    %v1072 = vmul.f32 %v1008, %v897
    %v1073 = vmul.f32 %v1009, %v897
    %v1074 = vmul.f32 %v1010, %v907
    %v1075 = vmul.f32 %v1011, %v907
    %v1076 = vmul.f32 %v1012, %v907
    %v1077 = vmul.f32 %v1013, %v907
    %v1078 = vmul.f32 %v1014, %v917
    %v1079 = vmul.f32 %v1015, %v917
    %v1080 = vmul.f32 %v1016, %v917
    %v1081 = vmul.f32 %v1017, %v917
    %v1082 = vmul.f32 %v1018, %v927
    %v1083 = vmul.f32 %v1019, %v927
    %v1084 = vmul.f32 %v1020, %v927
    %v1085 = vmul.f32 %v1021, %v927
    %v1086 = vmul.f32 %v1022, %v937
    %v1087 = vmul.f32 %v1023, %v937
    %v1088 = vmul.f32 %v1024, %v937
    %v1089 = vmul.f32 %v1025, %v937
    %v1090 = vmul.f32 %v1026, %v947
    %v1091 = vmul.f32 %v1027, %v947
    %v1092 = vmul.f32 %v1028, %v947
    %v1093 = vmul.f32 %v1029, %v947
    %v1094 = vmul.f32 %v1030, %v957
    %v1095 = vmul.f32 %v1031, %v957
    %v1096 = vmul.f32 %v1032, %v957
    %v1097 = vmul.f32 %v1033, %v957
    %v1098 = vmul.f32 %v1034, %v967
    %v1099 = vmul.f32 %v1035, %v967
    %v1100 = vmul.f32 %v1036, %v967
    %v1101 = vmul.f32 %v1037, %v967
    %v1102 = vmul.f32 %v1038, %v977
    %v1103 = vmul.f32 %v1039, %v977
    %v1104 = vmul.f32 %v1040, %v977
    %v1105 = vmul.f32 %v1041, %v977
    %v1106 = vld [vmem:[%s4] sm:$0xf]
    %v1108 = vperm.slane %v1106, 0
    %v1109 = vperm.slane %v1106, 1
    %v1110 = vperm.slane %v1106, 2
    %v1111 = vperm.slane %v1106, 3
    %v1116 = vmul.f32 %v1042, %v1108
    %v1117 = vmul.f32 %v1043, %v1109
    %v1118 = vmul.f32 %v1044, %v1110
    %v1119 = vmul.f32 %v1045, %v1111
    %v1120 = vmul.f32 %v1046, %v1108
    %v1121 = vmul.f32 %v1047, %v1109
    %v1122 = vmul.f32 %v1048, %v1110
    %v1123 = vmul.f32 %v1049, %v1111
    %v1124 = vmul.f32 %v1050, %v1108
    %v1125 = vmul.f32 %v1051, %v1109
    %v1126 = vmul.f32 %v1052, %v1110
    %v1127 = vmul.f32 %v1053, %v1111
    %v1128 = vmul.f32 %v1054, %v1108
    %v1129 = vmul.f32 %v1055, %v1109
    %v1130 = vmul.f32 %v1056, %v1110
    %v1131 = vmul.f32 %v1057, %v1111
    %v1132 = vmul.f32 %v1058, %v1108
    %v1133 = vmul.f32 %v1059, %v1109
    %v1134 = vmul.f32 %v1060, %v1110
    %v1135 = vmul.f32 %v1061, %v1111
    %v1136 = vmul.f32 %v1062, %v1108
    %v1137 = vmul.f32 %v1063, %v1109
    %v1138 = vmul.f32 %v1064, %v1110
    %v1139 = vmul.f32 %v1065, %v1111
    %v1140 = vmul.f32 %v1066, %v1108
    %v1141 = vmul.f32 %v1067, %v1109
    %v1142 = vmul.f32 %v1068, %v1110
    %v1143 = vmul.f32 %v1069, %v1111
    %v1144 = vmul.f32 %v1070, %v1108
    %v1145 = vmul.f32 %v1071, %v1109
    %v1146 = vmul.f32 %v1072, %v1110
    %v1147 = vmul.f32 %v1073, %v1111
    %v1148 = vmul.f32 %v1074, %v1108
    %v1149 = vmul.f32 %v1075, %v1109
    %v1150 = vmul.f32 %v1076, %v1110
    %v1151 = vmul.f32 %v1077, %v1111
    %v1152 = vmul.f32 %v1078, %v1108
    %v1153 = vmul.f32 %v1079, %v1109
    %v1154 = vmul.f32 %v1080, %v1110
    %v1155 = vmul.f32 %v1081, %v1111
    %v1156 = vmul.f32 %v1082, %v1108
    %v1157 = vmul.f32 %v1083, %v1109
    %v1158 = vmul.f32 %v1084, %v1110
    %v1159 = vmul.f32 %v1085, %v1111
    %v1160 = vmul.f32 %v1086, %v1108
    %v1161 = vmul.f32 %v1087, %v1109
    %v1162 = vmul.f32 %v1088, %v1110
    %v1163 = vmul.f32 %v1089, %v1111
    %v1164 = vmul.f32 %v1090, %v1108
    %v1165 = vmul.f32 %v1091, %v1109
    %v1166 = vmul.f32 %v1092, %v1110
    %v1167 = vmul.f32 %v1093, %v1111
    %v1168 = vmul.f32 %v1094, %v1108
    %v1169 = vmul.f32 %v1095, %v1109
    %v1170 = vmul.f32 %v1096, %v1110
    %v1171 = vmul.f32 %v1097, %v1111
    %v1172 = vmul.f32 %v1098, %v1108
    %v1173 = vmul.f32 %v1099, %v1109
    %v1174 = vmul.f32 %v1100, %v1110
    %v1175 = vmul.f32 %v1101, %v1111
    %v1176 = vmul.f32 %v1102, %v1108
    %v1177 = vmul.f32 %v1103, %v1109
    %v1178 = vmul.f32 %v1104, %v1110
    %v1179 = vmul.f32 %v1105, %v1111
    %v1180 = vld [vmem:[%s5] sm:$0xf]
    %v1182 = vperm.slane %v1180, 0
    %v1183 = vperm.slane %v1180, 1
    %v1184 = vperm.slane %v1180, 2
    %v1185 = vperm.slane %v1180, 3
    %v1190 = vadd.f32 %v1116, %v1182
    %v1191 = vadd.f32 %v1117, %v1183
    %v1192 = vadd.f32 %v1118, %v1184
    %v1193 = vadd.f32 %v1119, %v1185
    %v1194 = vadd.f32 %v1120, %v1182
    %v1195 = vadd.f32 %v1121, %v1183
    %v1196 = vadd.f32 %v1122, %v1184
    %v1197 = vadd.f32 %v1123, %v1185
    %v1198 = vadd.f32 %v1124, %v1182
    %v1199 = vadd.f32 %v1125, %v1183
    %v1200 = vadd.f32 %v1126, %v1184
    %v1201 = vadd.f32 %v1127, %v1185
    %v1202 = vadd.f32 %v1128, %v1182
    %v1203 = vadd.f32 %v1129, %v1183
    %v1204 = vadd.f32 %v1130, %v1184
    %v1205 = vadd.f32 %v1131, %v1185
    %v1206 = vadd.f32 %v1132, %v1182
    %v1207 = vadd.f32 %v1133, %v1183
    %v1208 = vadd.f32 %v1134, %v1184
    %v1209 = vadd.f32 %v1135, %v1185
    %v1210 = vadd.f32 %v1136, %v1182
    %v1211 = vadd.f32 %v1137, %v1183
    %v1212 = vadd.f32 %v1138, %v1184
    %v1213 = vadd.f32 %v1139, %v1185
    %v1214 = vadd.f32 %v1140, %v1182
    %v1215 = vadd.f32 %v1141, %v1183
    %v1216 = vadd.f32 %v1142, %v1184
    %v1217 = vadd.f32 %v1143, %v1185
    %v1218 = vadd.f32 %v1144, %v1182
    %v1219 = vadd.f32 %v1145, %v1183
    %v1220 = vadd.f32 %v1146, %v1184
    %v1221 = vadd.f32 %v1147, %v1185
    %v1222 = vadd.f32 %v1148, %v1182
    %v1223 = vadd.f32 %v1149, %v1183
    %v1224 = vadd.f32 %v1150, %v1184
    %v1225 = vadd.f32 %v1151, %v1185
    %v1226 = vadd.f32 %v1152, %v1182
    %v1227 = vadd.f32 %v1153, %v1183
    %v1228 = vadd.f32 %v1154, %v1184
    %v1229 = vadd.f32 %v1155, %v1185
    %v1230 = vadd.f32 %v1156, %v1182
    %v1231 = vadd.f32 %v1157, %v1183
    %v1232 = vadd.f32 %v1158, %v1184
    %v1233 = vadd.f32 %v1159, %v1185
    %v1234 = vadd.f32 %v1160, %v1182
    %v1235 = vadd.f32 %v1161, %v1183
    %v1236 = vadd.f32 %v1162, %v1184
    %v1237 = vadd.f32 %v1163, %v1185
    %v1238 = vadd.f32 %v1164, %v1182
    %v1239 = vadd.f32 %v1165, %v1183
    %v1240 = vadd.f32 %v1166, %v1184
    %v1241 = vadd.f32 %v1167, %v1185
    %v1242 = vadd.f32 %v1168, %v1182
    %v1243 = vadd.f32 %v1169, %v1183
    %v1244 = vadd.f32 %v1170, %v1184
    %v1245 = vadd.f32 %v1171, %v1185
    %v1246 = vadd.f32 %v1172, %v1182
    %v1247 = vadd.f32 %v1173, %v1183
    %v1248 = vadd.f32 %v1174, %v1184
    %v1249 = vadd.f32 %v1175, %v1185
    %v1250 = vadd.f32 %v1176, %v1182
    %v1251 = vadd.f32 %v1177, %v1183
    %v1252 = vadd.f32 %v1178, %v1184
    %v1253 = vadd.f32 %v1179, %v1185
    %v1254 = vpack.c.bf16 %v1194, %v1190
    %v1255 = vpack.c.bf16 %v1195, %v1191
    %v1256 = vpack.c.bf16 %v1196, %v1192
    %v1257 = vpack.c.bf16 %v1197, %v1193
    %v1258 = vpack.c.bf16 %v1202, %v1198
    %v1259 = vpack.c.bf16 %v1203, %v1199
    %v1260 = vpack.c.bf16 %v1204, %v1200
    %v1261 = vpack.c.bf16 %v1205, %v1201
    %v1262 = vpack.c.bf16 %v1210, %v1206
    %v1263 = vpack.c.bf16 %v1211, %v1207
    %v1264 = vpack.c.bf16 %v1212, %v1208
    %v1265 = vpack.c.bf16 %v1213, %v1209
    %v1266 = vpack.c.bf16 %v1218, %v1214
    %v1267 = vpack.c.bf16 %v1219, %v1215
    %v1268 = vpack.c.bf16 %v1220, %v1216
    %v1269 = vpack.c.bf16 %v1221, %v1217
    %v1270 = vpack.c.bf16 %v1226, %v1222
    %v1271 = vpack.c.bf16 %v1227, %v1223
    %v1272 = vpack.c.bf16 %v1228, %v1224
    %v1273 = vpack.c.bf16 %v1229, %v1225
    %v1274 = vpack.c.bf16 %v1234, %v1230
    %v1275 = vpack.c.bf16 %v1235, %v1231
    %v1276 = vpack.c.bf16 %v1236, %v1232
    %v1277 = vpack.c.bf16 %v1237, %v1233
    %v1278 = vpack.c.bf16 %v1242, %v1238
    %v1279 = vpack.c.bf16 %v1243, %v1239
    %v1280 = vpack.c.bf16 %v1244, %v1240
    %v1281 = vpack.c.bf16 %v1245, %v1241
    %v1282 = vpack.c.bf16 %v1250, %v1246
    %v1283 = vpack.c.bf16 %v1251, %v1247
    %v1284 = vpack.c.bf16 %v1252, %v1248
    %v1285 = vpack.c.bf16 %v1253, %v1249
    %v1286 = vld [vmem:[#allocation4] sm:$0xff]
    %v1287 = vld [vmem:[#allocation4 + $0x8] sm:$0xff]
    %v1288 = vld [vmem:[#allocation4 + $0x10] sm:$0xff]
    %v1289 = vld [vmem:[#allocation4 + $0x18] sm:$0xff]
    %v1290 = vld [vmem:[#allocation4 + $0x20] sm:$0xff]
    %v1291 = vld [vmem:[#allocation4 + $0x28] sm:$0xff]
    %v1292 = vld [vmem:[#allocation4 + $0x30] sm:$0xff]
    %v1293 = vld [vmem:[#allocation4 + $0x38] sm:$0xff]
    %v1294 = vld [vmem:[#allocation4 + $0x40] sm:$0xff]
    %v1295 = vld [vmem:[#allocation4 + $0x48] sm:$0xff]
    %v1296 = vld [vmem:[#allocation4 + $0x50] sm:$0xff]
    %v1297 = vld [vmem:[#allocation4 + $0x58] sm:$0xff]
    %v1298 = vld [vmem:[#allocation4 + $0x60] sm:$0xff]
    %v1299 = vld [vmem:[#allocation4 + $0x68] sm:$0xff]
    %v1300 = vld [vmem:[#allocation4 + $0x70] sm:$0xff]
    %v1301 = vld [vmem:[#allocation4 + $0x78] sm:$0xff]
    %v1302 = vld [vmem:[#allocation4 + $0x80] sm:$0xff]
    %v1303 = vld [vmem:[#allocation4 + $0x88] sm:$0xff]
    %v1304 = vld [vmem:[#allocation4 + $0x90] sm:$0xff]
    %v1305 = vld [vmem:[#allocation4 + $0x98] sm:$0xff]
    %v1306 = vld [vmem:[#allocation4 + $0xa0] sm:$0xff]
    %v1307 = vld [vmem:[#allocation4 + $0xa8] sm:$0xff]
    %v1308 = vld [vmem:[#allocation4 + $0xb0] sm:$0xff]
    %v1309 = vld [vmem:[#allocation4 + $0xb8] sm:$0xff]
    %v1310 = vld [vmem:[#allocation4 + $0xc0] sm:$0xff]
    %v1311 = vld [vmem:[#allocation4 + $0xc8] sm:$0xff]
    %v1312 = vld [vmem:[#allocation4 + $0xd0] sm:$0xff]
    %v1313 = vld [vmem:[#allocation4 + $0xd8] sm:$0xff]
    %v1314 = vld [vmem:[#allocation4 + $0xe0] sm:$0xff]
    %v1315 = vld [vmem:[#allocation4 + $0xe8] sm:$0xff]
    %v1316 = vld [vmem:[#allocation4 + $0xf0] sm:$0xff]
    %v1317 = vld [vmem:[#allocation4 + $0xf8] sm:$0xff]
    %v1318 = vld [vmem:[#allocation4 + $0x100] sm:$0xff]
    %v1319 = vld [vmem:[#allocation4 + $0x108] sm:$0xff]
    %v1320 = vld [vmem:[#allocation4 + $0x110] sm:$0xff]
    %v1321 = vld [vmem:[#allocation4 + $0x118] sm:$0xff]
    %v1322 = vld [vmem:[#allocation4 + $0x120] sm:$0xff]
    %v1323 = vld [vmem:[#allocation4 + $0x128] sm:$0xff]
    %v1324 = vld [vmem:[#allocation4 + $0x130] sm:$0xff]
    %v1325 = vld [vmem:[#allocation4 + $0x138] sm:$0xff]
    %v1326 = vld [vmem:[#allocation4 + $0x140] sm:$0xff]
    %v1327 = vld [vmem:[#allocation4 + $0x148] sm:$0xff]
    %v1328 = vld [vmem:[#allocation4 + $0x150] sm:$0xff]
    %v1329 = vld [vmem:[#allocation4 + $0x158] sm:$0xff]
    %v1330 = vld [vmem:[#allocation4 + $0x160] sm:$0xff]
    %v1331 = vld [vmem:[#allocation4 + $0x168] sm:$0xff]
    %v1332 = vld [vmem:[#allocation4 + $0x170] sm:$0xff]
    %v1333 = vld [vmem:[#allocation4 + $0x178] sm:$0xff]
    %v1334 = vld [vmem:[#allocation4 + $0x180] sm:$0xff]
    %v1335 = vld [vmem:[#allocation4 + $0x188] sm:$0xff]
    %v1336 = vld [vmem:[#allocation4 + $0x190] sm:$0xff]
    %v1337 = vld [vmem:[#allocation4 + $0x198] sm:$0xff]
    %v1338 = vld [vmem:[#allocation4 + $0x1a0] sm:$0xff]
    %v1339 = vld [vmem:[#allocation4 + $0x1a8] sm:$0xff]
    %v1340 = vld [vmem:[#allocation4 + $0x1b0] sm:$0xff]
    %v1341 = vld [vmem:[#allocation4 + $0x1b8] sm:$0xff]
    %v1342 = vld [vmem:[#allocation4 + $0x1c0] sm:$0xff]
    %v1343 = vld [vmem:[#allocation4 + $0x1c8] sm:$0xff]
    %v1344 = vld [vmem:[#allocation4 + $0x1d0] sm:$0xff]
    %v1345 = vld [vmem:[#allocation4 + $0x1d8] sm:$0xff]
    %v1346 = vld [vmem:[#allocation4 + $0x1e0] sm:$0xff]
    %v1347 = vld [vmem:[#allocation4 + $0x1e8] sm:$0xff]
    %v1348 = vld [vmem:[#allocation4 + $0x1f0] sm:$0xff]
    %v1349 = vld [vmem:[#allocation4 + $0x1f8] sm:$0xff]
    %v1350 = vld [vmem:[%s7] sm:$0x3]
    %v1352 = vperm.slane %v1350, 0
    %v1353 = vperm.slane %v1350, 1
    %v1420 = vunpack.c.l.b16 %v1286
    %v1421 = vunpack.c.h.b16 %v1286
    %v1422 = vunpack.c.l.b16 %v1287
    %v1423 = vunpack.c.h.b16 %v1287
    %v1424 = vunpack.c.l.b16 %v1288
    %v1425 = vunpack.c.h.b16 %v1288
    %v1426 = vunpack.c.l.b16 %v1289
    %v1427 = vunpack.c.h.b16 %v1289
    %v1428 = vunpack.c.l.b16 %v1290
    %v1429 = vunpack.c.h.b16 %v1290
    %v1430 = vunpack.c.l.b16 %v1291
    %v1431 = vunpack.c.h.b16 %v1291
    %v1432 = vunpack.c.l.b16 %v1292
    %v1433 = vunpack.c.h.b16 %v1292
    %v1434 = vunpack.c.l.b16 %v1293
    %v1435 = vunpack.c.h.b16 %v1293
    %v1436 = vunpack.c.l.b16 %v1294
    %v1437 = vunpack.c.h.b16 %v1294
    %v1438 = vunpack.c.l.b16 %v1295
    %v1439 = vunpack.c.h.b16 %v1295
    %v1440 = vunpack.c.l.b16 %v1296
    %v1441 = vunpack.c.h.b16 %v1296
    %v1442 = vunpack.c.l.b16 %v1297
    %v1443 = vunpack.c.h.b16 %v1297
    %v1444 = vunpack.c.l.b16 %v1298
    %v1445 = vunpack.c.h.b16 %v1298
    %v1446 = vunpack.c.l.b16 %v1299
    %v1447 = vunpack.c.h.b16 %v1299
    %v1448 = vunpack.c.l.b16 %v1300
    %v1449 = vunpack.c.h.b16 %v1300
    %v1450 = vunpack.c.l.b16 %v1301
    %v1451 = vunpack.c.h.b16 %v1301
    %v1452 = vunpack.c.l.b16 %v1302
    %v1453 = vunpack.c.h.b16 %v1302
    %v1454 = vunpack.c.l.b16 %v1303
    %v1455 = vunpack.c.h.b16 %v1303
    %v1456 = vunpack.c.l.b16 %v1304
    %v1457 = vunpack.c.h.b16 %v1304
    %v1458 = vunpack.c.l.b16 %v1305
    %v1459 = vunpack.c.h.b16 %v1305
    %v1460 = vunpack.c.l.b16 %v1306
    %v1461 = vunpack.c.h.b16 %v1306
    %v1462 = vunpack.c.l.b16 %v1307
    %v1463 = vunpack.c.h.b16 %v1307
    %v1464 = vunpack.c.l.b16 %v1308
    %v1465 = vunpack.c.h.b16 %v1308
    %v1466 = vunpack.c.l.b16 %v1309
    %v1467 = vunpack.c.h.b16 %v1309
    %v1468 = vunpack.c.l.b16 %v1310
    %v1469 = vunpack.c.h.b16 %v1310
    %v1470 = vunpack.c.l.b16 %v1311
    %v1471 = vunpack.c.h.b16 %v1311
    %v1472 = vunpack.c.l.b16 %v1312
    %v1473 = vunpack.c.h.b16 %v1312
    %v1474 = vunpack.c.l.b16 %v1313
    %v1475 = vunpack.c.h.b16 %v1313
    %v1476 = vunpack.c.l.b16 %v1314
    %v1477 = vunpack.c.h.b16 %v1314
    %v1478 = vunpack.c.l.b16 %v1315
    %v1479 = vunpack.c.h.b16 %v1315
    %v1480 = vunpack.c.l.b16 %v1316
    %v1481 = vunpack.c.h.b16 %v1316
    %v1482 = vunpack.c.l.b16 %v1317
    %v1483 = vunpack.c.h.b16 %v1317
    %v1484 = vunpack.c.l.b16 %v1318
    %v1485 = vunpack.c.h.b16 %v1318
    %v1486 = vunpack.c.l.b16 %v1319
    %v1487 = vunpack.c.h.b16 %v1319
    %v1488 = vunpack.c.l.b16 %v1320
    %v1489 = vunpack.c.h.b16 %v1320
    %v1490 = vunpack.c.l.b16 %v1321
    %v1491 = vunpack.c.h.b16 %v1321
    %v1492 = vunpack.c.l.b16 %v1322
    %v1493 = vunpack.c.h.b16 %v1322
    %v1494 = vunpack.c.l.b16 %v1323
    %v1495 = vunpack.c.h.b16 %v1323
    %v1496 = vunpack.c.l.b16 %v1324
    %v1497 = vunpack.c.h.b16 %v1324
    %v1498 = vunpack.c.l.b16 %v1325
    %v1499 = vunpack.c.h.b16 %v1325
    %v1500 = vunpack.c.l.b16 %v1326
    %v1501 = vunpack.c.h.b16 %v1326
    %v1502 = vunpack.c.l.b16 %v1327
    %v1503 = vunpack.c.h.b16 %v1327
    %v1504 = vunpack.c.l.b16 %v1328
    %v1505 = vunpack.c.h.b16 %v1328
    %v1506 = vunpack.c.l.b16 %v1329
    %v1507 = vunpack.c.h.b16 %v1329
    %v1508 = vunpack.c.l.b16 %v1330
    %v1509 = vunpack.c.h.b16 %v1330
    %v1510 = vunpack.c.l.b16 %v1331
    %v1511 = vunpack.c.h.b16 %v1331
    %v1512 = vunpack.c.l.b16 %v1332
    %v1513 = vunpack.c.h.b16 %v1332
    %v1514 = vunpack.c.l.b16 %v1333
    %v1515 = vunpack.c.h.b16 %v1333
    %v1516 = vunpack.c.l.b16 %v1334
    %v1517 = vunpack.c.h.b16 %v1334
    %v1518 = vunpack.c.l.b16 %v1335
    %v1519 = vunpack.c.h.b16 %v1335
    %v1520 = vunpack.c.l.b16 %v1336
    %v1521 = vunpack.c.h.b16 %v1336
    %v1522 = vunpack.c.l.b16 %v1337
    %v1523 = vunpack.c.h.b16 %v1337
    %v1524 = vunpack.c.l.b16 %v1338
    %v1525 = vunpack.c.h.b16 %v1338
    %v1526 = vunpack.c.l.b16 %v1339
    %v1527 = vunpack.c.h.b16 %v1339
    %v1528 = vunpack.c.l.b16 %v1340
    %v1529 = vunpack.c.h.b16 %v1340
    %v1530 = vunpack.c.l.b16 %v1341
    %v1531 = vunpack.c.h.b16 %v1341
    %v1532 = vunpack.c.l.b16 %v1342
    %v1533 = vunpack.c.h.b16 %v1342
    %v1534 = vunpack.c.l.b16 %v1343
    %v1535 = vunpack.c.h.b16 %v1343
    %v1536 = vunpack.c.l.b16 %v1344
    %v1537 = vunpack.c.h.b16 %v1344
    %v1538 = vunpack.c.l.b16 %v1345
    %v1539 = vunpack.c.h.b16 %v1345
    %v1540 = vunpack.c.l.b16 %v1346
    %v1541 = vunpack.c.h.b16 %v1346
    %v1542 = vunpack.c.l.b16 %v1347
    %v1543 = vunpack.c.h.b16 %v1347
    %v1544 = vunpack.c.l.b16 %v1348
    %v1545 = vunpack.c.h.b16 %v1348
    %v1546 = vunpack.c.l.b16 %v1349
    %v1547 = vunpack.c.h.b16 %v1349
    %v1548 = vpack.c.b16 %v1422, %v1420
    %v1549 = vpack.c.b16 %v1423, %v1421
    %v1550 = vpack.c.b16 %v1426, %v1424
    %v1551 = vpack.c.b16 %v1427, %v1425
    %v1552 = vpack.c.b16 %v1430, %v1428
    %v1553 = vpack.c.b16 %v1431, %v1429
    %v1554 = vpack.c.b16 %v1434, %v1432
    %v1555 = vpack.c.b16 %v1435, %v1433
    %v1556 = vpack.c.b16 %v1438, %v1436
    %v1557 = vpack.c.b16 %v1439, %v1437
    %v1558 = vpack.c.b16 %v1442, %v1440
    %v1559 = vpack.c.b16 %v1443, %v1441
    %v1560 = vpack.c.b16 %v1446, %v1444
    %v1561 = vpack.c.b16 %v1447, %v1445
    %v1562 = vpack.c.b16 %v1450, %v1448
    %v1563 = vpack.c.b16 %v1451, %v1449
    %v1564 = vpack.c.b16 %v1454, %v1452
    %v1565 = vpack.c.b16 %v1455, %v1453
    %v1566 = vpack.c.b16 %v1458, %v1456
    %v1567 = vpack.c.b16 %v1459, %v1457
    %v1568 = vpack.c.b16 %v1462, %v1460
    %v1569 = vpack.c.b16 %v1463, %v1461
    %v1570 = vpack.c.b16 %v1466, %v1464
    %v1571 = vpack.c.b16 %v1467, %v1465
    %v1572 = vpack.c.b16 %v1470, %v1468
    %v1573 = vpack.c.b16 %v1471, %v1469
    %v1574 = vpack.c.b16 %v1474, %v1472
    %v1575 = vpack.c.b16 %v1475, %v1473
    %v1576 = vpack.c.b16 %v1478, %v1476
    %v1577 = vpack.c.b16 %v1479, %v1477
    %v1578 = vpack.c.b16 %v1482, %v1480
    %v1579 = vpack.c.b16 %v1483, %v1481
    %v1580 = vpack.c.b16 %v1486, %v1484
    %v1581 = vpack.c.b16 %v1487, %v1485
    %v1582 = vpack.c.b16 %v1490, %v1488
    %v1583 = vpack.c.b16 %v1491, %v1489
    %v1584 = vpack.c.b16 %v1494, %v1492
    %v1585 = vpack.c.b16 %v1495, %v1493
    %v1586 = vpack.c.b16 %v1498, %v1496
    %v1587 = vpack.c.b16 %v1499, %v1497
    %v1588 = vpack.c.b16 %v1502, %v1500
    %v1589 = vpack.c.b16 %v1503, %v1501
    %v1590 = vpack.c.b16 %v1506, %v1504
    %v1591 = vpack.c.b16 %v1507, %v1505
    %v1592 = vpack.c.b16 %v1510, %v1508
    %v1593 = vpack.c.b16 %v1511, %v1509
    %v1594 = vpack.c.b16 %v1514, %v1512
    %v1595 = vpack.c.b16 %v1515, %v1513
    %v1596 = vpack.c.b16 %v1518, %v1516
    %v1597 = vpack.c.b16 %v1519, %v1517
    %v1598 = vpack.c.b16 %v1522, %v1520
    %v1599 = vpack.c.b16 %v1523, %v1521
    %v1600 = vpack.c.b16 %v1526, %v1524
    %v1601 = vpack.c.b16 %v1527, %v1525
    %v1602 = vpack.c.b16 %v1530, %v1528
    %v1603 = vpack.c.b16 %v1531, %v1529
    %v1604 = vpack.c.b16 %v1534, %v1532
    %v1605 = vpack.c.b16 %v1535, %v1533
    %v1606 = vpack.c.b16 %v1538, %v1536
    %v1607 = vpack.c.b16 %v1539, %v1537
    %v1608 = vpack.c.b16 %v1542, %v1540
    %v1609 = vpack.c.b16 %v1543, %v1541
    %v1610 = vpack.c.b16 %v1546, %v1544
    %v1611 = vpack.c.b16 %v1547, %v1545
    %1676 = vmatpush.bf16.msra.mxu0 %v1562
    %1677 = vmatpush.bf16.msra.mxu0 %v1560
    %1678 = vmatpush.bf16.msra.mxu0 %v1558
    %1679 = vmatpush.bf16.msra.mxu0 %v1556
    %1680 = vmatpush.bf16.msra.mxu0 %v1554
    %1681 = vmatpush.bf16.msra.mxu0 %v1552
    %1682 = vmatpush.bf16.msra.mxu0 %v1550
    %1683 = vmatpush.bf16.msra.mxu0 %v1548
    %1684 = vmatmul.bf16.gmra.mxu0 %v1254
    %v1685 = vpop.f32.mrf.mxu0
    %v1686 = vadd.f32 %v1352, %v1685
    %v1687 = vpop.f32.mrf.mxu0
    %v1688 = vadd.f32 %v1352, %v1687
    %1689 = vmatmul.bf16.gmra.mxu0 %v1258
    %v1690 = vpop.f32.mrf.mxu0
    %v1691 = vadd.f32 %v1352, %v1690
    %v1692 = vpop.f32.mrf.mxu0
    %v1693 = vadd.f32 %v1352, %v1692
    %1694 = vmatmul.bf16.gmra.mxu0 %v1262
    %v1695 = vpop.f32.mrf.mxu0
    %v1696 = vadd.f32 %v1352, %v1695
    %v1697 = vpop.f32.mrf.mxu0
    %v1698 = vadd.f32 %v1352, %v1697
    %1699 = vmatmul.bf16.gmra.mxu0 %v1266
    %v1700 = vpop.f32.mrf.mxu0
    %v1701 = vadd.f32 %v1352, %v1700
    %v1702 = vpop.f32.mrf.mxu0
    %v1703 = vadd.f32 %v1352, %v1702
    %1704 = vmatmul.bf16.gmra.mxu0 %v1270
    %v1705 = vpop.f32.mrf.mxu0
    %v1706 = vadd.f32 %v1352, %v1705
    %v1707 = vpop.f32.mrf.mxu0
    %v1708 = vadd.f32 %v1352, %v1707
    %1709 = vmatmul.bf16.gmra.mxu0 %v1274
    %v1710 = vpop.f32.mrf.mxu0
    %v1711 = vadd.f32 %v1352, %v1710
    %v1712 = vpop.f32.mrf.mxu0
    %v1713 = vadd.f32 %v1352, %v1712
    %1714 = vmatmul.bf16.gmra.mxu0 %v1278
    %v1715 = vpop.f32.mrf.mxu0
    %v1716 = vadd.f32 %v1352, %v1715
    %v1717 = vpop.f32.mrf.mxu0
    %v1718 = vadd.f32 %v1352, %v1717
    %1719 = vmatmul.bf16.gmra.mxu0 %v1282
    %v1720 = vpop.f32.mrf.mxu0
    %v1721 = vadd.f32 %v1352, %v1720
    %v1722 = vpop.f32.mrf.mxu0
    %v1723 = vadd.f32 %v1352, %v1722
    %1724 = vdwg.mxu0
    %1725 = vmatpush.bf16.msra.mxu0 %v1578
    %1726 = vmatpush.bf16.msra.mxu0 %v1576
    %1727 = vmatpush.bf16.msra.mxu0 %v1574
    %1728 = vmatpush.bf16.msra.mxu0 %v1572
    %1729 = vmatpush.bf16.msra.mxu0 %v1570
    %1730 = vmatpush.bf16.msra.mxu0 %v1568
    %1731 = vmatpush.bf16.msra.mxu0 %v1566
    %1732 = vmatpush.bf16.msra.mxu0 %v1564
    %1733 = vmatmul.bf16.gmra.mxu0 %v1255
    %v1734 = vpop.f32.mrf.mxu0
    %v1735 = vadd.f32 %v1686, %v1734
    %v1736 = vpop.f32.mrf.mxu0
    %v1737 = vadd.f32 %v1688, %v1736
    %1738 = vmatmul.bf16.gmra.mxu0 %v1259
    %v1739 = vpop.f32.mrf.mxu0
    %v1740 = vadd.f32 %v1691, %v1739
    %v1741 = vpop.f32.mrf.mxu0
    %v1742 = vadd.f32 %v1693, %v1741
    %1743 = vmatmul.bf16.gmra.mxu0 %v1263
    %v1744 = vpop.f32.mrf.mxu0
    %v1745 = vadd.f32 %v1696, %v1744
    %v1746 = vpop.f32.mrf.mxu0
    %v1747 = vadd.f32 %v1698, %v1746
    %1748 = vmatmul.bf16.gmra.mxu0 %v1267
    %v1749 = vpop.f32.mrf.mxu0
    %v1750 = vadd.f32 %v1701, %v1749
    %v1751 = vpop.f32.mrf.mxu0
    %v1752 = vadd.f32 %v1703, %v1751
    %1753 = vmatmul.bf16.gmra.mxu0 %v1271
    %v1754 = vpop.f32.mrf.mxu0
    %v1755 = vadd.f32 %v1706, %v1754
    %v1756 = vpop.f32.mrf.mxu0
    %v1757 = vadd.f32 %v1708, %v1756
    %1758 = vmatmul.bf16.gmra.mxu0 %v1275
    %v1759 = vpop.f32.mrf.mxu0
    %v1760 = vadd.f32 %v1711, %v1759
    %v1761 = vpop.f32.mrf.mxu0
    %v1762 = vadd.f32 %v1713, %v1761
    %1763 = vmatmul.bf16.gmra.mxu0 %v1279
    %v1764 = vpop.f32.mrf.mxu0
    %v1765 = vadd.f32 %v1716, %v1764
    %v1766 = vpop.f32.mrf.mxu0
    %v1767 = vadd.f32 %v1718, %v1766
    %1768 = vmatmul.bf16.gmra.mxu0 %v1283
    %v1769 = vpop.f32.mrf.mxu0
    %v1770 = vadd.f32 %v1721, %v1769
    %v1771 = vpop.f32.mrf.mxu0
    %v1772 = vadd.f32 %v1723, %v1771
    %1773 = vdwg.mxu0
    %1774 = vmatpush.bf16.msra.mxu0 %v1594
    %1775 = vmatpush.bf16.msra.mxu0 %v1592
    %1776 = vmatpush.bf16.msra.mxu0 %v1590
    %1777 = vmatpush.bf16.msra.mxu0 %v1588
    %1778 = vmatpush.bf16.msra.mxu0 %v1586
    %1779 = vmatpush.bf16.msra.mxu0 %v1584
    %1780 = vmatpush.bf16.msra.mxu0 %v1582
    %1781 = vmatpush.bf16.msra.mxu0 %v1580
    %1782 = vmatmul.bf16.gmra.mxu0 %v1256
    %v1783 = vpop.f32.mrf.mxu0
    %v1784 = vadd.f32 %v1735, %v1783
    %v1785 = vpop.f32.mrf.mxu0
    %v1786 = vadd.f32 %v1737, %v1785
    %1787 = vmatmul.bf16.gmra.mxu0 %v1260
    %v1788 = vpop.f32.mrf.mxu0
    %v1789 = vadd.f32 %v1740, %v1788
    %v1790 = vpop.f32.mrf.mxu0
    %v1791 = vadd.f32 %v1742, %v1790
    %1792 = vmatmul.bf16.gmra.mxu0 %v1264
    %v1793 = vpop.f32.mrf.mxu0
    %v1794 = vadd.f32 %v1745, %v1793
    %v1795 = vpop.f32.mrf.mxu0
    %v1796 = vadd.f32 %v1747, %v1795
    %1797 = vmatmul.bf16.gmra.mxu0 %v1268
    %v1798 = vpop.f32.mrf.mxu0
    %v1799 = vadd.f32 %v1750, %v1798
    %v1800 = vpop.f32.mrf.mxu0
    %v1801 = vadd.f32 %v1752, %v1800
    %1802 = vmatmul.bf16.gmra.mxu0 %v1272
    %v1803 = vpop.f32.mrf.mxu0
    %v1804 = vadd.f32 %v1755, %v1803
    %v1805 = vpop.f32.mrf.mxu0
    %v1806 = vadd.f32 %v1757, %v1805
    %1807 = vmatmul.bf16.gmra.mxu0 %v1276
    %v1808 = vpop.f32.mrf.mxu0
    %v1809 = vadd.f32 %v1760, %v1808
    %v1810 = vpop.f32.mrf.mxu0
    %v1811 = vadd.f32 %v1762, %v1810
    %1812 = vmatmul.bf16.gmra.mxu0 %v1280
    %v1813 = vpop.f32.mrf.mxu0
    %v1814 = vadd.f32 %v1765, %v1813
    %v1815 = vpop.f32.mrf.mxu0
    %v1816 = vadd.f32 %v1767, %v1815
    %1817 = vmatmul.bf16.gmra.mxu0 %v1284
    %v1818 = vpop.f32.mrf.mxu0
    %v1819 = vadd.f32 %v1770, %v1818
    %v1820 = vpop.f32.mrf.mxu0
    %v1821 = vadd.f32 %v1772, %v1820
    %1822 = vdwg.mxu0
    %1823 = vmatpush.bf16.msra.mxu0 %v1610
    %1824 = vmatpush.bf16.msra.mxu0 %v1608
    %1825 = vmatpush.bf16.msra.mxu0 %v1606
    %1826 = vmatpush.bf16.msra.mxu0 %v1604
    %1827 = vmatpush.bf16.msra.mxu0 %v1602
    %1828 = vmatpush.bf16.msra.mxu0 %v1600
    %1829 = vmatpush.bf16.msra.mxu0 %v1598
    %1830 = vmatpush.bf16.msra.mxu0 %v1596
    %1831 = vmatmul.bf16.gmra.mxu0 %v1257
    %v1832 = vpop.f32.mrf.mxu0
    %v1833 = vadd.f32 %v1784, %v1832
    %v1834 = vpop.f32.mrf.mxu0
    %v1835 = vadd.f32 %v1786, %v1834
    %1836 = vmatmul.bf16.gmra.mxu0 %v1261
    %v1837 = vpop.f32.mrf.mxu0
    %v1838 = vadd.f32 %v1789, %v1837
    %v1839 = vpop.f32.mrf.mxu0
    %v1840 = vadd.f32 %v1791, %v1839
    %1841 = vmatmul.bf16.gmra.mxu0 %v1265
    %v1842 = vpop.f32.mrf.mxu0
    %v1843 = vadd.f32 %v1794, %v1842
    %v1844 = vpop.f32.mrf.mxu0
    %v1845 = vadd.f32 %v1796, %v1844
    %1846 = vmatmul.bf16.gmra.mxu0 %v1269
    %v1847 = vpop.f32.mrf.mxu0
    %v1848 = vadd.f32 %v1799, %v1847
    %v1849 = vpop.f32.mrf.mxu0
    %v1850 = vadd.f32 %v1801, %v1849
    %1851 = vmatmul.bf16.gmra.mxu0 %v1273
    %v1852 = vpop.f32.mrf.mxu0
    %v1853 = vadd.f32 %v1804, %v1852
    %v1854 = vpop.f32.mrf.mxu0
    %v1855 = vadd.f32 %v1806, %v1854
    %1856 = vmatmul.bf16.gmra.mxu0 %v1277
    %v1857 = vpop.f32.mrf.mxu0
    %v1858 = vadd.f32 %v1809, %v1857
    %v1859 = vpop.f32.mrf.mxu0
    %v1860 = vadd.f32 %v1811, %v1859
    %1861 = vmatmul.bf16.gmra.mxu0 %v1281
    %v1862 = vpop.f32.mrf.mxu0
    %v1863 = vadd.f32 %v1814, %v1862
    %v1864 = vpop.f32.mrf.mxu0
    %v1865 = vadd.f32 %v1816, %v1864
    %1866 = vmatmul.bf16.gmra.mxu0 %v1285
    %v1867 = vpop.f32.mrf.mxu0
    %v1868 = vadd.f32 %v1819, %v1867
    %v1869 = vpop.f32.mrf.mxu0
    %v1870 = vadd.f32 %v1821, %v1869
    %1871 = vdwg.mxu0
    %1872 = vmatpush.bf16.msra.mxu0 %v1563
    %1873 = vmatpush.bf16.msra.mxu0 %v1561
    %1874 = vmatpush.bf16.msra.mxu0 %v1559
    %1875 = vmatpush.bf16.msra.mxu0 %v1557
    %1876 = vmatpush.bf16.msra.mxu0 %v1555
    %1877 = vmatpush.bf16.msra.mxu0 %v1553
    %1878 = vmatpush.bf16.msra.mxu0 %v1551
    %1879 = vmatpush.bf16.msra.mxu0 %v1549
    %1880 = vmatmul.bf16.gmra.mxu0 %v1254
    %v1881 = vpop.f32.mrf.mxu0
    %v1882 = vadd.f32 %v1353, %v1881
    %v1883 = vpop.f32.mrf.mxu0
    %v1884 = vadd.f32 %v1353, %v1883
    %1885 = vmatmul.bf16.gmra.mxu0 %v1258
    %v1886 = vpop.f32.mrf.mxu0
    %v1887 = vadd.f32 %v1353, %v1886
    %v1888 = vpop.f32.mrf.mxu0
    %v1889 = vadd.f32 %v1353, %v1888
    %1890 = vmatmul.bf16.gmra.mxu0 %v1262
    %v1891 = vpop.f32.mrf.mxu0
    %v1892 = vadd.f32 %v1353, %v1891
    %v1893 = vpop.f32.mrf.mxu0
    %v1894 = vadd.f32 %v1353, %v1893
    %1895 = vmatmul.bf16.gmra.mxu0 %v1266
    %v1896 = vpop.f32.mrf.mxu0
    %v1897 = vadd.f32 %v1353, %v1896
    %v1898 = vpop.f32.mrf.mxu0
    %v1899 = vadd.f32 %v1353, %v1898
    %1900 = vmatmul.bf16.gmra.mxu0 %v1270
    %v1901 = vpop.f32.mrf.mxu0
    %v1902 = vadd.f32 %v1353, %v1901
    %v1903 = vpop.f32.mrf.mxu0
    %v1904 = vadd.f32 %v1353, %v1903
    %1905 = vmatmul.bf16.gmra.mxu0 %v1274
    %v1906 = vpop.f32.mrf.mxu0
    %v1907 = vadd.f32 %v1353, %v1906
    %v1908 = vpop.f32.mrf.mxu0
    %v1909 = vadd.f32 %v1353, %v1908
    %1910 = vmatmul.bf16.gmra.mxu0 %v1278
    %v1911 = vpop.f32.mrf.mxu0
    %v1912 = vadd.f32 %v1353, %v1911
    %v1913 = vpop.f32.mrf.mxu0
    %v1914 = vadd.f32 %v1353, %v1913
    %1915 = vmatmul.bf16.gmra.mxu0 %v1282
    %v1916 = vpop.f32.mrf.mxu0
    %v1917 = vadd.f32 %v1353, %v1916
    %v1918 = vpop.f32.mrf.mxu0
    %v1919 = vadd.f32 %v1353, %v1918
    %1920 = vdwg.mxu0
    %1921 = vmatpush.bf16.msra.mxu0 %v1579
    %1922 = vmatpush.bf16.msra.mxu0 %v1577
    %1923 = vmatpush.bf16.msra.mxu0 %v1575
    %1924 = vmatpush.bf16.msra.mxu0 %v1573
    %1925 = vmatpush.bf16.msra.mxu0 %v1571
    %1926 = vmatpush.bf16.msra.mxu0 %v1569
    %1927 = vmatpush.bf16.msra.mxu0 %v1567
    %1928 = vmatpush.bf16.msra.mxu0 %v1565
    %1929 = vmatmul.bf16.gmra.mxu0 %v1255
    %v1930 = vpop.f32.mrf.mxu0
    %v1931 = vadd.f32 %v1882, %v1930
    %v1932 = vpop.f32.mrf.mxu0
    %v1933 = vadd.f32 %v1884, %v1932
    %1934 = vmatmul.bf16.gmra.mxu0 %v1259
    %v1935 = vpop.f32.mrf.mxu0
    %v1936 = vadd.f32 %v1887, %v1935
    %v1937 = vpop.f32.mrf.mxu0
    %v1938 = vadd.f32 %v1889, %v1937
    %1939 = vmatmul.bf16.gmra.mxu0 %v1263
    %v1940 = vpop.f32.mrf.mxu0
    %v1941 = vadd.f32 %v1892, %v1940
    %v1942 = vpop.f32.mrf.mxu0
    %v1943 = vadd.f32 %v1894, %v1942
    %1944 = vmatmul.bf16.gmra.mxu0 %v1267
    %v1945 = vpop.f32.mrf.mxu0
    %v1946 = vadd.f32 %v1897, %v1945
    %v1947 = vpop.f32.mrf.mxu0
    %v1948 = vadd.f32 %v1899, %v1947
    %1949 = vmatmul.bf16.gmra.mxu0 %v1271
    %v1950 = vpop.f32.mrf.mxu0
    %v1951 = vadd.f32 %v1902, %v1950
    %v1952 = vpop.f32.mrf.mxu0
    %v1953 = vadd.f32 %v1904, %v1952
    %1954 = vmatmul.bf16.gmra.mxu0 %v1275
    %v1955 = vpop.f32.mrf.mxu0
    %v1956 = vadd.f32 %v1907, %v1955
    %v1957 = vpop.f32.mrf.mxu0
    %v1958 = vadd.f32 %v1909, %v1957
    %1959 = vmatmul.bf16.gmra.mxu0 %v1279
    %v1960 = vpop.f32.mrf.mxu0
    %v1961 = vadd.f32 %v1912, %v1960
    %v1962 = vpop.f32.mrf.mxu0
    %v1963 = vadd.f32 %v1914, %v1962
    %1964 = vmatmul.bf16.gmra.mxu0 %v1283
    %v1965 = vpop.f32.mrf.mxu0
    %v1966 = vadd.f32 %v1917, %v1965
    %v1967 = vpop.f32.mrf.mxu0
    %v1968 = vadd.f32 %v1919, %v1967
    %1969 = vdwg.mxu0
    %1970 = vmatpush.bf16.msra.mxu0 %v1595
    %1971 = vmatpush.bf16.msra.mxu0 %v1593
    %1972 = vmatpush.bf16.msra.mxu0 %v1591
    %1973 = vmatpush.bf16.msra.mxu0 %v1589
    %1974 = vmatpush.bf16.msra.mxu0 %v1587
    %1975 = vmatpush.bf16.msra.mxu0 %v1585
    %1976 = vmatpush.bf16.msra.mxu0 %v1583
    %1977 = vmatpush.bf16.msra.mxu0 %v1581
    %1978 = vmatmul.bf16.gmra.mxu0 %v1256
    %v1979 = vpop.f32.mrf.mxu0
    %v1980 = vadd.f32 %v1931, %v1979
    %v1981 = vpop.f32.mrf.mxu0
    %v1982 = vadd.f32 %v1933, %v1981
    %1983 = vmatmul.bf16.gmra.mxu0 %v1260
    %v1984 = vpop.f32.mrf.mxu0
    %v1985 = vadd.f32 %v1936, %v1984
    %v1986 = vpop.f32.mrf.mxu0
    %v1987 = vadd.f32 %v1938, %v1986
    %1988 = vmatmul.bf16.gmra.mxu0 %v1264
    %v1989 = vpop.f32.mrf.mxu0
    %v1990 = vadd.f32 %v1941, %v1989
    %v1991 = vpop.f32.mrf.mxu0
    %v1992 = vadd.f32 %v1943, %v1991
    %1993 = vmatmul.bf16.gmra.mxu0 %v1268
    %v1994 = vpop.f32.mrf.mxu0
    %v1995 = vadd.f32 %v1946, %v1994
    %v1996 = vpop.f32.mrf.mxu0
    %v1997 = vadd.f32 %v1948, %v1996
    %1998 = vmatmul.bf16.gmra.mxu0 %v1272
    %v1999 = vpop.f32.mrf.mxu0
    %v2000 = vadd.f32 %v1951, %v1999
    %v2001 = vpop.f32.mrf.mxu0
    %v2002 = vadd.f32 %v1953, %v2001
    %2003 = vmatmul.bf16.gmra.mxu0 %v1276
    %v2004 = vpop.f32.mrf.mxu0
    %v2005 = vadd.f32 %v1956, %v2004
    %v2006 = vpop.f32.mrf.mxu0
    %v2007 = vadd.f32 %v1958, %v2006
    %2008 = vmatmul.bf16.gmra.mxu0 %v1280
    %v2009 = vpop.f32.mrf.mxu0
    %v2010 = vadd.f32 %v1961, %v2009
    %v2011 = vpop.f32.mrf.mxu0
    %v2012 = vadd.f32 %v1963, %v2011
    %2013 = vmatmul.bf16.gmra.mxu0 %v1284
    %v2014 = vpop.f32.mrf.mxu0
    %v2015 = vadd.f32 %v1966, %v2014
    %v2016 = vpop.f32.mrf.mxu0
    %v2017 = vadd.f32 %v1968, %v2016
    %2018 = vdwg.mxu0
    %2019 = vmatpush.bf16.msra.mxu0 %v1611
    %2020 = vmatpush.bf16.msra.mxu0 %v1609
    %2021 = vmatpush.bf16.msra.mxu0 %v1607
    %2022 = vmatpush.bf16.msra.mxu0 %v1605
    %2023 = vmatpush.bf16.msra.mxu0 %v1603
    %2024 = vmatpush.bf16.msra.mxu0 %v1601
    %2025 = vmatpush.bf16.msra.mxu0 %v1599
    %2026 = vmatpush.bf16.msra.mxu0 %v1597
    %2027 = vmatmul.bf16.gmra.mxu0 %v1257
    %v2028 = vpop.f32.mrf.mxu0
    %v2029 = vadd.f32 %v1980, %v2028
    %v2030 = vpop.f32.mrf.mxu0
    %v2031 = vadd.f32 %v1982, %v2030
    %2032 = vmatmul.bf16.gmra.mxu0 %v1261
    %v2033 = vpop.f32.mrf.mxu0
    %v2034 = vadd.f32 %v1985, %v2033
    %v2035 = vpop.f32.mrf.mxu0
    %v2036 = vadd.f32 %v1987, %v2035
    %2037 = vmatmul.bf16.gmra.mxu0 %v1265
    %v2038 = vpop.f32.mrf.mxu0
    %v2039 = vadd.f32 %v1990, %v2038
    %v2040 = vpop.f32.mrf.mxu0
    %v2041 = vadd.f32 %v1992, %v2040
    %2042 = vmatmul.bf16.gmra.mxu0 %v1269
    %v2043 = vpop.f32.mrf.mxu0
    %v2044 = vadd.f32 %v1995, %v2043
    %v2045 = vpop.f32.mrf.mxu0
    %v2046 = vadd.f32 %v1997, %v2045
    %2047 = vmatmul.bf16.gmra.mxu0 %v1273
    %v2048 = vpop.f32.mrf.mxu0
    %v2049 = vadd.f32 %v2000, %v2048
    %v2050 = vpop.f32.mrf.mxu0
    %v2051 = vadd.f32 %v2002, %v2050
    %2052 = vmatmul.bf16.gmra.mxu0 %v1277
    %v2053 = vpop.f32.mrf.mxu0
    %v2054 = vadd.f32 %v2005, %v2053
    %v2055 = vpop.f32.mrf.mxu0
    %v2056 = vadd.f32 %v2007, %v2055
    %2057 = vmatmul.bf16.gmra.mxu0 %v1281
    %v2058 = vpop.f32.mrf.mxu0
    %v2059 = vadd.f32 %v2010, %v2058
    %v2060 = vpop.f32.mrf.mxu0
    %v2061 = vadd.f32 %v2012, %v2060
    %2062 = vmatmul.bf16.gmra.mxu0 %v1285
    %v2063 = vpop.f32.mrf.mxu0
    %v2064 = vadd.f32 %v2015, %v2063
    %v2065 = vpop.f32.mrf.mxu0
    %v2066 = vadd.f32 %v2017, %v2065
    %2067 = vdwg.mxu0
    %v2068 = vmax.f32 %v1833, 0.0
    %v2069 = vmax.f32 %v2029, 0.0
    %v2070 = vmax.f32 %v1835, 0.0
    %v2071 = vmax.f32 %v2031, 0.0
    %v2072 = vmax.f32 %v1838, 0.0
    %v2073 = vmax.f32 %v2034, 0.0
    %v2074 = vmax.f32 %v1840, 0.0
    %v2075 = vmax.f32 %v2036, 0.0
    %v2076 = vmax.f32 %v1843, 0.0
    %v2077 = vmax.f32 %v2039, 0.0
    %v2078 = vmax.f32 %v1845, 0.0
    %v2079 = vmax.f32 %v2041, 0.0
    %v2080 = vmax.f32 %v1848, 0.0
    %v2081 = vmax.f32 %v2044, 0.0
    %v2082 = vmax.f32 %v1850, 0.0
    %v2083 = vmax.f32 %v2046, 0.0
    %v2084 = vmax.f32 %v1853, 0.0
    %v2085 = vmax.f32 %v2049, 0.0
    %v2086 = vmax.f32 %v1855, 0.0
    %v2087 = vmax.f32 %v2051, 0.0
    %v2088 = vmax.f32 %v1858, 0.0
    %v2089 = vmax.f32 %v2054, 0.0
    %v2090 = vmax.f32 %v1860, 0.0
    %v2091 = vmax.f32 %v2056, 0.0
    %v2092 = vmax.f32 %v1863, 0.0
    %v2093 = vmax.f32 %v2059, 0.0
    %v2094 = vmax.f32 %v1865, 0.0
    %v2095 = vmax.f32 %v2061, 0.0
    %v2096 = vmax.f32 %v1868, 0.0
    %v2097 = vmax.f32 %v2064, 0.0
    %v2098 = vmax.f32 %v1870, 0.0
    %v2099 = vmax.f32 %v2066, 0.0
    %v2100 = vadd.f32 %v2068, %v2069
    %2101 = vadd.xlane.f32.xlu0 %v2100
    %v2102 = vpop.xlane.xlu0 %2101
    %v2103 = vadd.f32 %v2070, %v2071
    %2104 = vadd.xlane.f32.xlu0 %v2103
    %v2105 = vpop.xlane.xlu0 %2104
    %v2106 = vadd.f32 %v2072, %v2073
    %2107 = vadd.xlane.f32.xlu0 %v2106
    %v2108 = vpop.xlane.xlu0 %2107
    %v2109 = vadd.f32 %v2074, %v2075
    %2110 = vadd.xlane.f32.xlu0 %v2109
    %v2111 = vpop.xlane.xlu0 %2110
    %v2112 = vadd.f32 %v2076, %v2077
    %2113 = vadd.xlane.f32.xlu0 %v2112
    %v2114 = vpop.xlane.xlu0 %2113
    %v2115 = vadd.f32 %v2078, %v2079
    %2116 = vadd.xlane.f32.xlu0 %v2115
    %v2117 = vpop.xlane.xlu0 %2116
    %v2118 = vadd.f32 %v2080, %v2081
    %2119 = vadd.xlane.f32.xlu0 %v2118
    %v2120 = vpop.xlane.xlu0 %2119
    %v2121 = vadd.f32 %v2082, %v2083
    %2122 = vadd.xlane.f32.xlu0 %v2121
    %v2123 = vpop.xlane.xlu0 %2122
    %v2124 = vadd.f32 %v2084, %v2085
    %2125 = vadd.xlane.f32.xlu0 %v2124
    %v2126 = vpop.xlane.xlu0 %2125
    %v2127 = vadd.f32 %v2086, %v2087
    %2128 = vadd.xlane.f32.xlu0 %v2127
    %v2129 = vpop.xlane.xlu0 %2128
    %v2130 = vadd.f32 %v2088, %v2089
    %2131 = vadd.xlane.f32.xlu0 %v2130
    %v2132 = vpop.xlane.xlu0 %2131
    %v2133 = vadd.f32 %v2090, %v2091
    %2134 = vadd.xlane.f32.xlu0 %v2133
    %v2135 = vpop.xlane.xlu0 %2134
    %v2136 = vadd.f32 %v2092, %v2093
    %2137 = vadd.xlane.f32.xlu0 %v2136
    %v2138 = vpop.xlane.xlu0 %2137
    %v2139 = vadd.f32 %v2094, %v2095
    %2140 = vadd.xlane.f32.xlu0 %v2139
    %v2141 = vpop.xlane.xlu0 %2140
    %v2142 = vadd.f32 %v2096, %v2097
    %2143 = vadd.xlane.f32.xlu0 %v2142
    %v2144 = vpop.xlane.xlu0 %2143
    %v2145 = vadd.f32 %v2098, %v2099
    %2146 = vadd.xlane.f32.xlu0 %v2145
    %v2147 = vpop.xlane.xlu0 %2146
    %v2148 = vmul.f32 %v2102, 0.00390625
    %v2149 = vmul.f32 %v2105, 0.00390625
    %v2150 = vmul.f32 %v2108, 0.00390625
    %v2151 = vmul.f32 %v2111, 0.00390625
    %v2152 = vmul.f32 %v2114, 0.00390625
    %v2153 = vmul.f32 %v2117, 0.00390625
    %v2154 = vmul.f32 %v2120, 0.00390625
    %v2155 = vmul.f32 %v2123, 0.00390625
    %v2156 = vmul.f32 %v2126, 0.00390625
    %v2157 = vmul.f32 %v2129, 0.00390625
    %v2158 = vmul.f32 %v2132, 0.00390625
    %v2159 = vmul.f32 %v2135, 0.00390625
    %v2160 = vmul.f32 %v2138, 0.00390625
    %v2161 = vmul.f32 %v2141, 0.00390625
    %v2162 = vmul.f32 %v2144, 0.00390625
    %v2163 = vmul.f32 %v2147, 0.00390625
    %v2164 = vmul.f32 %v2068, %v2068
    %v2165 = vmul.f32 %v2069, %v2069
    %v2166 = vmul.f32 %v2070, %v2070
    %v2167 = vmul.f32 %v2071, %v2071
    %v2168 = vmul.f32 %v2072, %v2072
    %v2169 = vmul.f32 %v2073, %v2073
    %v2170 = vmul.f32 %v2074, %v2074
    %v2171 = vmul.f32 %v2075, %v2075
    %v2172 = vmul.f32 %v2076, %v2076
    %v2173 = vmul.f32 %v2077, %v2077
    %v2174 = vmul.f32 %v2078, %v2078
    %v2175 = vmul.f32 %v2079, %v2079
    %v2176 = vmul.f32 %v2080, %v2080
    %v2177 = vmul.f32 %v2081, %v2081
    %v2178 = vmul.f32 %v2082, %v2082
    %v2179 = vmul.f32 %v2083, %v2083
    %v2180 = vmul.f32 %v2084, %v2084
    %v2181 = vmul.f32 %v2085, %v2085
    %v2182 = vmul.f32 %v2086, %v2086
    %v2183 = vmul.f32 %v2087, %v2087
    %v2184 = vmul.f32 %v2088, %v2088
    %v2185 = vmul.f32 %v2089, %v2089
    %v2186 = vmul.f32 %v2090, %v2090
    %v2187 = vmul.f32 %v2091, %v2091
    %v2188 = vmul.f32 %v2092, %v2092
    %v2189 = vmul.f32 %v2093, %v2093
    %v2190 = vmul.f32 %v2094, %v2094
    %v2191 = vmul.f32 %v2095, %v2095
    %v2192 = vmul.f32 %v2096, %v2096
    %v2193 = vmul.f32 %v2097, %v2097
    %v2194 = vmul.f32 %v2098, %v2098
    %v2195 = vmul.f32 %v2099, %v2099
    %v2196 = vadd.f32 %v2164, %v2165
    %2197 = vadd.xlane.f32.xlu0 %v2196
    %v2198 = vpop.xlane.xlu0 %2197
    %v2199 = vadd.f32 %v2166, %v2167
    %2200 = vadd.xlane.f32.xlu0 %v2199
    %v2201 = vpop.xlane.xlu0 %2200
    %v2202 = vadd.f32 %v2168, %v2169
    %2203 = vadd.xlane.f32.xlu0 %v2202
    %v2204 = vpop.xlane.xlu0 %2203
    %v2205 = vadd.f32 %v2170, %v2171
    %2206 = vadd.xlane.f32.xlu0 %v2205
    %v2207 = vpop.xlane.xlu0 %2206
    %v2208 = vadd.f32 %v2172, %v2173
    %2209 = vadd.xlane.f32.xlu0 %v2208
    %v2210 = vpop.xlane.xlu0 %2209
    %v2211 = vadd.f32 %v2174, %v2175
    %2212 = vadd.xlane.f32.xlu0 %v2211
    %v2213 = vpop.xlane.xlu0 %2212
    %v2214 = vadd.f32 %v2176, %v2177
    %2215 = vadd.xlane.f32.xlu0 %v2214
    %v2216 = vpop.xlane.xlu0 %2215
    %v2217 = vadd.f32 %v2178, %v2179
    %2218 = vadd.xlane.f32.xlu0 %v2217
    %v2219 = vpop.xlane.xlu0 %2218
    %v2220 = vadd.f32 %v2180, %v2181
    %2221 = vadd.xlane.f32.xlu0 %v2220
    %v2222 = vpop.xlane.xlu0 %2221
    %v2223 = vadd.f32 %v2182, %v2183
    %2224 = vadd.xlane.f32.xlu0 %v2223
    %v2225 = vpop.xlane.xlu0 %2224
    %v2226 = vadd.f32 %v2184, %v2185
    %2227 = vadd.xlane.f32.xlu0 %v2226
    %v2228 = vpop.xlane.xlu0 %2227
    %v2229 = vadd.f32 %v2186, %v2187
    %2230 = vadd.xlane.f32.xlu0 %v2229
    %v2231 = vpop.xlane.xlu0 %2230
    %v2232 = vadd.f32 %v2188, %v2189
    %2233 = vadd.xlane.f32.xlu0 %v2232
    %v2234 = vpop.xlane.xlu0 %2233
    %v2235 = vadd.f32 %v2190, %v2191
    %2236 = vadd.xlane.f32.xlu0 %v2235
    %v2237 = vpop.xlane.xlu0 %2236
    %v2238 = vadd.f32 %v2192, %v2193
    %2239 = vadd.xlane.f32.xlu0 %v2238
    %v2240 = vpop.xlane.xlu0 %2239
    %v2241 = vadd.f32 %v2194, %v2195
    %2242 = vadd.xlane.f32.xlu0 %v2241
    %v2243 = vpop.xlane.xlu0 %2242
    %v2244 = vmul.f32 %v2198, 0.00390625
    %v2245 = vmul.f32 %v2201, 0.00390625
    %v2246 = vmul.f32 %v2204, 0.00390625
    %v2247 = vmul.f32 %v2207, 0.00390625
    %v2248 = vmul.f32 %v2210, 0.00390625
    %v2249 = vmul.f32 %v2213, 0.00390625
    %v2250 = vmul.f32 %v2216, 0.00390625
    %v2251 = vmul.f32 %v2219, 0.00390625
    %v2252 = vmul.f32 %v2222, 0.00390625
    %v2253 = vmul.f32 %v2225, 0.00390625
    %v2254 = vmul.f32 %v2228, 0.00390625
    %v2255 = vmul.f32 %v2231, 0.00390625
    %v2256 = vmul.f32 %v2234, 0.00390625
    %v2257 = vmul.f32 %v2237, 0.00390625
    %v2258 = vmul.f32 %v2240, 0.00390625
    %v2259 = vmul.f32 %v2243, 0.00390625
    %v2260 = vmul.f32 %v2148, %v2148
    %v2261 = vmul.f32 %v2149, %v2149
    %v2262 = vmul.f32 %v2150, %v2150
    %v2263 = vmul.f32 %v2151, %v2151
    %v2264 = vmul.f32 %v2152, %v2152
    %v2265 = vmul.f32 %v2153, %v2153
    %v2266 = vmul.f32 %v2154, %v2154
    %v2267 = vmul.f32 %v2155, %v2155
    %v2268 = vmul.f32 %v2156, %v2156
    %v2269 = vmul.f32 %v2157, %v2157
    %v2270 = vmul.f32 %v2158, %v2158
    %v2271 = vmul.f32 %v2159, %v2159
    %v2272 = vmul.f32 %v2160, %v2160
    %v2273 = vmul.f32 %v2161, %v2161
    %v2274 = vmul.f32 %v2162, %v2162
    %v2275 = vmul.f32 %v2163, %v2163
    %v2276 = vsub.f32 %v2244, %v2260
    %v2277 = vsub.f32 %v2245, %v2261
    %v2278 = vsub.f32 %v2246, %v2262
    %v2279 = vsub.f32 %v2247, %v2263
    %v2280 = vsub.f32 %v2248, %v2264
    %v2281 = vsub.f32 %v2249, %v2265
    %v2282 = vsub.f32 %v2250, %v2266
    %v2283 = vsub.f32 %v2251, %v2267
    %v2284 = vsub.f32 %v2252, %v2268
    %v2285 = vsub.f32 %v2253, %v2269
    %v2286 = vsub.f32 %v2254, %v2270
    %v2287 = vsub.f32 %v2255, %v2271
    %v2288 = vsub.f32 %v2256, %v2272
    %v2289 = vsub.f32 %v2257, %v2273
    %v2290 = vsub.f32 %v2258, %v2274
    %v2291 = vsub.f32 %v2259, %v2275
    %v2292 = vmax.f32 %v2276, 0.0
    %v2293 = vmax.f32 %v2277, 0.0
    %v2294 = vmax.f32 %v2278, 0.0
    %v2295 = vmax.f32 %v2279, 0.0
    %v2296 = vmax.f32 %v2280, 0.0
    %v2297 = vmax.f32 %v2281, 0.0
    %v2298 = vmax.f32 %v2282, 0.0
    %v2299 = vmax.f32 %v2283, 0.0
    %v2300 = vmax.f32 %v2284, 0.0
    %v2301 = vmax.f32 %v2285, 0.0
    %v2302 = vmax.f32 %v2286, 0.0
    %v2303 = vmax.f32 %v2287, 0.0
    %v2304 = vmax.f32 %v2288, 0.0
    %v2305 = vmax.f32 %v2289, 0.0
    %v2306 = vmax.f32 %v2290, 0.0
    %v2307 = vmax.f32 %v2291, 0.0
    %v2308 = vadd.f32 %v2292, 1e-05
    %v2309 = vadd.f32 %v2293, 1e-05
    %v2310 = vadd.f32 %v2294, 1e-05
    %v2311 = vadd.f32 %v2295, 1e-05
    %v2312 = vadd.f32 %v2296, 1e-05
    %v2313 = vadd.f32 %v2297, 1e-05
    %v2314 = vadd.f32 %v2298, 1e-05
    %v2315 = vadd.f32 %v2299, 1e-05
    %v2316 = vadd.f32 %v2300, 1e-05
    %v2317 = vadd.f32 %v2301, 1e-05
    %v2318 = vadd.f32 %v2302, 1e-05
    %v2319 = vadd.f32 %v2303, 1e-05
    %v2320 = vadd.f32 %v2304, 1e-05
    %v2321 = vadd.f32 %v2305, 1e-05
    %v2322 = vadd.f32 %v2306, 1e-05
    %v2323 = vadd.f32 %v2307, 1e-05
    %v2324 = vrsqrt.pop %v2308
    %v2325 = vmul.f32 %v2324, %v2308
    %v2326 = vmul.f32 %v2325, %v2324
    %v2327 = vmul.f32 0.5, %v2326
    %v2328 = vsub.f32 1.5, %v2327
    %v2329 = vmul.f32 %v2324, %v2328
    %vm2330 = vweird.f32 %v2308
    %vm2331 = vweird.f32 %v2324
    %vm2332 = vmor %vm2330, %vm2331
    %v2333 = vsel %vm2332, %v2324, %v2329
    %v2334 = vrsqrt.pop %v2309
    %v2335 = vmul.f32 %v2334, %v2309
    %v2336 = vmul.f32 %v2335, %v2334
    %v2337 = vmul.f32 0.5, %v2336
    %v2338 = vsub.f32 1.5, %v2337
    %v2339 = vmul.f32 %v2334, %v2338
    %vm2340 = vweird.f32 %v2309
    %vm2341 = vweird.f32 %v2334
    %vm2342 = vmor %vm2340, %vm2341
    %v2343 = vsel %vm2342, %v2334, %v2339
    %v2344 = vrsqrt.pop %v2310
    %v2345 = vmul.f32 %v2344, %v2310
    %v2346 = vmul.f32 %v2345, %v2344
    %v2347 = vmul.f32 0.5, %v2346
    %v2348 = vsub.f32 1.5, %v2347
    %v2349 = vmul.f32 %v2344, %v2348
    %vm2350 = vweird.f32 %v2310
    %vm2351 = vweird.f32 %v2344
    %vm2352 = vmor %vm2350, %vm2351
    %v2353 = vsel %vm2352, %v2344, %v2349
    %v2354 = vrsqrt.pop %v2311
    %v2355 = vmul.f32 %v2354, %v2311
    %v2356 = vmul.f32 %v2355, %v2354
    %v2357 = vmul.f32 0.5, %v2356
    %v2358 = vsub.f32 1.5, %v2357
    %v2359 = vmul.f32 %v2354, %v2358
    %vm2360 = vweird.f32 %v2311
    %vm2361 = vweird.f32 %v2354
    %vm2362 = vmor %vm2360, %vm2361
    %v2363 = vsel %vm2362, %v2354, %v2359
    %v2364 = vrsqrt.pop %v2312
    %v2365 = vmul.f32 %v2364, %v2312
    %v2366 = vmul.f32 %v2365, %v2364
    %v2367 = vmul.f32 0.5, %v2366
    %v2368 = vsub.f32 1.5, %v2367
    %v2369 = vmul.f32 %v2364, %v2368
    %vm2370 = vweird.f32 %v2312
    %vm2371 = vweird.f32 %v2364
    %vm2372 = vmor %vm2370, %vm2371
    %v2373 = vsel %vm2372, %v2364, %v2369
    %v2374 = vrsqrt.pop %v2313
    %v2375 = vmul.f32 %v2374, %v2313
    %v2376 = vmul.f32 %v2375, %v2374
    %v2377 = vmul.f32 0.5, %v2376
    %v2378 = vsub.f32 1.5, %v2377
    %v2379 = vmul.f32 %v2374, %v2378
    %vm2380 = vweird.f32 %v2313
    %vm2381 = vweird.f32 %v2374
    %vm2382 = vmor %vm2380, %vm2381
    %v2383 = vsel %vm2382, %v2374, %v2379
    %v2384 = vrsqrt.pop %v2314
    %v2385 = vmul.f32 %v2384, %v2314
    %v2386 = vmul.f32 %v2385, %v2384
    %v2387 = vmul.f32 0.5, %v2386
    %v2388 = vsub.f32 1.5, %v2387
    %v2389 = vmul.f32 %v2384, %v2388
    %vm2390 = vweird.f32 %v2314
    %vm2391 = vweird.f32 %v2384
    %vm2392 = vmor %vm2390, %vm2391
    %v2393 = vsel %vm2392, %v2384, %v2389
    %v2394 = vrsqrt.pop %v2315
    %v2395 = vmul.f32 %v2394, %v2315
    %v2396 = vmul.f32 %v2395, %v2394
    %v2397 = vmul.f32 0.5, %v2396
    %v2398 = vsub.f32 1.5, %v2397
    %v2399 = vmul.f32 %v2394, %v2398
    %vm2400 = vweird.f32 %v2315
    %vm2401 = vweird.f32 %v2394
    %vm2402 = vmor %vm2400, %vm2401
    %v2403 = vsel %vm2402, %v2394, %v2399
    %v2404 = vrsqrt.pop %v2316
    %v2405 = vmul.f32 %v2404, %v2316
    %v2406 = vmul.f32 %v2405, %v2404
    %v2407 = vmul.f32 0.5, %v2406
    %v2408 = vsub.f32 1.5, %v2407
    %v2409 = vmul.f32 %v2404, %v2408
    %vm2410 = vweird.f32 %v2316
    %vm2411 = vweird.f32 %v2404
    %vm2412 = vmor %vm2410, %vm2411
    %v2413 = vsel %vm2412, %v2404, %v2409
    %v2414 = vrsqrt.pop %v2317
    %v2415 = vmul.f32 %v2414, %v2317
    %v2416 = vmul.f32 %v2415, %v2414
    %v2417 = vmul.f32 0.5, %v2416
    %v2418 = vsub.f32 1.5, %v2417
    %v2419 = vmul.f32 %v2414, %v2418
    %vm2420 = vweird.f32 %v2317
    %vm2421 = vweird.f32 %v2414
    %vm2422 = vmor %vm2420, %vm2421
    %v2423 = vsel %vm2422, %v2414, %v2419
    %v2424 = vrsqrt.pop %v2318
    %v2425 = vmul.f32 %v2424, %v2318
    %v2426 = vmul.f32 %v2425, %v2424
    %v2427 = vmul.f32 0.5, %v2426
    %v2428 = vsub.f32 1.5, %v2427
    %v2429 = vmul.f32 %v2424, %v2428
    %vm2430 = vweird.f32 %v2318
    %vm2431 = vweird.f32 %v2424
    %vm2432 = vmor %vm2430, %vm2431
    %v2433 = vsel %vm2432, %v2424, %v2429
    %v2434 = vrsqrt.pop %v2319
    %v2435 = vmul.f32 %v2434, %v2319
    %v2436 = vmul.f32 %v2435, %v2434
    %v2437 = vmul.f32 0.5, %v2436
    %v2438 = vsub.f32 1.5, %v2437
    %v2439 = vmul.f32 %v2434, %v2438
    %vm2440 = vweird.f32 %v2319
    %vm2441 = vweird.f32 %v2434
    %vm2442 = vmor %vm2440, %vm2441
    %v2443 = vsel %vm2442, %v2434, %v2439
    %v2444 = vrsqrt.pop %v2320
    %v2445 = vmul.f32 %v2444, %v2320
    %v2446 = vmul.f32 %v2445, %v2444
    %v2447 = vmul.f32 0.5, %v2446
    %v2448 = vsub.f32 1.5, %v2447
    %v2449 = vmul.f32 %v2444, %v2448
    %vm2450 = vweird.f32 %v2320
    %vm2451 = vweird.f32 %v2444
    %vm2452 = vmor %vm2450, %vm2451
    %v2453 = vsel %vm2452, %v2444, %v2449
    %v2454 = vrsqrt.pop %v2321
    %v2455 = vmul.f32 %v2454, %v2321
    %v2456 = vmul.f32 %v2455, %v2454
    %v2457 = vmul.f32 0.5, %v2456
    %v2458 = vsub.f32 1.5, %v2457
    %v2459 = vmul.f32 %v2454, %v2458
    %vm2460 = vweird.f32 %v2321
    %vm2461 = vweird.f32 %v2454
    %vm2462 = vmor %vm2460, %vm2461
    %v2463 = vsel %vm2462, %v2454, %v2459
    %v2464 = vrsqrt.pop %v2322
    %v2465 = vmul.f32 %v2464, %v2322
    %v2466 = vmul.f32 %v2465, %v2464
    %v2467 = vmul.f32 0.5, %v2466
    %v2468 = vsub.f32 1.5, %v2467
    %v2469 = vmul.f32 %v2464, %v2468
    %vm2470 = vweird.f32 %v2322
    %vm2471 = vweird.f32 %v2464
    %vm2472 = vmor %vm2470, %vm2471
    %v2473 = vsel %vm2472, %v2464, %v2469
    %v2474 = vrsqrt.pop %v2323
    %v2475 = vmul.f32 %v2474, %v2323
    %v2476 = vmul.f32 %v2475, %v2474
    %v2477 = vmul.f32 0.5, %v2476
    %v2478 = vsub.f32 1.5, %v2477
    %v2479 = vmul.f32 %v2474, %v2478
    %vm2480 = vweird.f32 %v2323
    %vm2481 = vweird.f32 %v2474
    %vm2482 = vmor %vm2480, %vm2481
    %v2483 = vsel %vm2482, %v2474, %v2479
    %v2484 = vsub.f32 %v2068, %v2148
    %v2485 = vsub.f32 %v2069, %v2148
    %v2486 = vsub.f32 %v2070, %v2149
    %v2487 = vsub.f32 %v2071, %v2149
    %v2488 = vsub.f32 %v2072, %v2150
    %v2489 = vsub.f32 %v2073, %v2150
    %v2490 = vsub.f32 %v2074, %v2151
    %v2491 = vsub.f32 %v2075, %v2151
    %v2492 = vsub.f32 %v2076, %v2152
    %v2493 = vsub.f32 %v2077, %v2152
    %v2494 = vsub.f32 %v2078, %v2153
    %v2495 = vsub.f32 %v2079, %v2153
    %v2496 = vsub.f32 %v2080, %v2154
    %v2497 = vsub.f32 %v2081, %v2154
    %v2498 = vsub.f32 %v2082, %v2155
    %v2499 = vsub.f32 %v2083, %v2155
    %v2500 = vsub.f32 %v2084, %v2156
    %v2501 = vsub.f32 %v2085, %v2156
    %v2502 = vsub.f32 %v2086, %v2157
    %v2503 = vsub.f32 %v2087, %v2157
    %v2504 = vsub.f32 %v2088, %v2158
    %v2505 = vsub.f32 %v2089, %v2158
    %v2506 = vsub.f32 %v2090, %v2159
    %v2507 = vsub.f32 %v2091, %v2159
    %v2508 = vsub.f32 %v2092, %v2160
    %v2509 = vsub.f32 %v2093, %v2160
    %v2510 = vsub.f32 %v2094, %v2161
    %v2511 = vsub.f32 %v2095, %v2161
    %v2512 = vsub.f32 %v2096, %v2162
    %v2513 = vsub.f32 %v2097, %v2162
    %v2514 = vsub.f32 %v2098, %v2163
    %v2515 = vsub.f32 %v2099, %v2163
    %v2516 = vmul.f32 %v2484, %v2333
    %v2517 = vmul.f32 %v2485, %v2333
    %v2518 = vmul.f32 %v2486, %v2343
    %v2519 = vmul.f32 %v2487, %v2343
    %v2520 = vmul.f32 %v2488, %v2353
    %v2521 = vmul.f32 %v2489, %v2353
    %v2522 = vmul.f32 %v2490, %v2363
    %v2523 = vmul.f32 %v2491, %v2363
    %v2524 = vmul.f32 %v2492, %v2373
    %v2525 = vmul.f32 %v2493, %v2373
    %v2526 = vmul.f32 %v2494, %v2383
    %v2527 = vmul.f32 %v2495, %v2383
    %v2528 = vmul.f32 %v2496, %v2393
    %v2529 = vmul.f32 %v2497, %v2393
    %v2530 = vmul.f32 %v2498, %v2403
    %v2531 = vmul.f32 %v2499, %v2403
    %v2532 = vmul.f32 %v2500, %v2413
    %v2533 = vmul.f32 %v2501, %v2413
    %v2534 = vmul.f32 %v2502, %v2423
    %v2535 = vmul.f32 %v2503, %v2423
    %v2536 = vmul.f32 %v2504, %v2433
    %v2537 = vmul.f32 %v2505, %v2433
    %v2538 = vmul.f32 %v2506, %v2443
    %v2539 = vmul.f32 %v2507, %v2443
    %v2540 = vmul.f32 %v2508, %v2453
    %v2541 = vmul.f32 %v2509, %v2453
    %v2542 = vmul.f32 %v2510, %v2463
    %v2543 = vmul.f32 %v2511, %v2463
    %v2544 = vmul.f32 %v2512, %v2473
    %v2545 = vmul.f32 %v2513, %v2473
    %v2546 = vmul.f32 %v2514, %v2483
    %v2547 = vmul.f32 %v2515, %v2483
    %v2548 = vld [vmem:[%s8] sm:$0x3]
    %v2550 = vperm.slane %v2548, 0
    %v2551 = vperm.slane %v2548, 1
    %v2554 = vmul.f32 %v2516, %v2550
    %v2555 = vmul.f32 %v2517, %v2551
    %v2556 = vmul.f32 %v2518, %v2550
    %v2557 = vmul.f32 %v2519, %v2551
    %v2558 = vmul.f32 %v2520, %v2550
    %v2559 = vmul.f32 %v2521, %v2551
    %v2560 = vmul.f32 %v2522, %v2550
    %v2561 = vmul.f32 %v2523, %v2551
    %v2562 = vmul.f32 %v2524, %v2550
    %v2563 = vmul.f32 %v2525, %v2551
    %v2564 = vmul.f32 %v2526, %v2550
    %v2565 = vmul.f32 %v2527, %v2551
    %v2566 = vmul.f32 %v2528, %v2550
    %v2567 = vmul.f32 %v2529, %v2551
    %v2568 = vmul.f32 %v2530, %v2550
    %v2569 = vmul.f32 %v2531, %v2551
    %v2570 = vmul.f32 %v2532, %v2550
    %v2571 = vmul.f32 %v2533, %v2551
    %v2572 = vmul.f32 %v2534, %v2550
    %v2573 = vmul.f32 %v2535, %v2551
    %v2574 = vmul.f32 %v2536, %v2550
    %v2575 = vmul.f32 %v2537, %v2551
    %v2576 = vmul.f32 %v2538, %v2550
    %v2577 = vmul.f32 %v2539, %v2551
    %v2578 = vmul.f32 %v2540, %v2550
    %v2579 = vmul.f32 %v2541, %v2551
    %v2580 = vmul.f32 %v2542, %v2550
    %v2581 = vmul.f32 %v2543, %v2551
    %v2582 = vmul.f32 %v2544, %v2550
    %v2583 = vmul.f32 %v2545, %v2551
    %v2584 = vmul.f32 %v2546, %v2550
    %v2585 = vmul.f32 %v2547, %v2551
    %v2586 = vld [vmem:[%s9] sm:$0x3]
    %v2588 = vperm.slane %v2586, 0
    %v2589 = vperm.slane %v2586, 1
    %v2592 = vadd.f32 %v2554, %v2588
    %v2593 = vadd.f32 %v2555, %v2589
    %v2594 = vadd.f32 %v2556, %v2588
    %v2595 = vadd.f32 %v2557, %v2589
    %v2596 = vadd.f32 %v2558, %v2588
    %v2597 = vadd.f32 %v2559, %v2589
    %v2598 = vadd.f32 %v2560, %v2588
    %v2599 = vadd.f32 %v2561, %v2589
    %v2600 = vadd.f32 %v2562, %v2588
    %v2601 = vadd.f32 %v2563, %v2589
    %v2602 = vadd.f32 %v2564, %v2588
    %v2603 = vadd.f32 %v2565, %v2589
    %v2604 = vadd.f32 %v2566, %v2588
    %v2605 = vadd.f32 %v2567, %v2589
    %v2606 = vadd.f32 %v2568, %v2588
    %v2607 = vadd.f32 %v2569, %v2589
    %v2608 = vadd.f32 %v2570, %v2588
    %v2609 = vadd.f32 %v2571, %v2589
    %v2610 = vadd.f32 %v2572, %v2588
    %v2611 = vadd.f32 %v2573, %v2589
    %v2612 = vadd.f32 %v2574, %v2588
    %v2613 = vadd.f32 %v2575, %v2589
    %v2614 = vadd.f32 %v2576, %v2588
    %v2615 = vadd.f32 %v2577, %v2589
    %v2616 = vadd.f32 %v2578, %v2588
    %v2617 = vadd.f32 %v2579, %v2589
    %v2618 = vadd.f32 %v2580, %v2588
    %v2619 = vadd.f32 %v2581, %v2589
    %v2620 = vadd.f32 %v2582, %v2588
    %v2621 = vadd.f32 %v2583, %v2589
    %v2622 = vadd.f32 %v2584, %v2588
    %v2623 = vadd.f32 %v2585, %v2589
    %v2624 = vpack.c.bf16 %v2594, %v2592
    %v2625 = vpack.c.bf16 %v2595, %v2593
    %v2626 = vpack.c.bf16 %v2598, %v2596
    %v2627 = vpack.c.bf16 %v2599, %v2597
    %v2628 = vpack.c.bf16 %v2602, %v2600
    %v2629 = vpack.c.bf16 %v2603, %v2601
    %v2630 = vpack.c.bf16 %v2606, %v2604
    %v2631 = vpack.c.bf16 %v2607, %v2605
    %v2632 = vpack.c.bf16 %v2610, %v2608
    %v2633 = vpack.c.bf16 %v2611, %v2609
    %v2634 = vpack.c.bf16 %v2614, %v2612
    %v2635 = vpack.c.bf16 %v2615, %v2613
    %v2636 = vpack.c.bf16 %v2618, %v2616
    %v2637 = vpack.c.bf16 %v2619, %v2617
    %v2638 = vpack.c.bf16 %v2622, %v2620
    %v2639 = vpack.c.bf16 %v2623, %v2621
    %v2640 = vld [vmem:[%s10] sm:$0xf]
    %v2641 = vld [vmem:[%s10 + $0x4] sm:$0xf]
    %v2642 = vld [vmem:[%s10 + $0x8] sm:$0xf]
    %v2643 = vld [vmem:[%s10 + $0xc] sm:$0xf]
    %v2644 = vld [vmem:[%s10 + $0x10] sm:$0xf]
    %v2645 = vld [vmem:[%s10 + $0x14] sm:$0xf]
    %v2646 = vld [vmem:[%s10 + $0x18] sm:$0xf]
    %v2647 = vld [vmem:[%s10 + $0x1c] sm:$0xf]
    %v2648 = vld [vmem:[%s10 + $0x20] sm:$0xf]
    %v2649 = vld [vmem:[%s10 + $0x24] sm:$0xf]
    %v2650 = vld [vmem:[%s10 + $0x28] sm:$0xf]
    %v2651 = vld [vmem:[%s10 + $0x2c] sm:$0xf]
    %v2652 = vld [vmem:[%s10 + $0x30] sm:$0xf]
    %v2653 = vld [vmem:[%s10 + $0x34] sm:$0xf]
    %v2654 = vld [vmem:[%s10 + $0x38] sm:$0xf]
    %v2655 = vld [vmem:[%s10 + $0x3c] sm:$0xf]
    %v2656 = vld [vmem:[%s10 + $0x40] sm:$0xf]
    %v2657 = vld [vmem:[%s10 + $0x44] sm:$0xf]
    %v2658 = vld [vmem:[%s10 + $0x48] sm:$0xf]
    %v2659 = vld [vmem:[%s10 + $0x4c] sm:$0xf]
    %v2660 = vld [vmem:[%s10 + $0x50] sm:$0xf]
    %v2661 = vld [vmem:[%s10 + $0x54] sm:$0xf]
    %v2662 = vld [vmem:[%s10 + $0x58] sm:$0xf]
    %v2663 = vld [vmem:[%s10 + $0x5c] sm:$0xf]
    %v2664 = vld [vmem:[%s10 + $0x60] sm:$0xf]
    %v2665 = vld [vmem:[%s10 + $0x64] sm:$0xf]
    %v2666 = vld [vmem:[%s10 + $0x68] sm:$0xf]
    %v2667 = vld [vmem:[%s10 + $0x6c] sm:$0xf]
    %v2668 = vld [vmem:[%s10 + $0x70] sm:$0xf]
    %v2669 = vld [vmem:[%s10 + $0x74] sm:$0xf]
    %v2670 = vld [vmem:[%s10 + $0x78] sm:$0xf]
    %v2671 = vld [vmem:[%s10 + $0x7c] sm:$0xf]
    %v2672 = vld [vmem:[%s11] sm:$0x1]
    %v2674 = vperm.slane %v2672, 0
    %v2708 = vunpack.c.l.b16 %v2640
    %v2709 = vunpack.c.l.b16 %v2641
    %v2710 = vunpack.c.l.b16 %v2642
    %v2711 = vunpack.c.l.b16 %v2643
    %v2712 = vunpack.c.l.b16 %v2644
    %v2713 = vunpack.c.l.b16 %v2645
    %v2714 = vunpack.c.l.b16 %v2646
    %v2715 = vunpack.c.l.b16 %v2647
    %v2716 = vunpack.c.l.b16 %v2648
    %v2717 = vunpack.c.l.b16 %v2649
    %v2718 = vunpack.c.l.b16 %v2650
    %v2719 = vunpack.c.l.b16 %v2651
    %v2720 = vunpack.c.l.b16 %v2652
    %v2721 = vunpack.c.l.b16 %v2653
    %v2722 = vunpack.c.l.b16 %v2654
    %v2723 = vunpack.c.l.b16 %v2655
    %v2724 = vunpack.c.l.b16 %v2656
    %v2725 = vunpack.c.l.b16 %v2657
    %v2726 = vunpack.c.l.b16 %v2658
    %v2727 = vunpack.c.l.b16 %v2659
    %v2728 = vunpack.c.l.b16 %v2660
    %v2729 = vunpack.c.l.b16 %v2661
    %v2730 = vunpack.c.l.b16 %v2662
    %v2731 = vunpack.c.l.b16 %v2663
    %v2732 = vunpack.c.l.b16 %v2664
    %v2733 = vunpack.c.l.b16 %v2665
    %v2734 = vunpack.c.l.b16 %v2666
    %v2735 = vunpack.c.l.b16 %v2667
    %v2736 = vunpack.c.l.b16 %v2668
    %v2737 = vunpack.c.l.b16 %v2669
    %v2738 = vunpack.c.l.b16 %v2670
    %v2739 = vunpack.c.l.b16 %v2671
    %v2740 = vpack.c.b16 %v2709, %v2708
    %v2741 = vpack.c.b16 %v2711, %v2710
    %v2742 = vpack.c.b16 %v2713, %v2712
    %v2743 = vpack.c.b16 %v2715, %v2714
    %v2744 = vpack.c.b16 %v2717, %v2716
    %v2745 = vpack.c.b16 %v2719, %v2718
    %v2746 = vpack.c.b16 %v2721, %v2720
    %v2747 = vpack.c.b16 %v2723, %v2722
    %v2748 = vpack.c.b16 %v2725, %v2724
    %v2749 = vpack.c.b16 %v2727, %v2726
    %v2750 = vpack.c.b16 %v2729, %v2728
    %v2751 = vpack.c.b16 %v2731, %v2730
    %v2752 = vpack.c.b16 %v2733, %v2732
    %v2753 = vpack.c.b16 %v2735, %v2734
    %v2754 = vpack.c.b16 %v2737, %v2736
    %v2755 = vpack.c.b16 %v2739, %v2738
    %2772 = vmatpush.bf16.msra.mxu0 %v2747
    %2773 = vmatpush.bf16.msra.mxu0 %v2746
    %2774 = vmatpush.bf16.msra.mxu0 %v2745
    %2775 = vmatpush.bf16.msra.mxu0 %v2744
    %2776 = vmatpush.bf16.msra.mxu0 %v2743
    %2777 = vmatpush.bf16.msra.mxu0 %v2742
    %2778 = vmatpush.bf16.msra.mxu0 %v2741
    %2779 = vmatpush.bf16.msra.mxu0 %v2740
    %2780 = vmatmul.bf16.gmra.mxu0 %v2624
    %v2781 = vpop.f32.mrf.mxu0
    %v2782 = vadd.f32 %v2674, %v2781
    %v2783 = vpop.f32.mrf.mxu0
    %v2784 = vadd.f32 %v2674, %v2783
    %2785 = vmatmul.bf16.gmra.mxu0 %v2626
    %v2786 = vpop.f32.mrf.mxu0
    %v2787 = vadd.f32 %v2674, %v2786
    %v2788 = vpop.f32.mrf.mxu0
    %v2789 = vadd.f32 %v2674, %v2788
    %2790 = vmatmul.bf16.gmra.mxu0 %v2628
    %v2791 = vpop.f32.mrf.mxu0
    %v2792 = vadd.f32 %v2674, %v2791
    %v2793 = vpop.f32.mrf.mxu0
    %v2794 = vadd.f32 %v2674, %v2793
    %2795 = vmatmul.bf16.gmra.mxu0 %v2630
    %v2796 = vpop.f32.mrf.mxu0
    %v2797 = vadd.f32 %v2674, %v2796
    %v2798 = vpop.f32.mrf.mxu0
    %v2799 = vadd.f32 %v2674, %v2798
    %2800 = vmatmul.bf16.gmra.mxu0 %v2632
    %v2801 = vpop.f32.mrf.mxu0
    %v2802 = vadd.f32 %v2674, %v2801
    %v2803 = vpop.f32.mrf.mxu0
    %v2804 = vadd.f32 %v2674, %v2803
    %2805 = vmatmul.bf16.gmra.mxu0 %v2634
    %v2806 = vpop.f32.mrf.mxu0
    %v2807 = vadd.f32 %v2674, %v2806
    %v2808 = vpop.f32.mrf.mxu0
    %v2809 = vadd.f32 %v2674, %v2808
    %2810 = vmatmul.bf16.gmra.mxu0 %v2636
    %v2811 = vpop.f32.mrf.mxu0
    %v2812 = vadd.f32 %v2674, %v2811
    %v2813 = vpop.f32.mrf.mxu0
    %v2814 = vadd.f32 %v2674, %v2813
    %2815 = vmatmul.bf16.gmra.mxu0 %v2638
    %v2816 = vpop.f32.mrf.mxu0
    %v2817 = vadd.f32 %v2674, %v2816
    %v2818 = vpop.f32.mrf.mxu0
    %v2819 = vadd.f32 %v2674, %v2818
    %2820 = vdwg.mxu0
    %2821 = vmatpush.bf16.msra.mxu0 %v2755
    %2822 = vmatpush.bf16.msra.mxu0 %v2754
    %2823 = vmatpush.bf16.msra.mxu0 %v2753
    %2824 = vmatpush.bf16.msra.mxu0 %v2752
    %2825 = vmatpush.bf16.msra.mxu0 %v2751
    %2826 = vmatpush.bf16.msra.mxu0 %v2750
    %2827 = vmatpush.bf16.msra.mxu0 %v2749
    %2828 = vmatpush.bf16.msra.mxu0 %v2748
    %2829 = vmatmul.bf16.gmra.mxu0 %v2625
    %v2830 = vpop.f32.mrf.mxu0
    %v2831 = vadd.f32 %v2782, %v2830
    %v2832 = vpop.f32.mrf.mxu0
    %v2833 = vadd.f32 %v2784, %v2832
    %2834 = vmatmul.bf16.gmra.mxu0 %v2627
    %v2835 = vpop.f32.mrf.mxu0
    %v2836 = vadd.f32 %v2787, %v2835
    %v2837 = vpop.f32.mrf.mxu0
    %v2838 = vadd.f32 %v2789, %v2837
    %2839 = vmatmul.bf16.gmra.mxu0 %v2629
    %v2840 = vpop.f32.mrf.mxu0
    %v2841 = vadd.f32 %v2792, %v2840
    %v2842 = vpop.f32.mrf.mxu0
    %v2843 = vadd.f32 %v2794, %v2842
    %2844 = vmatmul.bf16.gmra.mxu0 %v2631
    %v2845 = vpop.f32.mrf.mxu0
    %v2846 = vadd.f32 %v2797, %v2845
    %v2847 = vpop.f32.mrf.mxu0
    %v2848 = vadd.f32 %v2799, %v2847
    %2849 = vmatmul.bf16.gmra.mxu0 %v2633
    %v2850 = vpop.f32.mrf.mxu0
    %v2851 = vadd.f32 %v2802, %v2850
    %v2852 = vpop.f32.mrf.mxu0
    %v2853 = vadd.f32 %v2804, %v2852
    %2854 = vmatmul.bf16.gmra.mxu0 %v2635
    %v2855 = vpop.f32.mrf.mxu0
    %v2856 = vadd.f32 %v2807, %v2855
    %v2857 = vpop.f32.mrf.mxu0
    %v2858 = vadd.f32 %v2809, %v2857
    %2859 = vmatmul.bf16.gmra.mxu0 %v2637
    %v2860 = vpop.f32.mrf.mxu0
    %v2861 = vadd.f32 %v2812, %v2860
    %v2862 = vpop.f32.mrf.mxu0
    %v2863 = vadd.f32 %v2814, %v2862
    %2864 = vmatmul.bf16.gmra.mxu0 %v2639
    %v2865 = vpop.f32.mrf.mxu0
    %v2866 = vadd.f32 %v2817, %v2865
    %v2867 = vpop.f32.mrf.mxu0
    %v2868 = vadd.f32 %v2819, %v2867
    %2869 = vdwg.mxu0
    %v2870 = vmax.f32 %v2831, 0.0
    %v2871 = vmax.f32 %v2833, 0.0
    %v2872 = vmax.f32 %v2836, 0.0
    %v2873 = vmax.f32 %v2838, 0.0
    %v2874 = vmax.f32 %v2841, 0.0
    %v2875 = vmax.f32 %v2843, 0.0
    %v2876 = vmax.f32 %v2846, 0.0
    %v2877 = vmax.f32 %v2848, 0.0
    %v2878 = vmax.f32 %v2851, 0.0
    %v2879 = vmax.f32 %v2853, 0.0
    %v2880 = vmax.f32 %v2856, 0.0
    %v2881 = vmax.f32 %v2858, 0.0
    %v2882 = vmax.f32 %v2861, 0.0
    %v2883 = vmax.f32 %v2863, 0.0
    %v2884 = vmax.f32 %v2866, 0.0
    %v2885 = vmax.f32 %v2868, 0.0
    %2886 = vadd.xlane.f32.xlu0 %v2870
    %v2887 = vpop.xlane.xlu0 %2886
    %2888 = vadd.xlane.f32.xlu0 %v2871
    %v2889 = vpop.xlane.xlu0 %2888
    %2890 = vadd.xlane.f32.xlu0 %v2872
    %v2891 = vpop.xlane.xlu0 %2890
    %2892 = vadd.xlane.f32.xlu0 %v2873
    %v2893 = vpop.xlane.xlu0 %2892
    %2894 = vadd.xlane.f32.xlu0 %v2874
    %v2895 = vpop.xlane.xlu0 %2894
    %2896 = vadd.xlane.f32.xlu0 %v2875
    %v2897 = vpop.xlane.xlu0 %2896
    %2898 = vadd.xlane.f32.xlu0 %v2876
    %v2899 = vpop.xlane.xlu0 %2898
    %2900 = vadd.xlane.f32.xlu0 %v2877
    %v2901 = vpop.xlane.xlu0 %2900
    %2902 = vadd.xlane.f32.xlu0 %v2878
    %v2903 = vpop.xlane.xlu0 %2902
    %2904 = vadd.xlane.f32.xlu0 %v2879
    %v2905 = vpop.xlane.xlu0 %2904
    %2906 = vadd.xlane.f32.xlu0 %v2880
    %v2907 = vpop.xlane.xlu0 %2906
    %2908 = vadd.xlane.f32.xlu0 %v2881
    %v2909 = vpop.xlane.xlu0 %2908
    %2910 = vadd.xlane.f32.xlu0 %v2882
    %v2911 = vpop.xlane.xlu0 %2910
    %2912 = vadd.xlane.f32.xlu0 %v2883
    %v2913 = vpop.xlane.xlu0 %2912
    %2914 = vadd.xlane.f32.xlu0 %v2884
    %v2915 = vpop.xlane.xlu0 %2914
    %2916 = vadd.xlane.f32.xlu0 %v2885
    %v2917 = vpop.xlane.xlu0 %2916
    %v2918 = vmul.f32 %v2887, 0.0078125
    %v2919 = vmul.f32 %v2889, 0.0078125
    %v2920 = vmul.f32 %v2891, 0.0078125
    %v2921 = vmul.f32 %v2893, 0.0078125
    %v2922 = vmul.f32 %v2895, 0.0078125
    %v2923 = vmul.f32 %v2897, 0.0078125
    %v2924 = vmul.f32 %v2899, 0.0078125
    %v2925 = vmul.f32 %v2901, 0.0078125
    %v2926 = vmul.f32 %v2903, 0.0078125
    %v2927 = vmul.f32 %v2905, 0.0078125
    %v2928 = vmul.f32 %v2907, 0.0078125
    %v2929 = vmul.f32 %v2909, 0.0078125
    %v2930 = vmul.f32 %v2911, 0.0078125
    %v2931 = vmul.f32 %v2913, 0.0078125
    %v2932 = vmul.f32 %v2915, 0.0078125
    %v2933 = vmul.f32 %v2917, 0.0078125
    %v2934 = vmul.f32 %v2870, %v2870
    %v2935 = vmul.f32 %v2871, %v2871
    %v2936 = vmul.f32 %v2872, %v2872
    %v2937 = vmul.f32 %v2873, %v2873
    %v2938 = vmul.f32 %v2874, %v2874
    %v2939 = vmul.f32 %v2875, %v2875
    %v2940 = vmul.f32 %v2876, %v2876
    %v2941 = vmul.f32 %v2877, %v2877
    %v2942 = vmul.f32 %v2878, %v2878
    %v2943 = vmul.f32 %v2879, %v2879
    %v2944 = vmul.f32 %v2880, %v2880
    %v2945 = vmul.f32 %v2881, %v2881
    %v2946 = vmul.f32 %v2882, %v2882
    %v2947 = vmul.f32 %v2883, %v2883
    %v2948 = vmul.f32 %v2884, %v2884
    %v2949 = vmul.f32 %v2885, %v2885
    %2950 = vadd.xlane.f32.xlu0 %v2934
    %v2951 = vpop.xlane.xlu0 %2950
    %2952 = vadd.xlane.f32.xlu0 %v2935
    %v2953 = vpop.xlane.xlu0 %2952
    %2954 = vadd.xlane.f32.xlu0 %v2936
    %v2955 = vpop.xlane.xlu0 %2954
    %2956 = vadd.xlane.f32.xlu0 %v2937
    %v2957 = vpop.xlane.xlu0 %2956
    %2958 = vadd.xlane.f32.xlu0 %v2938
    %v2959 = vpop.xlane.xlu0 %2958
    %2960 = vadd.xlane.f32.xlu0 %v2939
    %v2961 = vpop.xlane.xlu0 %2960
    %2962 = vadd.xlane.f32.xlu0 %v2940
    %v2963 = vpop.xlane.xlu0 %2962
    %2964 = vadd.xlane.f32.xlu0 %v2941
    %v2965 = vpop.xlane.xlu0 %2964
    %2966 = vadd.xlane.f32.xlu0 %v2942
    %v2967 = vpop.xlane.xlu0 %2966
    %2968 = vadd.xlane.f32.xlu0 %v2943
    %v2969 = vpop.xlane.xlu0 %2968
    %2970 = vadd.xlane.f32.xlu0 %v2944
    %v2971 = vpop.xlane.xlu0 %2970
    %2972 = vadd.xlane.f32.xlu0 %v2945
    %v2973 = vpop.xlane.xlu0 %2972
    %2974 = vadd.xlane.f32.xlu0 %v2946
    %v2975 = vpop.xlane.xlu0 %2974
    %2976 = vadd.xlane.f32.xlu0 %v2947
    %v2977 = vpop.xlane.xlu0 %2976
    %2978 = vadd.xlane.f32.xlu0 %v2948
    %v2979 = vpop.xlane.xlu0 %2978
    %2980 = vadd.xlane.f32.xlu0 %v2949
    %v2981 = vpop.xlane.xlu0 %2980
    %v2982 = vmul.f32 %v2951, 0.0078125
    %v2983 = vmul.f32 %v2953, 0.0078125
    %v2984 = vmul.f32 %v2955, 0.0078125
    %v2985 = vmul.f32 %v2957, 0.0078125
    %v2986 = vmul.f32 %v2959, 0.0078125
    %v2987 = vmul.f32 %v2961, 0.0078125
    %v2988 = vmul.f32 %v2963, 0.0078125
    %v2989 = vmul.f32 %v2965, 0.0078125
    %v2990 = vmul.f32 %v2967, 0.0078125
    %v2991 = vmul.f32 %v2969, 0.0078125
    %v2992 = vmul.f32 %v2971, 0.0078125
    %v2993 = vmul.f32 %v2973, 0.0078125
    %v2994 = vmul.f32 %v2975, 0.0078125
    %v2995 = vmul.f32 %v2977, 0.0078125
    %v2996 = vmul.f32 %v2979, 0.0078125
    %v2997 = vmul.f32 %v2981, 0.0078125
    %v2998 = vmul.f32 %v2918, %v2918
    %v2999 = vmul.f32 %v2919, %v2919
    %v3000 = vmul.f32 %v2920, %v2920
    %v3001 = vmul.f32 %v2921, %v2921
    %v3002 = vmul.f32 %v2922, %v2922
    %v3003 = vmul.f32 %v2923, %v2923
    %v3004 = vmul.f32 %v2924, %v2924
    %v3005 = vmul.f32 %v2925, %v2925
    %v3006 = vmul.f32 %v2926, %v2926
    %v3007 = vmul.f32 %v2927, %v2927
    %v3008 = vmul.f32 %v2928, %v2928
    %v3009 = vmul.f32 %v2929, %v2929
    %v3010 = vmul.f32 %v2930, %v2930
    %v3011 = vmul.f32 %v2931, %v2931
    %v3012 = vmul.f32 %v2932, %v2932
    %v3013 = vmul.f32 %v2933, %v2933
    %v3014 = vsub.f32 %v2982, %v2998
    %v3015 = vsub.f32 %v2983, %v2999
    %v3016 = vsub.f32 %v2984, %v3000
    %v3017 = vsub.f32 %v2985, %v3001
    %v3018 = vsub.f32 %v2986, %v3002
    %v3019 = vsub.f32 %v2987, %v3003
    %v3020 = vsub.f32 %v2988, %v3004
    %v3021 = vsub.f32 %v2989, %v3005
    %v3022 = vsub.f32 %v2990, %v3006
    %v3023 = vsub.f32 %v2991, %v3007
    %v3024 = vsub.f32 %v2992, %v3008
    %v3025 = vsub.f32 %v2993, %v3009
    %v3026 = vsub.f32 %v2994, %v3010
    %v3027 = vsub.f32 %v2995, %v3011
    %v3028 = vsub.f32 %v2996, %v3012
    %v3029 = vsub.f32 %v2997, %v3013
    %v3030 = vmax.f32 %v3014, 0.0
    %v3031 = vmax.f32 %v3015, 0.0
    %v3032 = vmax.f32 %v3016, 0.0
    %v3033 = vmax.f32 %v3017, 0.0
    %v3034 = vmax.f32 %v3018, 0.0
    %v3035 = vmax.f32 %v3019, 0.0
    %v3036 = vmax.f32 %v3020, 0.0
    %v3037 = vmax.f32 %v3021, 0.0
    %v3038 = vmax.f32 %v3022, 0.0
    %v3039 = vmax.f32 %v3023, 0.0
    %v3040 = vmax.f32 %v3024, 0.0
    %v3041 = vmax.f32 %v3025, 0.0
    %v3042 = vmax.f32 %v3026, 0.0
    %v3043 = vmax.f32 %v3027, 0.0
    %v3044 = vmax.f32 %v3028, 0.0
    %v3045 = vmax.f32 %v3029, 0.0
    %v3046 = vadd.f32 %v3030, 1e-05
    %v3047 = vadd.f32 %v3031, 1e-05
    %v3048 = vadd.f32 %v3032, 1e-05
    %v3049 = vadd.f32 %v3033, 1e-05
    %v3050 = vadd.f32 %v3034, 1e-05
    %v3051 = vadd.f32 %v3035, 1e-05
    %v3052 = vadd.f32 %v3036, 1e-05
    %v3053 = vadd.f32 %v3037, 1e-05
    %v3054 = vadd.f32 %v3038, 1e-05
    %v3055 = vadd.f32 %v3039, 1e-05
    %v3056 = vadd.f32 %v3040, 1e-05
    %v3057 = vadd.f32 %v3041, 1e-05
    %v3058 = vadd.f32 %v3042, 1e-05
    %v3059 = vadd.f32 %v3043, 1e-05
    %v3060 = vadd.f32 %v3044, 1e-05
    %v3061 = vadd.f32 %v3045, 1e-05
    %v3062 = vrsqrt.pop %v3046
    %v3063 = vmul.f32 %v3062, %v3046
    %v3064 = vmul.f32 %v3063, %v3062
    %v3065 = vmul.f32 0.5, %v3064
    %v3066 = vsub.f32 1.5, %v3065
    %v3067 = vmul.f32 %v3062, %v3066
    %vm3068 = vweird.f32 %v3046
    %vm3069 = vweird.f32 %v3062
    %vm3070 = vmor %vm3068, %vm3069
    %v3071 = vsel %vm3070, %v3062, %v3067
    %v3072 = vrsqrt.pop %v3047
    %v3073 = vmul.f32 %v3072, %v3047
    %v3074 = vmul.f32 %v3073, %v3072
    %v3075 = vmul.f32 0.5, %v3074
    %v3076 = vsub.f32 1.5, %v3075
    %v3077 = vmul.f32 %v3072, %v3076
    %vm3078 = vweird.f32 %v3047
    %vm3079 = vweird.f32 %v3072
    %vm3080 = vmor %vm3078, %vm3079
    %v3081 = vsel %vm3080, %v3072, %v3077
    %v3082 = vrsqrt.pop %v3048
    %v3083 = vmul.f32 %v3082, %v3048
    %v3084 = vmul.f32 %v3083, %v3082
    %v3085 = vmul.f32 0.5, %v3084
    %v3086 = vsub.f32 1.5, %v3085
    %v3087 = vmul.f32 %v3082, %v3086
    %vm3088 = vweird.f32 %v3048
    %vm3089 = vweird.f32 %v3082
    %vm3090 = vmor %vm3088, %vm3089
    %v3091 = vsel %vm3090, %v3082, %v3087
    %v3092 = vrsqrt.pop %v3049
    %v3093 = vmul.f32 %v3092, %v3049
    %v3094 = vmul.f32 %v3093, %v3092
    %v3095 = vmul.f32 0.5, %v3094
    %v3096 = vsub.f32 1.5, %v3095
    %v3097 = vmul.f32 %v3092, %v3096
    %vm3098 = vweird.f32 %v3049
    %vm3099 = vweird.f32 %v3092
    %vm3100 = vmor %vm3098, %vm3099
    %v3101 = vsel %vm3100, %v3092, %v3097
    %v3102 = vrsqrt.pop %v3050
    %v3103 = vmul.f32 %v3102, %v3050
    %v3104 = vmul.f32 %v3103, %v3102
    %v3105 = vmul.f32 0.5, %v3104
    %v3106 = vsub.f32 1.5, %v3105
    %v3107 = vmul.f32 %v3102, %v3106
    %vm3108 = vweird.f32 %v3050
    %vm3109 = vweird.f32 %v3102
    %vm3110 = vmor %vm3108, %vm3109
    %v3111 = vsel %vm3110, %v3102, %v3107
    %v3112 = vrsqrt.pop %v3051
    %v3113 = vmul.f32 %v3112, %v3051
    %v3114 = vmul.f32 %v3113, %v3112
    %v3115 = vmul.f32 0.5, %v3114
    %v3116 = vsub.f32 1.5, %v3115
    %v3117 = vmul.f32 %v3112, %v3116
    %vm3118 = vweird.f32 %v3051
    %vm3119 = vweird.f32 %v3112
    %vm3120 = vmor %vm3118, %vm3119
    %v3121 = vsel %vm3120, %v3112, %v3117
    %v3122 = vrsqrt.pop %v3052
    %v3123 = vmul.f32 %v3122, %v3052
    %v3124 = vmul.f32 %v3123, %v3122
    %v3125 = vmul.f32 0.5, %v3124
    %v3126 = vsub.f32 1.5, %v3125
    %v3127 = vmul.f32 %v3122, %v3126
    %vm3128 = vweird.f32 %v3052
    %vm3129 = vweird.f32 %v3122
    %vm3130 = vmor %vm3128, %vm3129
    %v3131 = vsel %vm3130, %v3122, %v3127
    %v3132 = vrsqrt.pop %v3053
    %v3133 = vmul.f32 %v3132, %v3053
    %v3134 = vmul.f32 %v3133, %v3132
    %v3135 = vmul.f32 0.5, %v3134
    %v3136 = vsub.f32 1.5, %v3135
    %v3137 = vmul.f32 %v3132, %v3136
    %vm3138 = vweird.f32 %v3053
    %vm3139 = vweird.f32 %v3132
    %vm3140 = vmor %vm3138, %vm3139
    %v3141 = vsel %vm3140, %v3132, %v3137
    %v3142 = vrsqrt.pop %v3054
    %v3143 = vmul.f32 %v3142, %v3054
    %v3144 = vmul.f32 %v3143, %v3142
    %v3145 = vmul.f32 0.5, %v3144
    %v3146 = vsub.f32 1.5, %v3145
    %v3147 = vmul.f32 %v3142, %v3146
    %vm3148 = vweird.f32 %v3054
    %vm3149 = vweird.f32 %v3142
    %vm3150 = vmor %vm3148, %vm3149
    %v3151 = vsel %vm3150, %v3142, %v3147
    %v3152 = vrsqrt.pop %v3055
    %v3153 = vmul.f32 %v3152, %v3055
    %v3154 = vmul.f32 %v3153, %v3152
    %v3155 = vmul.f32 0.5, %v3154
    %v3156 = vsub.f32 1.5, %v3155
    %v3157 = vmul.f32 %v3152, %v3156
    %vm3158 = vweird.f32 %v3055
    %vm3159 = vweird.f32 %v3152
    %vm3160 = vmor %vm3158, %vm3159
    %v3161 = vsel %vm3160, %v3152, %v3157
    %v3162 = vrsqrt.pop %v3056
    %v3163 = vmul.f32 %v3162, %v3056
    %v3164 = vmul.f32 %v3163, %v3162
    %v3165 = vmul.f32 0.5, %v3164
    %v3166 = vsub.f32 1.5, %v3165
    %v3167 = vmul.f32 %v3162, %v3166
    %vm3168 = vweird.f32 %v3056
    %vm3169 = vweird.f32 %v3162
    %vm3170 = vmor %vm3168, %vm3169
    %v3171 = vsel %vm3170, %v3162, %v3167
    %v3172 = vrsqrt.pop %v3057
    %v3173 = vmul.f32 %v3172, %v3057
    %v3174 = vmul.f32 %v3173, %v3172
    %v3175 = vmul.f32 0.5, %v3174
    %v3176 = vsub.f32 1.5, %v3175
    %v3177 = vmul.f32 %v3172, %v3176
    %vm3178 = vweird.f32 %v3057
    %vm3179 = vweird.f32 %v3172
    %vm3180 = vmor %vm3178, %vm3179
    %v3181 = vsel %vm3180, %v3172, %v3177
    %v3182 = vrsqrt.pop %v3058
    %v3183 = vmul.f32 %v3182, %v3058
    %v3184 = vmul.f32 %v3183, %v3182
    %v3185 = vmul.f32 0.5, %v3184
    %v3186 = vsub.f32 1.5, %v3185
    %v3187 = vmul.f32 %v3182, %v3186
    %vm3188 = vweird.f32 %v3058
    %vm3189 = vweird.f32 %v3182
    %vm3190 = vmor %vm3188, %vm3189
    %v3191 = vsel %vm3190, %v3182, %v3187
    %v3192 = vrsqrt.pop %v3059
    %v3193 = vmul.f32 %v3192, %v3059
    %v3194 = vmul.f32 %v3193, %v3192
    %v3195 = vmul.f32 0.5, %v3194
    %v3196 = vsub.f32 1.5, %v3195
    %v3197 = vmul.f32 %v3192, %v3196
    %vm3198 = vweird.f32 %v3059
    %vm3199 = vweird.f32 %v3192
    %vm3200 = vmor %vm3198, %vm3199
    %v3201 = vsel %vm3200, %v3192, %v3197
    %v3202 = vrsqrt.pop %v3060
    %v3203 = vmul.f32 %v3202, %v3060
    %v3204 = vmul.f32 %v3203, %v3202
    %v3205 = vmul.f32 0.5, %v3204
    %v3206 = vsub.f32 1.5, %v3205
    %v3207 = vmul.f32 %v3202, %v3206
    %vm3208 = vweird.f32 %v3060
    %vm3209 = vweird.f32 %v3202
    %vm3210 = vmor %vm3208, %vm3209
    %v3211 = vsel %vm3210, %v3202, %v3207
    %v3212 = vrsqrt.pop %v3061
    %v3213 = vmul.f32 %v3212, %v3061
    %v3214 = vmul.f32 %v3213, %v3212
    %v3215 = vmul.f32 0.5, %v3214
    %v3216 = vsub.f32 1.5, %v3215
    %v3217 = vmul.f32 %v3212, %v3216
    %vm3218 = vweird.f32 %v3061
    %vm3219 = vweird.f32 %v3212
    %vm3220 = vmor %vm3218, %vm3219
    %v3221 = vsel %vm3220, %v3212, %v3217
    %v3222 = vsub.f32 %v2870, %v2918
    %v3223 = vsub.f32 %v2871, %v2919
    %v3224 = vsub.f32 %v2872, %v2920
    %v3225 = vsub.f32 %v2873, %v2921
    %v3226 = vsub.f32 %v2874, %v2922
    %v3227 = vsub.f32 %v2875, %v2923
    %v3228 = vsub.f32 %v2876, %v2924
    %v3229 = vsub.f32 %v2877, %v2925
    %v3230 = vsub.f32 %v2878, %v2926
    %v3231 = vsub.f32 %v2879, %v2927
    %v3232 = vsub.f32 %v2880, %v2928
    %v3233 = vsub.f32 %v2881, %v2929
    %v3234 = vsub.f32 %v2882, %v2930
    %v3235 = vsub.f32 %v2883, %v2931
    %v3236 = vsub.f32 %v2884, %v2932
    %v3237 = vsub.f32 %v2885, %v2933
    %v3238 = vmul.f32 %v3222, %v3071
    %v3239 = vmul.f32 %v3223, %v3081
    %v3240 = vmul.f32 %v3224, %v3091
    %v3241 = vmul.f32 %v3225, %v3101
    %v3242 = vmul.f32 %v3226, %v3111
    %v3243 = vmul.f32 %v3227, %v3121
    %v3244 = vmul.f32 %v3228, %v3131
    %v3245 = vmul.f32 %v3229, %v3141
    %v3246 = vmul.f32 %v3230, %v3151
    %v3247 = vmul.f32 %v3231, %v3161
    %v3248 = vmul.f32 %v3232, %v3171
    %v3249 = vmul.f32 %v3233, %v3181
    %v3250 = vmul.f32 %v3234, %v3191
    %v3251 = vmul.f32 %v3235, %v3201
    %v3252 = vmul.f32 %v3236, %v3211
    %v3253 = vmul.f32 %v3237, %v3221
    %v3254 = vld [vmem:[%s12] sm:$0x1]
    %v3256 = vperm.slane %v3254, 0
    %v3258 = vmul.f32 %v3238, %v3256
    %v3259 = vmul.f32 %v3239, %v3256
    %v3260 = vmul.f32 %v3240, %v3256
    %v3261 = vmul.f32 %v3241, %v3256
    %v3262 = vmul.f32 %v3242, %v3256
    %v3263 = vmul.f32 %v3243, %v3256
    %v3264 = vmul.f32 %v3244, %v3256
    %v3265 = vmul.f32 %v3245, %v3256
    %v3266 = vmul.f32 %v3246, %v3256
    %v3267 = vmul.f32 %v3247, %v3256
    %v3268 = vmul.f32 %v3248, %v3256
    %v3269 = vmul.f32 %v3249, %v3256
    %v3270 = vmul.f32 %v3250, %v3256
    %v3271 = vmul.f32 %v3251, %v3256
    %v3272 = vmul.f32 %v3252, %v3256
    %v3273 = vmul.f32 %v3253, %v3256
    %v3274 = vld [vmem:[%s13] sm:$0x1]
    %v3276 = vperm.slane %v3274, 0
    %v3278 = vadd.f32 %v3258, %v3276
    %v3279 = vadd.f32 %v3259, %v3276
    %v3280 = vadd.f32 %v3260, %v3276
    %v3281 = vadd.f32 %v3261, %v3276
    %v3282 = vadd.f32 %v3262, %v3276
    %v3283 = vadd.f32 %v3263, %v3276
    %v3284 = vadd.f32 %v3264, %v3276
    %v3285 = vadd.f32 %v3265, %v3276
    %v3286 = vadd.f32 %v3266, %v3276
    %v3287 = vadd.f32 %v3267, %v3276
    %v3288 = vadd.f32 %v3268, %v3276
    %v3289 = vadd.f32 %v3269, %v3276
    %v3290 = vadd.f32 %v3270, %v3276
    %v3291 = vadd.f32 %v3271, %v3276
    %v3292 = vadd.f32 %v3272, %v3276
    %v3293 = vadd.f32 %v3273, %v3276
    %v3294 = vpack.c.bf16 %v3279, %v3278
    %v3295 = vpack.c.bf16 %v3281, %v3280
    %v3296 = vpack.c.bf16 %v3283, %v3282
    %v3297 = vpack.c.bf16 %v3285, %v3284
    %v3298 = vpack.c.bf16 %v3287, %v3286
    %v3299 = vpack.c.bf16 %v3289, %v3288
    %v3300 = vpack.c.bf16 %v3291, %v3290
    %v3301 = vpack.c.bf16 %v3293, %v3292
    %v3302 = vld [vmem:[%s14] sm:$0xf]
    %v3303 = vld [vmem:[%s14 + $0x4] sm:$0xf]
    %v3304 = vld [vmem:[%s14 + $0x8] sm:$0xf]
    %v3305 = vld [vmem:[%s14 + $0xc] sm:$0xf]
    %v3306 = vld [vmem:[%s14 + $0x10] sm:$0xf]
    %v3307 = vld [vmem:[%s14 + $0x14] sm:$0xf]
    %v3308 = vld [vmem:[%s14 + $0x18] sm:$0xf]
    %v3309 = vld [vmem:[%s14 + $0x1c] sm:$0xf]
    %v3310 = vld [vmem:[%s14 + $0x20] sm:$0xf]
    %v3311 = vld [vmem:[%s14 + $0x24] sm:$0xf]
    %v3312 = vld [vmem:[%s14 + $0x28] sm:$0xf]
    %v3313 = vld [vmem:[%s14 + $0x2c] sm:$0xf]
    %v3314 = vld [vmem:[%s14 + $0x30] sm:$0xf]
    %v3315 = vld [vmem:[%s14 + $0x34] sm:$0xf]
    %v3316 = vld [vmem:[%s14 + $0x38] sm:$0xf]
    %v3317 = vld [vmem:[%s14 + $0x3c] sm:$0xf]
    %v3318 = vld [vmem:[%s15] sm:$0x1]
    %v3320 = vperm.slane %v3318, 0
    %v3338 = vunpack.c.l.b16 %v3302
    %v3339 = vunpack.c.l.b16 %v3303
    %v3340 = vunpack.c.l.b16 %v3304
    %v3341 = vunpack.c.l.b16 %v3305
    %v3342 = vunpack.c.l.b16 %v3306
    %v3343 = vunpack.c.l.b16 %v3307
    %v3344 = vunpack.c.l.b16 %v3308
    %v3345 = vunpack.c.l.b16 %v3309
    %v3346 = vunpack.c.l.b16 %v3310
    %v3347 = vunpack.c.l.b16 %v3311
    %v3348 = vunpack.c.l.b16 %v3312
    %v3349 = vunpack.c.l.b16 %v3313
    %v3350 = vunpack.c.l.b16 %v3314
    %v3351 = vunpack.c.l.b16 %v3315
    %v3352 = vunpack.c.l.b16 %v3316
    %v3353 = vunpack.c.l.b16 %v3317
    %v3354 = vpack.c.b16 %v3339, %v3338
    %v3355 = vpack.c.b16 %v3341, %v3340
    %v3356 = vpack.c.b16 %v3343, %v3342
    %v3357 = vpack.c.b16 %v3345, %v3344
    %v3358 = vpack.c.b16 %v3347, %v3346
    %v3359 = vpack.c.b16 %v3349, %v3348
    %v3360 = vpack.c.b16 %v3351, %v3350
    %v3361 = vpack.c.b16 %v3353, %v3352
    %3370 = vmatpush.bf16.msra.mxu0 %v3361
    %3371 = vmatpush.bf16.msra.mxu0 %v3360
    %3372 = vmatpush.bf16.msra.mxu0 %v3359
    %3373 = vmatpush.bf16.msra.mxu0 %v3358
    %3374 = vmatpush.bf16.msra.mxu0 %v3357
    %3375 = vmatpush.bf16.msra.mxu0 %v3356
    %3376 = vmatpush.bf16.msra.mxu0 %v3355
    %3377 = vmatpush.bf16.msra.mxu0 %v3354
    %3378 = vmatmul.bf16.gmra.mxu0 %v3294
    %v3379 = vpop.f32.mrf.mxu0
    %v3380 = vadd.f32 %v3320, %v3379
    %v3381 = vpop.f32.mrf.mxu0
    %v3382 = vadd.f32 %v3320, %v3381
    %3383 = vmatmul.bf16.gmra.mxu0 %v3295
    %v3384 = vpop.f32.mrf.mxu0
    %v3385 = vadd.f32 %v3320, %v3384
    %v3386 = vpop.f32.mrf.mxu0
    %v3387 = vadd.f32 %v3320, %v3386
    %3388 = vmatmul.bf16.gmra.mxu0 %v3296
    %v3389 = vpop.f32.mrf.mxu0
    %v3390 = vadd.f32 %v3320, %v3389
    %v3391 = vpop.f32.mrf.mxu0
    %v3392 = vadd.f32 %v3320, %v3391
    %3393 = vmatmul.bf16.gmra.mxu0 %v3297
    %v3394 = vpop.f32.mrf.mxu0
    %v3395 = vadd.f32 %v3320, %v3394
    %v3396 = vpop.f32.mrf.mxu0
    %v3397 = vadd.f32 %v3320, %v3396
    %3398 = vmatmul.bf16.gmra.mxu0 %v3298
    %v3399 = vpop.f32.mrf.mxu0
    %v3400 = vadd.f32 %v3320, %v3399
    %v3401 = vpop.f32.mrf.mxu0
    %v3402 = vadd.f32 %v3320, %v3401
    %3403 = vmatmul.bf16.gmra.mxu0 %v3299
    %v3404 = vpop.f32.mrf.mxu0
    %v3405 = vadd.f32 %v3320, %v3404
    %v3406 = vpop.f32.mrf.mxu0
    %v3407 = vadd.f32 %v3320, %v3406
    %3408 = vmatmul.bf16.gmra.mxu0 %v3300
    %v3409 = vpop.f32.mrf.mxu0
    %v3410 = vadd.f32 %v3320, %v3409
    %v3411 = vpop.f32.mrf.mxu0
    %v3412 = vadd.f32 %v3320, %v3411
    %3413 = vmatmul.bf16.gmra.mxu0 %v3301
    %v3414 = vpop.f32.mrf.mxu0
    %v3415 = vadd.f32 %v3320, %v3414
    %v3416 = vpop.f32.mrf.mxu0
    %v3417 = vadd.f32 %v3320, %v3416
    %3418 = vdwg.mxu0
    %v3419 = vmax.f32 %v3380, 0.0
    %v3420 = vmax.f32 %v3382, 0.0
    %v3421 = vmax.f32 %v3385, 0.0
    %v3422 = vmax.f32 %v3387, 0.0
    %v3423 = vmax.f32 %v3390, 0.0
    %v3424 = vmax.f32 %v3392, 0.0
    %v3425 = vmax.f32 %v3395, 0.0
    %v3426 = vmax.f32 %v3397, 0.0
    %v3427 = vmax.f32 %v3400, 0.0
    %v3428 = vmax.f32 %v3402, 0.0
    %v3429 = vmax.f32 %v3405, 0.0
    %v3430 = vmax.f32 %v3407, 0.0
    %v3431 = vmax.f32 %v3410, 0.0
    %v3432 = vmax.f32 %v3412, 0.0
    %v3433 = vmax.f32 %v3415, 0.0
    %v3434 = vmax.f32 %v3417, 0.0
    %vm3435 = vcmask 523264
    %v3436 = vsel %vm3435, %v3419, 0.0
    %3437 = vadd.xlane.f32.xlu0 %v3436
    %v3438 = vpop.xlane.xlu0 %3437
    %v3439 = vsel %vm3435, %v3420, 0.0
    %3440 = vadd.xlane.f32.xlu0 %v3439
    %v3441 = vpop.xlane.xlu0 %3440
    %v3442 = vsel %vm3435, %v3421, 0.0
    %3443 = vadd.xlane.f32.xlu0 %v3442
    %v3444 = vpop.xlane.xlu0 %3443
    %v3445 = vsel %vm3435, %v3422, 0.0
    %3446 = vadd.xlane.f32.xlu0 %v3445
    %v3447 = vpop.xlane.xlu0 %3446
    %v3448 = vsel %vm3435, %v3423, 0.0
    %3449 = vadd.xlane.f32.xlu0 %v3448
    %v3450 = vpop.xlane.xlu0 %3449
    %v3451 = vsel %vm3435, %v3424, 0.0
    %3452 = vadd.xlane.f32.xlu0 %v3451
    %v3453 = vpop.xlane.xlu0 %3452
    %v3454 = vsel %vm3435, %v3425, 0.0
    %3455 = vadd.xlane.f32.xlu0 %v3454
    %v3456 = vpop.xlane.xlu0 %3455
    %v3457 = vsel %vm3435, %v3426, 0.0
    %3458 = vadd.xlane.f32.xlu0 %v3457
    %v3459 = vpop.xlane.xlu0 %3458
    %v3460 = vsel %vm3435, %v3427, 0.0
    %3461 = vadd.xlane.f32.xlu0 %v3460
    %v3462 = vpop.xlane.xlu0 %3461
    %v3463 = vsel %vm3435, %v3428, 0.0
    %3464 = vadd.xlane.f32.xlu0 %v3463
    %v3465 = vpop.xlane.xlu0 %3464
    %v3466 = vsel %vm3435, %v3429, 0.0
    %3467 = vadd.xlane.f32.xlu0 %v3466
    %v3468 = vpop.xlane.xlu0 %3467
    %v3469 = vsel %vm3435, %v3430, 0.0
    %3470 = vadd.xlane.f32.xlu0 %v3469
    %v3471 = vpop.xlane.xlu0 %3470
    %v3472 = vsel %vm3435, %v3431, 0.0
    %3473 = vadd.xlane.f32.xlu0 %v3472
    %v3474 = vpop.xlane.xlu0 %3473
    %v3475 = vsel %vm3435, %v3432, 0.0
    %3476 = vadd.xlane.f32.xlu0 %v3475
    %v3477 = vpop.xlane.xlu0 %3476
    %v3478 = vsel %vm3435, %v3433, 0.0
    %3479 = vadd.xlane.f32.xlu0 %v3478
    %v3480 = vpop.xlane.xlu0 %3479
    %v3481 = vsel %vm3435, %v3434, 0.0
    %3482 = vadd.xlane.f32.xlu0 %v3481
    %v3483 = vpop.xlane.xlu0 %3482
    %v3484 = vmul.f32 %v3438, 0.015625
    %v3485 = vmul.f32 %v3441, 0.015625
    %v3486 = vmul.f32 %v3444, 0.015625
    %v3487 = vmul.f32 %v3447, 0.015625
    %v3488 = vmul.f32 %v3450, 0.015625
    %v3489 = vmul.f32 %v3453, 0.015625
    %v3490 = vmul.f32 %v3456, 0.015625
    %v3491 = vmul.f32 %v3459, 0.015625
    %v3492 = vmul.f32 %v3462, 0.015625
    %v3493 = vmul.f32 %v3465, 0.015625
    %v3494 = vmul.f32 %v3468, 0.015625
    %v3495 = vmul.f32 %v3471, 0.015625
    %v3496 = vmul.f32 %v3474, 0.015625
    %v3497 = vmul.f32 %v3477, 0.015625
    %v3498 = vmul.f32 %v3480, 0.015625
    %v3499 = vmul.f32 %v3483, 0.015625
    %v3500 = vmul.f32 %v3419, %v3419
    %v3501 = vmul.f32 %v3420, %v3420
    %v3502 = vmul.f32 %v3421, %v3421
    %v3503 = vmul.f32 %v3422, %v3422
    %v3504 = vmul.f32 %v3423, %v3423
    %v3505 = vmul.f32 %v3424, %v3424
    %v3506 = vmul.f32 %v3425, %v3425
    %v3507 = vmul.f32 %v3426, %v3426
    %v3508 = vmul.f32 %v3427, %v3427
    %v3509 = vmul.f32 %v3428, %v3428
    %v3510 = vmul.f32 %v3429, %v3429
    %v3511 = vmul.f32 %v3430, %v3430
    %v3512 = vmul.f32 %v3431, %v3431
    %v3513 = vmul.f32 %v3432, %v3432
    %v3514 = vmul.f32 %v3433, %v3433
    %v3515 = vmul.f32 %v3434, %v3434
    %v3516 = vsel %vm3435, %v3500, 0.0
    %3517 = vadd.xlane.f32.xlu0 %v3516
    %v3518 = vpop.xlane.xlu0 %3517
    %v3519 = vsel %vm3435, %v3501, 0.0
    %3520 = vadd.xlane.f32.xlu0 %v3519
    %v3521 = vpop.xlane.xlu0 %3520
    %v3522 = vsel %vm3435, %v3502, 0.0
    %3523 = vadd.xlane.f32.xlu0 %v3522
    %v3524 = vpop.xlane.xlu0 %3523
    %v3525 = vsel %vm3435, %v3503, 0.0
    %3526 = vadd.xlane.f32.xlu0 %v3525
    %v3527 = vpop.xlane.xlu0 %3526
    %v3528 = vsel %vm3435, %v3504, 0.0
    %3529 = vadd.xlane.f32.xlu0 %v3528
    %v3530 = vpop.xlane.xlu0 %3529
    %v3531 = vsel %vm3435, %v3505, 0.0
    %3532 = vadd.xlane.f32.xlu0 %v3531
    %v3533 = vpop.xlane.xlu0 %3532
    %v3534 = vsel %vm3435, %v3506, 0.0
    %3535 = vadd.xlane.f32.xlu0 %v3534
    %v3536 = vpop.xlane.xlu0 %3535
    %v3537 = vsel %vm3435, %v3507, 0.0
    %3538 = vadd.xlane.f32.xlu0 %v3537
    %v3539 = vpop.xlane.xlu0 %3538
    %v3540 = vsel %vm3435, %v3508, 0.0
    %3541 = vadd.xlane.f32.xlu0 %v3540
    %v3542 = vpop.xlane.xlu0 %3541
    %v3543 = vsel %vm3435, %v3509, 0.0
    %3544 = vadd.xlane.f32.xlu0 %v3543
    %v3545 = vpop.xlane.xlu0 %3544
    %v3546 = vsel %vm3435, %v3510, 0.0
    %3547 = vadd.xlane.f32.xlu0 %v3546
    %v3548 = vpop.xlane.xlu0 %3547
    %v3549 = vsel %vm3435, %v3511, 0.0
    %3550 = vadd.xlane.f32.xlu0 %v3549
    %v3551 = vpop.xlane.xlu0 %3550
    %v3552 = vsel %vm3435, %v3512, 0.0
    %3553 = vadd.xlane.f32.xlu0 %v3552
    %v3554 = vpop.xlane.xlu0 %3553
    %v3555 = vsel %vm3435, %v3513, 0.0
    %3556 = vadd.xlane.f32.xlu0 %v3555
    %v3557 = vpop.xlane.xlu0 %3556
    %v3558 = vsel %vm3435, %v3514, 0.0
    %3559 = vadd.xlane.f32.xlu0 %v3558
    %v3560 = vpop.xlane.xlu0 %3559
    %v3561 = vsel %vm3435, %v3515, 0.0
    %3562 = vadd.xlane.f32.xlu0 %v3561
    %v3563 = vpop.xlane.xlu0 %3562
    %v3564 = vmul.f32 %v3518, 0.015625
    %v3565 = vmul.f32 %v3521, 0.015625
    %v3566 = vmul.f32 %v3524, 0.015625
    %v3567 = vmul.f32 %v3527, 0.015625
    %v3568 = vmul.f32 %v3530, 0.015625
    %v3569 = vmul.f32 %v3533, 0.015625
    %v3570 = vmul.f32 %v3536, 0.015625
    %v3571 = vmul.f32 %v3539, 0.015625
    %v3572 = vmul.f32 %v3542, 0.015625
    %v3573 = vmul.f32 %v3545, 0.015625
    %v3574 = vmul.f32 %v3548, 0.015625
    %v3575 = vmul.f32 %v3551, 0.015625
    %v3576 = vmul.f32 %v3554, 0.015625
    %v3577 = vmul.f32 %v3557, 0.015625
    %v3578 = vmul.f32 %v3560, 0.015625
    %v3579 = vmul.f32 %v3563, 0.015625
    %v3580 = vmul.f32 %v3484, %v3484
    %v3581 = vmul.f32 %v3485, %v3485
    %v3582 = vmul.f32 %v3486, %v3486
    %v3583 = vmul.f32 %v3487, %v3487
    %v3584 = vmul.f32 %v3488, %v3488
    %v3585 = vmul.f32 %v3489, %v3489
    %v3586 = vmul.f32 %v3490, %v3490
    %v3587 = vmul.f32 %v3491, %v3491
    %v3588 = vmul.f32 %v3492, %v3492
    %v3589 = vmul.f32 %v3493, %v3493
    %v3590 = vmul.f32 %v3494, %v3494
    %v3591 = vmul.f32 %v3495, %v3495
    %v3592 = vmul.f32 %v3496, %v3496
    %v3593 = vmul.f32 %v3497, %v3497
    %v3594 = vmul.f32 %v3498, %v3498
    %v3595 = vmul.f32 %v3499, %v3499
    %v3596 = vsub.f32 %v3564, %v3580
    %v3597 = vsub.f32 %v3565, %v3581
    %v3598 = vsub.f32 %v3566, %v3582
    %v3599 = vsub.f32 %v3567, %v3583
    %v3600 = vsub.f32 %v3568, %v3584
    %v3601 = vsub.f32 %v3569, %v3585
    %v3602 = vsub.f32 %v3570, %v3586
    %v3603 = vsub.f32 %v3571, %v3587
    %v3604 = vsub.f32 %v3572, %v3588
    %v3605 = vsub.f32 %v3573, %v3589
    %v3606 = vsub.f32 %v3574, %v3590
    %v3607 = vsub.f32 %v3575, %v3591
    %v3608 = vsub.f32 %v3576, %v3592
    %v3609 = vsub.f32 %v3577, %v3593
    %v3610 = vsub.f32 %v3578, %v3594
    %v3611 = vsub.f32 %v3579, %v3595
    %v3612 = vmax.f32 %v3596, 0.0
    %v3613 = vmax.f32 %v3597, 0.0
    %v3614 = vmax.f32 %v3598, 0.0
    %v3615 = vmax.f32 %v3599, 0.0
    %v3616 = vmax.f32 %v3600, 0.0
    %v3617 = vmax.f32 %v3601, 0.0
    %v3618 = vmax.f32 %v3602, 0.0
    %v3619 = vmax.f32 %v3603, 0.0
    %v3620 = vmax.f32 %v3604, 0.0
    %v3621 = vmax.f32 %v3605, 0.0
    %v3622 = vmax.f32 %v3606, 0.0
    %v3623 = vmax.f32 %v3607, 0.0
    %v3624 = vmax.f32 %v3608, 0.0
    %v3625 = vmax.f32 %v3609, 0.0
    %v3626 = vmax.f32 %v3610, 0.0
    %v3627 = vmax.f32 %v3611, 0.0
    %v3628 = vadd.f32 %v3612, 1e-05
    %v3629 = vadd.f32 %v3613, 1e-05
    %v3630 = vadd.f32 %v3614, 1e-05
    %v3631 = vadd.f32 %v3615, 1e-05
    %v3632 = vadd.f32 %v3616, 1e-05
    %v3633 = vadd.f32 %v3617, 1e-05
    %v3634 = vadd.f32 %v3618, 1e-05
    %v3635 = vadd.f32 %v3619, 1e-05
    %v3636 = vadd.f32 %v3620, 1e-05
    %v3637 = vadd.f32 %v3621, 1e-05
    %v3638 = vadd.f32 %v3622, 1e-05
    %v3639 = vadd.f32 %v3623, 1e-05
    %v3640 = vadd.f32 %v3624, 1e-05
    %v3641 = vadd.f32 %v3625, 1e-05
    %v3642 = vadd.f32 %v3626, 1e-05
    %v3643 = vadd.f32 %v3627, 1e-05
    %v3644 = vrsqrt.pop %v3628
    %v3645 = vmul.f32 %v3644, %v3628
    %v3646 = vmul.f32 %v3645, %v3644
    %v3647 = vmul.f32 0.5, %v3646
    %v3648 = vsub.f32 1.5, %v3647
    %v3649 = vmul.f32 %v3644, %v3648
    %vm3650 = vweird.f32 %v3628
    %vm3651 = vweird.f32 %v3644
    %vm3652 = vmor %vm3650, %vm3651
    %v3653 = vsel %vm3652, %v3644, %v3649
    %v3654 = vrsqrt.pop %v3629
    %v3655 = vmul.f32 %v3654, %v3629
    %v3656 = vmul.f32 %v3655, %v3654
    %v3657 = vmul.f32 0.5, %v3656
    %v3658 = vsub.f32 1.5, %v3657
    %v3659 = vmul.f32 %v3654, %v3658
    %vm3660 = vweird.f32 %v3629
    %vm3661 = vweird.f32 %v3654
    %vm3662 = vmor %vm3660, %vm3661
    %v3663 = vsel %vm3662, %v3654, %v3659
    %v3664 = vrsqrt.pop %v3630
    %v3665 = vmul.f32 %v3664, %v3630
    %v3666 = vmul.f32 %v3665, %v3664
    %v3667 = vmul.f32 0.5, %v3666
    %v3668 = vsub.f32 1.5, %v3667
    %v3669 = vmul.f32 %v3664, %v3668
    %vm3670 = vweird.f32 %v3630
    %vm3671 = vweird.f32 %v3664
    %vm3672 = vmor %vm3670, %vm3671
    %v3673 = vsel %vm3672, %v3664, %v3669
    %v3674 = vrsqrt.pop %v3631
    %v3675 = vmul.f32 %v3674, %v3631
    %v3676 = vmul.f32 %v3675, %v3674
    %v3677 = vmul.f32 0.5, %v3676
    %v3678 = vsub.f32 1.5, %v3677
    %v3679 = vmul.f32 %v3674, %v3678
    %vm3680 = vweird.f32 %v3631
    %vm3681 = vweird.f32 %v3674
    %vm3682 = vmor %vm3680, %vm3681
    %v3683 = vsel %vm3682, %v3674, %v3679
    %v3684 = vrsqrt.pop %v3632
    %v3685 = vmul.f32 %v3684, %v3632
    %v3686 = vmul.f32 %v3685, %v3684
    %v3687 = vmul.f32 0.5, %v3686
    %v3688 = vsub.f32 1.5, %v3687
    %v3689 = vmul.f32 %v3684, %v3688
    %vm3690 = vweird.f32 %v3632
    %vm3691 = vweird.f32 %v3684
    %vm3692 = vmor %vm3690, %vm3691
    %v3693 = vsel %vm3692, %v3684, %v3689
    %v3694 = vrsqrt.pop %v3633
    %v3695 = vmul.f32 %v3694, %v3633
    %v3696 = vmul.f32 %v3695, %v3694
    %v3697 = vmul.f32 0.5, %v3696
    %v3698 = vsub.f32 1.5, %v3697
    %v3699 = vmul.f32 %v3694, %v3698
    %vm3700 = vweird.f32 %v3633
    %vm3701 = vweird.f32 %v3694
    %vm3702 = vmor %vm3700, %vm3701
    %v3703 = vsel %vm3702, %v3694, %v3699
    %v3704 = vrsqrt.pop %v3634
    %v3705 = vmul.f32 %v3704, %v3634
    %v3706 = vmul.f32 %v3705, %v3704
    %v3707 = vmul.f32 0.5, %v3706
    %v3708 = vsub.f32 1.5, %v3707
    %v3709 = vmul.f32 %v3704, %v3708
    %vm3710 = vweird.f32 %v3634
    %vm3711 = vweird.f32 %v3704
    %vm3712 = vmor %vm3710, %vm3711
    %v3713 = vsel %vm3712, %v3704, %v3709
    %v3714 = vrsqrt.pop %v3635
    %v3715 = vmul.f32 %v3714, %v3635
    %v3716 = vmul.f32 %v3715, %v3714
    %v3717 = vmul.f32 0.5, %v3716
    %v3718 = vsub.f32 1.5, %v3717
    %v3719 = vmul.f32 %v3714, %v3718
    %vm3720 = vweird.f32 %v3635
    %vm3721 = vweird.f32 %v3714
    %vm3722 = vmor %vm3720, %vm3721
    %v3723 = vsel %vm3722, %v3714, %v3719
    %v3724 = vrsqrt.pop %v3636
    %v3725 = vmul.f32 %v3724, %v3636
    %v3726 = vmul.f32 %v3725, %v3724
    %v3727 = vmul.f32 0.5, %v3726
    %v3728 = vsub.f32 1.5, %v3727
    %v3729 = vmul.f32 %v3724, %v3728
    %vm3730 = vweird.f32 %v3636
    %vm3731 = vweird.f32 %v3724
    %vm3732 = vmor %vm3730, %vm3731
    %v3733 = vsel %vm3732, %v3724, %v3729
    %v3734 = vrsqrt.pop %v3637
    %v3735 = vmul.f32 %v3734, %v3637
    %v3736 = vmul.f32 %v3735, %v3734
    %v3737 = vmul.f32 0.5, %v3736
    %v3738 = vsub.f32 1.5, %v3737
    %v3739 = vmul.f32 %v3734, %v3738
    %vm3740 = vweird.f32 %v3637
    %vm3741 = vweird.f32 %v3734
    %vm3742 = vmor %vm3740, %vm3741
    %v3743 = vsel %vm3742, %v3734, %v3739
    %v3744 = vrsqrt.pop %v3638
    %v3745 = vmul.f32 %v3744, %v3638
    %v3746 = vmul.f32 %v3745, %v3744
    %v3747 = vmul.f32 0.5, %v3746
    %v3748 = vsub.f32 1.5, %v3747
    %v3749 = vmul.f32 %v3744, %v3748
    %vm3750 = vweird.f32 %v3638
    %vm3751 = vweird.f32 %v3744
    %vm3752 = vmor %vm3750, %vm3751
    %v3753 = vsel %vm3752, %v3744, %v3749
    %v3754 = vrsqrt.pop %v3639
    %v3755 = vmul.f32 %v3754, %v3639
    %v3756 = vmul.f32 %v3755, %v3754
    %v3757 = vmul.f32 0.5, %v3756
    %v3758 = vsub.f32 1.5, %v3757
    %v3759 = vmul.f32 %v3754, %v3758
    %vm3760 = vweird.f32 %v3639
    %vm3761 = vweird.f32 %v3754
    %vm3762 = vmor %vm3760, %vm3761
    %v3763 = vsel %vm3762, %v3754, %v3759
    %v3764 = vrsqrt.pop %v3640
    %v3765 = vmul.f32 %v3764, %v3640
    %v3766 = vmul.f32 %v3765, %v3764
    %v3767 = vmul.f32 0.5, %v3766
    %v3768 = vsub.f32 1.5, %v3767
    %v3769 = vmul.f32 %v3764, %v3768
    %vm3770 = vweird.f32 %v3640
    %vm3771 = vweird.f32 %v3764
    %vm3772 = vmor %vm3770, %vm3771
    %v3773 = vsel %vm3772, %v3764, %v3769
    %v3774 = vrsqrt.pop %v3641
    %v3775 = vmul.f32 %v3774, %v3641
    %v3776 = vmul.f32 %v3775, %v3774
    %v3777 = vmul.f32 0.5, %v3776
    %v3778 = vsub.f32 1.5, %v3777
    %v3779 = vmul.f32 %v3774, %v3778
    %vm3780 = vweird.f32 %v3641
    %vm3781 = vweird.f32 %v3774
    %vm3782 = vmor %vm3780, %vm3781
    %v3783 = vsel %vm3782, %v3774, %v3779
    %v3784 = vrsqrt.pop %v3642
    %v3785 = vmul.f32 %v3784, %v3642
    %v3786 = vmul.f32 %v3785, %v3784
    %v3787 = vmul.f32 0.5, %v3786
    %v3788 = vsub.f32 1.5, %v3787
    %v3789 = vmul.f32 %v3784, %v3788
    %vm3790 = vweird.f32 %v3642
    %vm3791 = vweird.f32 %v3784
    %vm3792 = vmor %vm3790, %vm3791
    %v3793 = vsel %vm3792, %v3784, %v3789
    %v3794 = vrsqrt.pop %v3643
    %v3795 = vmul.f32 %v3794, %v3643
    %v3796 = vmul.f32 %v3795, %v3794
    %v3797 = vmul.f32 0.5, %v3796
    %v3798 = vsub.f32 1.5, %v3797
    %v3799 = vmul.f32 %v3794, %v3798
    %vm3800 = vweird.f32 %v3643
    %vm3801 = vweird.f32 %v3794
    %vm3802 = vmor %vm3800, %vm3801
    %v3803 = vsel %vm3802, %v3794, %v3799
    %v3804 = vsub.f32 %v3419, %v3484
    %v3805 = vsub.f32 %v3420, %v3485
    %v3806 = vsub.f32 %v3421, %v3486
    %v3807 = vsub.f32 %v3422, %v3487
    %v3808 = vsub.f32 %v3423, %v3488
    %v3809 = vsub.f32 %v3424, %v3489
    %v3810 = vsub.f32 %v3425, %v3490
    %v3811 = vsub.f32 %v3426, %v3491
    %v3812 = vsub.f32 %v3427, %v3492
    %v3813 = vsub.f32 %v3428, %v3493
    %v3814 = vsub.f32 %v3429, %v3494
    %v3815 = vsub.f32 %v3430, %v3495
    %v3816 = vsub.f32 %v3431, %v3496
    %v3817 = vsub.f32 %v3432, %v3497
    %v3818 = vsub.f32 %v3433, %v3498
    %v3819 = vsub.f32 %v3434, %v3499
    %v3820 = vmul.f32 %v3804, %v3653
    %v3821 = vmul.f32 %v3805, %v3663
    %v3822 = vmul.f32 %v3806, %v3673
    %v3823 = vmul.f32 %v3807, %v3683
    %v3824 = vmul.f32 %v3808, %v3693
    %v3825 = vmul.f32 %v3809, %v3703
    %v3826 = vmul.f32 %v3810, %v3713
    %v3827 = vmul.f32 %v3811, %v3723
    %v3828 = vmul.f32 %v3812, %v3733
    %v3829 = vmul.f32 %v3813, %v3743
    %v3830 = vmul.f32 %v3814, %v3753
    %v3831 = vmul.f32 %v3815, %v3763
    %v3832 = vmul.f32 %v3816, %v3773
    %v3833 = vmul.f32 %v3817, %v3783
    %v3834 = vmul.f32 %v3818, %v3793
    %v3835 = vmul.f32 %v3819, %v3803
    %v3836 = vld [vmem:[%s16] sm:$0x1]
    %v3838 = vperm.slane %v3836, 0
    %v3840 = vmul.f32 %v3820, %v3838
    %v3841 = vmul.f32 %v3821, %v3838
    %v3842 = vmul.f32 %v3822, %v3838
    %v3843 = vmul.f32 %v3823, %v3838
    %v3844 = vmul.f32 %v3824, %v3838
    %v3845 = vmul.f32 %v3825, %v3838
    %v3846 = vmul.f32 %v3826, %v3838
    %v3847 = vmul.f32 %v3827, %v3838
    %v3848 = vmul.f32 %v3828, %v3838
    %v3849 = vmul.f32 %v3829, %v3838
    %v3850 = vmul.f32 %v3830, %v3838
    %v3851 = vmul.f32 %v3831, %v3838
    %v3852 = vmul.f32 %v3832, %v3838
    %v3853 = vmul.f32 %v3833, %v3838
    %v3854 = vmul.f32 %v3834, %v3838
    %v3855 = vmul.f32 %v3835, %v3838
    %v3856 = vld [vmem:[%s17] sm:$0x1]
    %v3858 = vperm.slane %v3856, 0
    %v3860 = vadd.f32 %v3840, %v3858
    %v3861 = vadd.f32 %v3841, %v3858
    %v3862 = vadd.f32 %v3842, %v3858
    %v3863 = vadd.f32 %v3843, %v3858
    %v3864 = vadd.f32 %v3844, %v3858
    %v3865 = vadd.f32 %v3845, %v3858
    %v3866 = vadd.f32 %v3846, %v3858
    %v3867 = vadd.f32 %v3847, %v3858
    %v3868 = vadd.f32 %v3848, %v3858
    %v3869 = vadd.f32 %v3849, %v3858
    %v3870 = vadd.f32 %v3850, %v3858
    %v3871 = vadd.f32 %v3851, %v3858
    %v3872 = vadd.f32 %v3852, %v3858
    %v3873 = vadd.f32 %v3853, %v3858
    %v3874 = vadd.f32 %v3854, %v3858
    %v3875 = vadd.f32 %v3855, %v3858
    %v3876 = vpack.c.bf16 %v3861, %v3860
    %v3877 = vpack.c.bf16 %v3863, %v3862
    %v3878 = vpack.c.bf16 %v3865, %v3864
    %v3879 = vpack.c.bf16 %v3867, %v3866
    %v3880 = vpack.c.bf16 %v3869, %v3868
    %v3881 = vpack.c.bf16 %v3871, %v3870
    %v3882 = vpack.c.bf16 %v3873, %v3872
    %v3883 = vpack.c.bf16 %v3875, %v3874
    %v3884 = vld [vmem:[%s18] sm:$0xf]
    %v3885 = vld [vmem:[%s18 + $0x4] sm:$0xf]
    %v3886 = vld [vmem:[%s18 + $0x8] sm:$0xf]
    %v3887 = vld [vmem:[%s18 + $0xc] sm:$0xf]
    %v3888 = vld [vmem:[%s18 + $0x10] sm:$0xf]
    %v3889 = vld [vmem:[%s18 + $0x14] sm:$0xf]
    %v3890 = vld [vmem:[%s18 + $0x18] sm:$0xf]
    %v3891 = vld [vmem:[%s18 + $0x1c] sm:$0xf]
    %v3892 = vld [vmem:[%s19] sm:$0x1]
    %v3894 = vperm.slane %v3892, 0
    %v3904 = vunpack.c.l.b16 %v3884
    %v3905 = vunpack.c.l.b16 %v3885
    %v3906 = vunpack.c.l.b16 %v3886
    %v3907 = vunpack.c.l.b16 %v3887
    %v3908 = vunpack.c.l.b16 %v3888
    %v3909 = vunpack.c.l.b16 %v3889
    %v3910 = vunpack.c.l.b16 %v3890
    %v3911 = vunpack.c.l.b16 %v3891
    %v3912 = vpack.c.b16 %v3905, %v3904
    %v3913 = vpack.c.b16 %v3907, %v3906
    %v3914 = vpack.c.b16 %v3909, %v3908
    %v3915 = vpack.c.b16 %v3911, %v3910
    %v3921 = vsel %vm3435, %v3876, 0
    %v3924 = vsel %vm3435, %v3877, 0
    %v3927 = vsel %vm3435, %v3878, 0
    %v3930 = vsel %vm3435, %v3879, 0
    %v3933 = vsel %vm3435, %v3880, 0
    %v3936 = vsel %vm3435, %v3881, 0
    %v3939 = vsel %vm3435, %v3882, 0
    %v3942 = vsel %vm3435, %v3883, 0
    %3944 = vmatpush.bf16.msra.mxu0 0
    %3945 = vmatpush.bf16.msra.mxu0 0
    %3946 = vmatpush.bf16.msra.mxu0 0
    %3947 = vmatpush.bf16.msra.mxu0 0
    %3948 = vmatpush.bf16.msra.mxu0 %v3915
    %3949 = vmatpush.bf16.msra.mxu0 %v3914
    %3950 = vmatpush.bf16.msra.mxu0 %v3913
    %3951 = vmatpush.bf16.msra.mxu0 %v3912
    %3952 = vmatmul.bf16.gmra.mxu0 %v3921
    %v3953 = vpop.f32.mrf.mxu0
    %v3954 = vadd.f32 %v3894, %v3953
    %v3955 = vpop.f32.mrf.mxu0
    %v3956 = vadd.f32 %v3894, %v3955
    %3957 = vmatmul.bf16.gmra.mxu0 %v3924
    %v3958 = vpop.f32.mrf.mxu0
    %v3959 = vadd.f32 %v3894, %v3958
    %v3960 = vpop.f32.mrf.mxu0
    %v3961 = vadd.f32 %v3894, %v3960
    %3962 = vmatmul.bf16.gmra.mxu0 %v3927
    %v3963 = vpop.f32.mrf.mxu0
    %v3964 = vadd.f32 %v3894, %v3963
    %v3965 = vpop.f32.mrf.mxu0
    %v3966 = vadd.f32 %v3894, %v3965
    %3967 = vmatmul.bf16.gmra.mxu0 %v3930
    %v3968 = vpop.f32.mrf.mxu0
    %v3969 = vadd.f32 %v3894, %v3968
    %v3970 = vpop.f32.mrf.mxu0
    %v3971 = vadd.f32 %v3894, %v3970
    %3972 = vmatmul.bf16.gmra.mxu0 %v3933
    %v3973 = vpop.f32.mrf.mxu0
    %v3974 = vadd.f32 %v3894, %v3973
    %v3975 = vpop.f32.mrf.mxu0
    %v3976 = vadd.f32 %v3894, %v3975
    %3977 = vmatmul.bf16.gmra.mxu0 %v3936
    %v3978 = vpop.f32.mrf.mxu0
    %v3979 = vadd.f32 %v3894, %v3978
    %v3980 = vpop.f32.mrf.mxu0
    %v3981 = vadd.f32 %v3894, %v3980
    %3982 = vmatmul.bf16.gmra.mxu0 %v3939
    %v3983 = vpop.f32.mrf.mxu0
    %v3984 = vadd.f32 %v3894, %v3983
    %v3985 = vpop.f32.mrf.mxu0
    %v3986 = vadd.f32 %v3894, %v3985
    %3987 = vmatmul.bf16.gmra.mxu0 %v3942
    %v3988 = vpop.f32.mrf.mxu0
    %v3989 = vadd.f32 %v3894, %v3988
    %v3990 = vpop.f32.mrf.mxu0
    %v3991 = vadd.f32 %v3894, %v3990
    %3992 = vdwg.mxu0
    %v3993 = vmax.f32 %v3954, 0.0
    %v3994 = vmax.f32 %v3956, 0.0
    %v3995 = vmax.f32 %v3959, 0.0
    %v3996 = vmax.f32 %v3961, 0.0
    %v3997 = vmax.f32 %v3964, 0.0
    %v3998 = vmax.f32 %v3966, 0.0
    %v3999 = vmax.f32 %v3969, 0.0
    %v4000 = vmax.f32 %v3971, 0.0
    %v4001 = vmax.f32 %v3974, 0.0
    %v4002 = vmax.f32 %v3976, 0.0
    %v4003 = vmax.f32 %v3979, 0.0
    %v4004 = vmax.f32 %v3981, 0.0
    %v4005 = vmax.f32 %v3984, 0.0
    %v4006 = vmax.f32 %v3986, 0.0
    %v4007 = vmax.f32 %v3989, 0.0
    %v4008 = vmax.f32 %v3991, 0.0
    %vm4009 = vcmask 261120
    %v4010 = vsel %vm4009, %v3993, 0.0
    %4011 = vadd.xlane.f32.xlu0 %v4010
    %v4012 = vpop.xlane.xlu0 %4011
    %v4013 = vsel %vm4009, %v3994, 0.0
    %4014 = vadd.xlane.f32.xlu0 %v4013
    %v4015 = vpop.xlane.xlu0 %4014
    %v4016 = vsel %vm4009, %v3995, 0.0
    %4017 = vadd.xlane.f32.xlu0 %v4016
    %v4018 = vpop.xlane.xlu0 %4017
    %v4019 = vsel %vm4009, %v3996, 0.0
    %4020 = vadd.xlane.f32.xlu0 %v4019
    %v4021 = vpop.xlane.xlu0 %4020
    %v4022 = vsel %vm4009, %v3997, 0.0
    %4023 = vadd.xlane.f32.xlu0 %v4022
    %v4024 = vpop.xlane.xlu0 %4023
    %v4025 = vsel %vm4009, %v3998, 0.0
    %4026 = vadd.xlane.f32.xlu0 %v4025
    %v4027 = vpop.xlane.xlu0 %4026
    %v4028 = vsel %vm4009, %v3999, 0.0
    %4029 = vadd.xlane.f32.xlu0 %v4028
    %v4030 = vpop.xlane.xlu0 %4029
    %v4031 = vsel %vm4009, %v4000, 0.0
    %4032 = vadd.xlane.f32.xlu0 %v4031
    %v4033 = vpop.xlane.xlu0 %4032
    %v4034 = vsel %vm4009, %v4001, 0.0
    %4035 = vadd.xlane.f32.xlu0 %v4034
    %v4036 = vpop.xlane.xlu0 %4035
    %v4037 = vsel %vm4009, %v4002, 0.0
    %4038 = vadd.xlane.f32.xlu0 %v4037
    %v4039 = vpop.xlane.xlu0 %4038
    %v4040 = vsel %vm4009, %v4003, 0.0
    %4041 = vadd.xlane.f32.xlu0 %v4040
    %v4042 = vpop.xlane.xlu0 %4041
    %v4043 = vsel %vm4009, %v4004, 0.0
    %4044 = vadd.xlane.f32.xlu0 %v4043
    %v4045 = vpop.xlane.xlu0 %4044
    %v4046 = vsel %vm4009, %v4005, 0.0
    %4047 = vadd.xlane.f32.xlu0 %v4046
    %v4048 = vpop.xlane.xlu0 %4047
    %v4049 = vsel %vm4009, %v4006, 0.0
    %4050 = vadd.xlane.f32.xlu0 %v4049
    %v4051 = vpop.xlane.xlu0 %4050
    %v4052 = vsel %vm4009, %v4007, 0.0
    %4053 = vadd.xlane.f32.xlu0 %v4052
    %v4054 = vpop.xlane.xlu0 %4053
    %v4055 = vsel %vm4009, %v4008, 0.0
    %4056 = vadd.xlane.f32.xlu0 %v4055
    %v4057 = vpop.xlane.xlu0 %4056
    %v4058 = vmul.f32 %v4012, 0.03125
    %v4059 = vmul.f32 %v4015, 0.03125
    %v4060 = vmul.f32 %v4018, 0.03125
    %v4061 = vmul.f32 %v4021, 0.03125
    %v4062 = vmul.f32 %v4024, 0.03125
    %v4063 = vmul.f32 %v4027, 0.03125
    %v4064 = vmul.f32 %v4030, 0.03125
    %v4065 = vmul.f32 %v4033, 0.03125
    %v4066 = vmul.f32 %v4036, 0.03125
    %v4067 = vmul.f32 %v4039, 0.03125
    %v4068 = vmul.f32 %v4042, 0.03125
    %v4069 = vmul.f32 %v4045, 0.03125
    %v4070 = vmul.f32 %v4048, 0.03125
    %v4071 = vmul.f32 %v4051, 0.03125
    %v4072 = vmul.f32 %v4054, 0.03125
    %v4073 = vmul.f32 %v4057, 0.03125
    %v4074 = vmul.f32 %v3993, %v3993
    %v4075 = vmul.f32 %v3994, %v3994
    %v4076 = vmul.f32 %v3995, %v3995
    %v4077 = vmul.f32 %v3996, %v3996
    %v4078 = vmul.f32 %v3997, %v3997
    %v4079 = vmul.f32 %v3998, %v3998
    %v4080 = vmul.f32 %v3999, %v3999
    %v4081 = vmul.f32 %v4000, %v4000
    %v4082 = vmul.f32 %v4001, %v4001
    %v4083 = vmul.f32 %v4002, %v4002
    %v4084 = vmul.f32 %v4003, %v4003
    %v4085 = vmul.f32 %v4004, %v4004
    %v4086 = vmul.f32 %v4005, %v4005
    %v4087 = vmul.f32 %v4006, %v4006
    %v4088 = vmul.f32 %v4007, %v4007
    %v4089 = vmul.f32 %v4008, %v4008
    %v4090 = vsel %vm4009, %v4074, 0.0
    %4091 = vadd.xlane.f32.xlu0 %v4090
    %v4092 = vpop.xlane.xlu0 %4091
    %v4093 = vsel %vm4009, %v4075, 0.0
    %4094 = vadd.xlane.f32.xlu0 %v4093
    %v4095 = vpop.xlane.xlu0 %4094
    %v4096 = vsel %vm4009, %v4076, 0.0
    %4097 = vadd.xlane.f32.xlu0 %v4096
    %v4098 = vpop.xlane.xlu0 %4097
    %v4099 = vsel %vm4009, %v4077, 0.0
    %4100 = vadd.xlane.f32.xlu0 %v4099
    %v4101 = vpop.xlane.xlu0 %4100
    %v4102 = vsel %vm4009, %v4078, 0.0
    %4103 = vadd.xlane.f32.xlu0 %v4102
    %v4104 = vpop.xlane.xlu0 %4103
    %v4105 = vsel %vm4009, %v4079, 0.0
    %4106 = vadd.xlane.f32.xlu0 %v4105
    %v4107 = vpop.xlane.xlu0 %4106
    %v4108 = vsel %vm4009, %v4080, 0.0
    %4109 = vadd.xlane.f32.xlu0 %v4108
    %v4110 = vpop.xlane.xlu0 %4109
    %v4111 = vsel %vm4009, %v4081, 0.0
    %4112 = vadd.xlane.f32.xlu0 %v4111
    %v4113 = vpop.xlane.xlu0 %4112
    %v4114 = vsel %vm4009, %v4082, 0.0
    %4115 = vadd.xlane.f32.xlu0 %v4114
    %v4116 = vpop.xlane.xlu0 %4115
    %v4117 = vsel %vm4009, %v4083, 0.0
    %4118 = vadd.xlane.f32.xlu0 %v4117
    %v4119 = vpop.xlane.xlu0 %4118
    %v4120 = vsel %vm4009, %v4084, 0.0
    %4121 = vadd.xlane.f32.xlu0 %v4120
    %v4122 = vpop.xlane.xlu0 %4121
    %v4123 = vsel %vm4009, %v4085, 0.0
    %4124 = vadd.xlane.f32.xlu0 %v4123
    %v4125 = vpop.xlane.xlu0 %4124
    %v4126 = vsel %vm4009, %v4086, 0.0
    %4127 = vadd.xlane.f32.xlu0 %v4126
    %v4128 = vpop.xlane.xlu0 %4127
    %v4129 = vsel %vm4009, %v4087, 0.0
    %4130 = vadd.xlane.f32.xlu0 %v4129
    %v4131 = vpop.xlane.xlu0 %4130
    %v4132 = vsel %vm4009, %v4088, 0.0
    %4133 = vadd.xlane.f32.xlu0 %v4132
    %v4134 = vpop.xlane.xlu0 %4133
    %v4135 = vsel %vm4009, %v4089, 0.0
    %4136 = vadd.xlane.f32.xlu0 %v4135
    %v4137 = vpop.xlane.xlu0 %4136
    %v4138 = vmul.f32 %v4092, 0.03125
    %v4139 = vmul.f32 %v4095, 0.03125
    %v4140 = vmul.f32 %v4098, 0.03125
    %v4141 = vmul.f32 %v4101, 0.03125
    %v4142 = vmul.f32 %v4104, 0.03125
    %v4143 = vmul.f32 %v4107, 0.03125
    %v4144 = vmul.f32 %v4110, 0.03125
    %v4145 = vmul.f32 %v4113, 0.03125
    %v4146 = vmul.f32 %v4116, 0.03125
    %v4147 = vmul.f32 %v4119, 0.03125
    %v4148 = vmul.f32 %v4122, 0.03125
    %v4149 = vmul.f32 %v4125, 0.03125
    %v4150 = vmul.f32 %v4128, 0.03125
    %v4151 = vmul.f32 %v4131, 0.03125
    %v4152 = vmul.f32 %v4134, 0.03125
    %v4153 = vmul.f32 %v4137, 0.03125
    %v4154 = vmul.f32 %v4058, %v4058
    %v4155 = vmul.f32 %v4059, %v4059
    %v4156 = vmul.f32 %v4060, %v4060
    %v4157 = vmul.f32 %v4061, %v4061
    %v4158 = vmul.f32 %v4062, %v4062
    %v4159 = vmul.f32 %v4063, %v4063
    %v4160 = vmul.f32 %v4064, %v4064
    %v4161 = vmul.f32 %v4065, %v4065
    %v4162 = vmul.f32 %v4066, %v4066
    %v4163 = vmul.f32 %v4067, %v4067
    %v4164 = vmul.f32 %v4068, %v4068
    %v4165 = vmul.f32 %v4069, %v4069
    %v4166 = vmul.f32 %v4070, %v4070
    %v4167 = vmul.f32 %v4071, %v4071
    %v4168 = vmul.f32 %v4072, %v4072
    %v4169 = vmul.f32 %v4073, %v4073
    %v4170 = vsub.f32 %v4138, %v4154
    %v4171 = vsub.f32 %v4139, %v4155
    %v4172 = vsub.f32 %v4140, %v4156
    %v4173 = vsub.f32 %v4141, %v4157
    %v4174 = vsub.f32 %v4142, %v4158
    %v4175 = vsub.f32 %v4143, %v4159
    %v4176 = vsub.f32 %v4144, %v4160
    %v4177 = vsub.f32 %v4145, %v4161
    %v4178 = vsub.f32 %v4146, %v4162
    %v4179 = vsub.f32 %v4147, %v4163
    %v4180 = vsub.f32 %v4148, %v4164
    %v4181 = vsub.f32 %v4149, %v4165
    %v4182 = vsub.f32 %v4150, %v4166
    %v4183 = vsub.f32 %v4151, %v4167
    %v4184 = vsub.f32 %v4152, %v4168
    %v4185 = vsub.f32 %v4153, %v4169
    %v4186 = vmax.f32 %v4170, 0.0
    %v4187 = vmax.f32 %v4171, 0.0
    %v4188 = vmax.f32 %v4172, 0.0
    %v4189 = vmax.f32 %v4173, 0.0
    %v4190 = vmax.f32 %v4174, 0.0
    %v4191 = vmax.f32 %v4175, 0.0
    %v4192 = vmax.f32 %v4176, 0.0
    %v4193 = vmax.f32 %v4177, 0.0
    %v4194 = vmax.f32 %v4178, 0.0
    %v4195 = vmax.f32 %v4179, 0.0
    %v4196 = vmax.f32 %v4180, 0.0
    %v4197 = vmax.f32 %v4181, 0.0
    %v4198 = vmax.f32 %v4182, 0.0
    %v4199 = vmax.f32 %v4183, 0.0
    %v4200 = vmax.f32 %v4184, 0.0
    %v4201 = vmax.f32 %v4185, 0.0
    %v4202 = vadd.f32 %v4186, 1e-05
    %v4203 = vadd.f32 %v4187, 1e-05
    %v4204 = vadd.f32 %v4188, 1e-05
    %v4205 = vadd.f32 %v4189, 1e-05
    %v4206 = vadd.f32 %v4190, 1e-05
    %v4207 = vadd.f32 %v4191, 1e-05
    %v4208 = vadd.f32 %v4192, 1e-05
    %v4209 = vadd.f32 %v4193, 1e-05
    %v4210 = vadd.f32 %v4194, 1e-05
    %v4211 = vadd.f32 %v4195, 1e-05
    %v4212 = vadd.f32 %v4196, 1e-05
    %v4213 = vadd.f32 %v4197, 1e-05
    %v4214 = vadd.f32 %v4198, 1e-05
    %v4215 = vadd.f32 %v4199, 1e-05
    %v4216 = vadd.f32 %v4200, 1e-05
    %v4217 = vadd.f32 %v4201, 1e-05
    %v4218 = vrsqrt.pop %v4202
    %v4219 = vmul.f32 %v4218, %v4202
    %v4220 = vmul.f32 %v4219, %v4218
    %v4221 = vmul.f32 0.5, %v4220
    %v4222 = vsub.f32 1.5, %v4221
    %v4223 = vmul.f32 %v4218, %v4222
    %vm4224 = vweird.f32 %v4202
    %vm4225 = vweird.f32 %v4218
    %vm4226 = vmor %vm4224, %vm4225
    %v4227 = vsel %vm4226, %v4218, %v4223
    %v4228 = vrsqrt.pop %v4203
    %v4229 = vmul.f32 %v4228, %v4203
    %v4230 = vmul.f32 %v4229, %v4228
    %v4231 = vmul.f32 0.5, %v4230
    %v4232 = vsub.f32 1.5, %v4231
    %v4233 = vmul.f32 %v4228, %v4232
    %vm4234 = vweird.f32 %v4203
    %vm4235 = vweird.f32 %v4228
    %vm4236 = vmor %vm4234, %vm4235
    %v4237 = vsel %vm4236, %v4228, %v4233
    %v4238 = vrsqrt.pop %v4204
    %v4239 = vmul.f32 %v4238, %v4204
    %v4240 = vmul.f32 %v4239, %v4238
    %v4241 = vmul.f32 0.5, %v4240
    %v4242 = vsub.f32 1.5, %v4241
    %v4243 = vmul.f32 %v4238, %v4242
    %vm4244 = vweird.f32 %v4204
    %vm4245 = vweird.f32 %v4238
    %vm4246 = vmor %vm4244, %vm4245
    %v4247 = vsel %vm4246, %v4238, %v4243
    %v4248 = vrsqrt.pop %v4205
    %v4249 = vmul.f32 %v4248, %v4205
    %v4250 = vmul.f32 %v4249, %v4248
    %v4251 = vmul.f32 0.5, %v4250
    %v4252 = vsub.f32 1.5, %v4251
    %v4253 = vmul.f32 %v4248, %v4252
    %vm4254 = vweird.f32 %v4205
    %vm4255 = vweird.f32 %v4248
    %vm4256 = vmor %vm4254, %vm4255
    %v4257 = vsel %vm4256, %v4248, %v4253
    %v4258 = vrsqrt.pop %v4206
    %v4259 = vmul.f32 %v4258, %v4206
    %v4260 = vmul.f32 %v4259, %v4258
    %v4261 = vmul.f32 0.5, %v4260
    %v4262 = vsub.f32 1.5, %v4261
    %v4263 = vmul.f32 %v4258, %v4262
    %vm4264 = vweird.f32 %v4206
    %vm4265 = vweird.f32 %v4258
    %vm4266 = vmor %vm4264, %vm4265
    %v4267 = vsel %vm4266, %v4258, %v4263
    %v4268 = vrsqrt.pop %v4207
    %v4269 = vmul.f32 %v4268, %v4207
    %v4270 = vmul.f32 %v4269, %v4268
    %v4271 = vmul.f32 0.5, %v4270
    %v4272 = vsub.f32 1.5, %v4271
    %v4273 = vmul.f32 %v4268, %v4272
    %vm4274 = vweird.f32 %v4207
    %vm4275 = vweird.f32 %v4268
    %vm4276 = vmor %vm4274, %vm4275
    %v4277 = vsel %vm4276, %v4268, %v4273
    %v4278 = vrsqrt.pop %v4208
    %v4279 = vmul.f32 %v4278, %v4208
    %v4280 = vmul.f32 %v4279, %v4278
    %v4281 = vmul.f32 0.5, %v4280
    %v4282 = vsub.f32 1.5, %v4281
    %v4283 = vmul.f32 %v4278, %v4282
    %vm4284 = vweird.f32 %v4208
    %vm4285 = vweird.f32 %v4278
    %vm4286 = vmor %vm4284, %vm4285
    %v4287 = vsel %vm4286, %v4278, %v4283
    %v4288 = vrsqrt.pop %v4209
    %v4289 = vmul.f32 %v4288, %v4209
    %v4290 = vmul.f32 %v4289, %v4288
    %v4291 = vmul.f32 0.5, %v4290
    %v4292 = vsub.f32 1.5, %v4291
    %v4293 = vmul.f32 %v4288, %v4292
    %vm4294 = vweird.f32 %v4209
    %vm4295 = vweird.f32 %v4288
    %vm4296 = vmor %vm4294, %vm4295
    %v4297 = vsel %vm4296, %v4288, %v4293
    %v4298 = vrsqrt.pop %v4210
    %v4299 = vmul.f32 %v4298, %v4210
    %v4300 = vmul.f32 %v4299, %v4298
    %v4301 = vmul.f32 0.5, %v4300
    %v4302 = vsub.f32 1.5, %v4301
    %v4303 = vmul.f32 %v4298, %v4302
    %vm4304 = vweird.f32 %v4210
    %vm4305 = vweird.f32 %v4298
    %vm4306 = vmor %vm4304, %vm4305
    %v4307 = vsel %vm4306, %v4298, %v4303
    %v4308 = vrsqrt.pop %v4211
    %v4309 = vmul.f32 %v4308, %v4211
    %v4310 = vmul.f32 %v4309, %v4308
    %v4311 = vmul.f32 0.5, %v4310
    %v4312 = vsub.f32 1.5, %v4311
    %v4313 = vmul.f32 %v4308, %v4312
    %vm4314 = vweird.f32 %v4211
    %vm4315 = vweird.f32 %v4308
    %vm4316 = vmor %vm4314, %vm4315
    %v4317 = vsel %vm4316, %v4308, %v4313
    %v4318 = vrsqrt.pop %v4212
    %v4319 = vmul.f32 %v4318, %v4212
    %v4320 = vmul.f32 %v4319, %v4318
    %v4321 = vmul.f32 0.5, %v4320
    %v4322 = vsub.f32 1.5, %v4321
    %v4323 = vmul.f32 %v4318, %v4322
    %vm4324 = vweird.f32 %v4212
    %vm4325 = vweird.f32 %v4318
    %vm4326 = vmor %vm4324, %vm4325
    %v4327 = vsel %vm4326, %v4318, %v4323
    %v4328 = vrsqrt.pop %v4213
    %v4329 = vmul.f32 %v4328, %v4213
    %v4330 = vmul.f32 %v4329, %v4328
    %v4331 = vmul.f32 0.5, %v4330
    %v4332 = vsub.f32 1.5, %v4331
    %v4333 = vmul.f32 %v4328, %v4332
    %vm4334 = vweird.f32 %v4213
    %vm4335 = vweird.f32 %v4328
    %vm4336 = vmor %vm4334, %vm4335
    %v4337 = vsel %vm4336, %v4328, %v4333
    %v4338 = vrsqrt.pop %v4214
    %v4339 = vmul.f32 %v4338, %v4214
    %v4340 = vmul.f32 %v4339, %v4338
    %v4341 = vmul.f32 0.5, %v4340
    %v4342 = vsub.f32 1.5, %v4341
    %v4343 = vmul.f32 %v4338, %v4342
    %vm4344 = vweird.f32 %v4214
    %vm4345 = vweird.f32 %v4338
    %vm4346 = vmor %vm4344, %vm4345
    %v4347 = vsel %vm4346, %v4338, %v4343
    %v4348 = vrsqrt.pop %v4215
    %v4349 = vmul.f32 %v4348, %v4215
    %v4350 = vmul.f32 %v4349, %v4348
    %v4351 = vmul.f32 0.5, %v4350
    %v4352 = vsub.f32 1.5, %v4351
    %v4353 = vmul.f32 %v4348, %v4352
    %vm4354 = vweird.f32 %v4215
    %vm4355 = vweird.f32 %v4348
    %vm4356 = vmor %vm4354, %vm4355
    %v4357 = vsel %vm4356, %v4348, %v4353
    %v4358 = vrsqrt.pop %v4216
    %v4359 = vmul.f32 %v4358, %v4216
    %v4360 = vmul.f32 %v4359, %v4358
    %v4361 = vmul.f32 0.5, %v4360
    %v4362 = vsub.f32 1.5, %v4361
    %v4363 = vmul.f32 %v4358, %v4362
    %vm4364 = vweird.f32 %v4216
    %vm4365 = vweird.f32 %v4358
    %vm4366 = vmor %vm4364, %vm4365
    %v4367 = vsel %vm4366, %v4358, %v4363
    %v4368 = vrsqrt.pop %v4217
    %v4369 = vmul.f32 %v4368, %v4217
    %v4370 = vmul.f32 %v4369, %v4368
    %v4371 = vmul.f32 0.5, %v4370
    %v4372 = vsub.f32 1.5, %v4371
    %v4373 = vmul.f32 %v4368, %v4372
    %vm4374 = vweird.f32 %v4217
    %vm4375 = vweird.f32 %v4368
    %vm4376 = vmor %vm4374, %vm4375
    %v4377 = vsel %vm4376, %v4368, %v4373
    %v4378 = vsub.f32 %v3993, %v4058
    %v4379 = vsub.f32 %v3994, %v4059
    %v4380 = vsub.f32 %v3995, %v4060
    %v4381 = vsub.f32 %v3996, %v4061
    %v4382 = vsub.f32 %v3997, %v4062
    %v4383 = vsub.f32 %v3998, %v4063
    %v4384 = vsub.f32 %v3999, %v4064
    %v4385 = vsub.f32 %v4000, %v4065
    %v4386 = vsub.f32 %v4001, %v4066
    %v4387 = vsub.f32 %v4002, %v4067
    %v4388 = vsub.f32 %v4003, %v4068
    %v4389 = vsub.f32 %v4004, %v4069
    %v4390 = vsub.f32 %v4005, %v4070
    %v4391 = vsub.f32 %v4006, %v4071
    %v4392 = vsub.f32 %v4007, %v4072
    %v4393 = vsub.f32 %v4008, %v4073
    %v4394 = vmul.f32 %v4378, %v4227
    %v4395 = vmul.f32 %v4379, %v4237
    %v4396 = vmul.f32 %v4380, %v4247
    %v4397 = vmul.f32 %v4381, %v4257
    %v4398 = vmul.f32 %v4382, %v4267
    %v4399 = vmul.f32 %v4383, %v4277
    %v4400 = vmul.f32 %v4384, %v4287
    %v4401 = vmul.f32 %v4385, %v4297
    %v4402 = vmul.f32 %v4386, %v4307
    %v4403 = vmul.f32 %v4387, %v4317
    %v4404 = vmul.f32 %v4388, %v4327
    %v4405 = vmul.f32 %v4389, %v4337
    %v4406 = vmul.f32 %v4390, %v4347
    %v4407 = vmul.f32 %v4391, %v4357
    %v4408 = vmul.f32 %v4392, %v4367
    %v4409 = vmul.f32 %v4393, %v4377
    %v4410 = vld [vmem:[%s20] sm:$0x1]
    %v4412 = vperm.slane %v4410, 0
    %v4414 = vmul.f32 %v4394, %v4412
    %v4415 = vmul.f32 %v4395, %v4412
    %v4416 = vmul.f32 %v4396, %v4412
    %v4417 = vmul.f32 %v4397, %v4412
    %v4418 = vmul.f32 %v4398, %v4412
    %v4419 = vmul.f32 %v4399, %v4412
    %v4420 = vmul.f32 %v4400, %v4412
    %v4421 = vmul.f32 %v4401, %v4412
    %v4422 = vmul.f32 %v4402, %v4412
    %v4423 = vmul.f32 %v4403, %v4412
    %v4424 = vmul.f32 %v4404, %v4412
    %v4425 = vmul.f32 %v4405, %v4412
    %v4426 = vmul.f32 %v4406, %v4412
    %v4427 = vmul.f32 %v4407, %v4412
    %v4428 = vmul.f32 %v4408, %v4412
    %v4429 = vmul.f32 %v4409, %v4412
    %v4430 = vld [vmem:[%s21] sm:$0x1]
    %v4432 = vperm.slane %v4430, 0
    %v4434 = vadd.f32 %v4414, %v4432
    %v4435 = vadd.f32 %v4415, %v4432
    %v4436 = vadd.f32 %v4416, %v4432
    %v4437 = vadd.f32 %v4417, %v4432
    %v4438 = vadd.f32 %v4418, %v4432
    %v4439 = vadd.f32 %v4419, %v4432
    %v4440 = vadd.f32 %v4420, %v4432
    %v4441 = vadd.f32 %v4421, %v4432
    %v4442 = vadd.f32 %v4422, %v4432
    %v4443 = vadd.f32 %v4423, %v4432
    %v4444 = vadd.f32 %v4424, %v4432
    %v4445 = vadd.f32 %v4425, %v4432
    %v4446 = vadd.f32 %v4426, %v4432
    %v4447 = vadd.f32 %v4427, %v4432
    %v4448 = vadd.f32 %v4428, %v4432
    %v4449 = vadd.f32 %v4429, %v4432
    %v4450 = vpack.c.bf16 %v4435, %v4434
    %v4451 = vpack.c.bf16 %v4437, %v4436
    %v4452 = vpack.c.bf16 %v4439, %v4438
    %v4453 = vpack.c.bf16 %v4441, %v4440
    %v4454 = vpack.c.bf16 %v4443, %v4442
    %v4455 = vpack.c.bf16 %v4445, %v4444
    %v4456 = vpack.c.bf16 %v4447, %v4446
    %v4457 = vpack.c.bf16 %v4449, %v4448
    %v4458 = vld [vmem:[%s22] sm:$0xf]
    %v4459 = vld [vmem:[%s22 + $0x4] sm:$0xf]
    %v4460 = vld [vmem:[%s22 + $0x8] sm:$0xf]
    %v4461 = vld [vmem:[%s22 + $0xc] sm:$0xf]
    %v4462 = vld [vmem:[%s23] sm:$0x1]
    %v4464 = vperm.slane %v4462, 0
    %v4470 = vunpack.c.l.b16 %v4458
    %v4471 = vunpack.c.l.b16 %v4459
    %v4472 = vunpack.c.l.b16 %v4460
    %v4473 = vunpack.c.l.b16 %v4461
    %v4474 = vpack.c.b16 %v4471, %v4470
    %v4475 = vpack.c.b16 %v4473, %v4472
    %v4479 = vsel %vm4009, %v4450, 0
    %v4482 = vsel %vm4009, %v4451, 0
    %v4485 = vsel %vm4009, %v4452, 0
    %v4488 = vsel %vm4009, %v4453, 0
    %v4491 = vsel %vm4009, %v4454, 0
    %v4494 = vsel %vm4009, %v4455, 0
    %v4497 = vsel %vm4009, %v4456, 0
    %v4500 = vsel %vm4009, %v4457, 0
    %4502 = vmatpush.bf16.msra.mxu0 0
    %4503 = vmatpush.bf16.msra.mxu0 0
    %4504 = vmatpush.bf16.msra.mxu0 0
    %4505 = vmatpush.bf16.msra.mxu0 0
    %4506 = vmatpush.bf16.msra.mxu0 0
    %4507 = vmatpush.bf16.msra.mxu0 0
    %4508 = vmatpush.bf16.msra.mxu0 %v4475
    %4509 = vmatpush.bf16.msra.mxu0 %v4474
    %4510 = vmatmul.bf16.gmra.mxu0 %v4479
    %v4511 = vpop.f32.mrf.mxu0
    %v4512 = vadd.f32 %v4464, %v4511
    %v4513 = vpop.f32.mrf.mxu0
    %v4514 = vadd.f32 %v4464, %v4513
    %4515 = vmatmul.bf16.gmra.mxu0 %v4482
    %v4516 = vpop.f32.mrf.mxu0
    %v4517 = vadd.f32 %v4464, %v4516
    %v4518 = vpop.f32.mrf.mxu0
    %v4519 = vadd.f32 %v4464, %v4518
    %4520 = vmatmul.bf16.gmra.mxu0 %v4485
    %v4521 = vpop.f32.mrf.mxu0
    %v4522 = vadd.f32 %v4464, %v4521
    %v4523 = vpop.f32.mrf.mxu0
    %v4524 = vadd.f32 %v4464, %v4523
    %4525 = vmatmul.bf16.gmra.mxu0 %v4488
    %v4526 = vpop.f32.mrf.mxu0
    %v4527 = vadd.f32 %v4464, %v4526
    %v4528 = vpop.f32.mrf.mxu0
    %v4529 = vadd.f32 %v4464, %v4528
    %4530 = vmatmul.bf16.gmra.mxu0 %v4491
    %v4531 = vpop.f32.mrf.mxu0
    %v4532 = vadd.f32 %v4464, %v4531
    %v4533 = vpop.f32.mrf.mxu0
    %v4534 = vadd.f32 %v4464, %v4533
    %4535 = vmatmul.bf16.gmra.mxu0 %v4494
    %v4536 = vpop.f32.mrf.mxu0
    %v4537 = vadd.f32 %v4464, %v4536
    %v4538 = vpop.f32.mrf.mxu0
    %v4539 = vadd.f32 %v4464, %v4538
    %4540 = vmatmul.bf16.gmra.mxu0 %v4497
    %v4541 = vpop.f32.mrf.mxu0
    %v4542 = vadd.f32 %v4464, %v4541
    %v4543 = vpop.f32.mrf.mxu0
    %v4544 = vadd.f32 %v4464, %v4543
    %4545 = vmatmul.bf16.gmra.mxu0 %v4500
    %v4546 = vpop.f32.mrf.mxu0
    %v4547 = vadd.f32 %v4464, %v4546
    %v4548 = vpop.f32.mrf.mxu0
    %v4549 = vadd.f32 %v4464, %v4548
    %4550 = vdwg.mxu0
    %v4551 = vmax.f32 %v4512, 0.0
    %v4552 = vmax.f32 %v4514, 0.0
    %v4553 = vmax.f32 %v4517, 0.0
    %v4554 = vmax.f32 %v4519, 0.0
    %v4555 = vmax.f32 %v4522, 0.0
    %v4556 = vmax.f32 %v4524, 0.0
    %v4557 = vmax.f32 %v4527, 0.0
    %v4558 = vmax.f32 %v4529, 0.0
    %v4559 = vmax.f32 %v4532, 0.0
    %v4560 = vmax.f32 %v4534, 0.0
    %v4561 = vmax.f32 %v4537, 0.0
    %v4562 = vmax.f32 %v4539, 0.0
    %v4563 = vmax.f32 %v4542, 0.0
    %v4564 = vmax.f32 %v4544, 0.0
    %v4565 = vmax.f32 %v4547, 0.0
    %v4566 = vmax.f32 %v4549, 0.0
    %vm4567 = vcmask 130048
    %v4568 = vsel %vm4567, %v4551, 0.0
    %4569 = vadd.xlane.f32.xlu0 %v4568
    %v4570 = vpop.xlane.xlu0 %4569
    %v4571 = vsel %vm4567, %v4552, 0.0
    %4572 = vadd.xlane.f32.xlu0 %v4571
    %v4573 = vpop.xlane.xlu0 %4572
    %v4574 = vsel %vm4567, %v4553, 0.0
    %4575 = vadd.xlane.f32.xlu0 %v4574
    %v4576 = vpop.xlane.xlu0 %4575
    %v4577 = vsel %vm4567, %v4554, 0.0
    %4578 = vadd.xlane.f32.xlu0 %v4577
    %v4579 = vpop.xlane.xlu0 %4578
    %v4580 = vsel %vm4567, %v4555, 0.0
    %4581 = vadd.xlane.f32.xlu0 %v4580
    %v4582 = vpop.xlane.xlu0 %4581
    %v4583 = vsel %vm4567, %v4556, 0.0
    %4584 = vadd.xlane.f32.xlu0 %v4583
    %v4585 = vpop.xlane.xlu0 %4584
    %v4586 = vsel %vm4567, %v4557, 0.0
    %4587 = vadd.xlane.f32.xlu0 %v4586
    %v4588 = vpop.xlane.xlu0 %4587
    %v4589 = vsel %vm4567, %v4558, 0.0
    %4590 = vadd.xlane.f32.xlu0 %v4589
    %v4591 = vpop.xlane.xlu0 %4590
    %v4592 = vsel %vm4567, %v4559, 0.0
    %4593 = vadd.xlane.f32.xlu0 %v4592
    %v4594 = vpop.xlane.xlu0 %4593
    %v4595 = vsel %vm4567, %v4560, 0.0
    %4596 = vadd.xlane.f32.xlu0 %v4595
    %v4597 = vpop.xlane.xlu0 %4596
    %v4598 = vsel %vm4567, %v4561, 0.0
    %4599 = vadd.xlane.f32.xlu0 %v4598
    %v4600 = vpop.xlane.xlu0 %4599
    %v4601 = vsel %vm4567, %v4562, 0.0
    %4602 = vadd.xlane.f32.xlu0 %v4601
    %v4603 = vpop.xlane.xlu0 %4602
    %v4604 = vsel %vm4567, %v4563, 0.0
    %4605 = vadd.xlane.f32.xlu0 %v4604
    %v4606 = vpop.xlane.xlu0 %4605
    %v4607 = vsel %vm4567, %v4564, 0.0
    %4608 = vadd.xlane.f32.xlu0 %v4607
    %v4609 = vpop.xlane.xlu0 %4608
    %v4610 = vsel %vm4567, %v4565, 0.0
    %4611 = vadd.xlane.f32.xlu0 %v4610
    %v4612 = vpop.xlane.xlu0 %4611
    %v4613 = vsel %vm4567, %v4566, 0.0
    %4614 = vadd.xlane.f32.xlu0 %v4613
    %v4615 = vpop.xlane.xlu0 %4614
    %v4616 = vmul.f32 %v4570, 0.0625
    %v4617 = vmul.f32 %v4573, 0.0625
    %v4618 = vmul.f32 %v4576, 0.0625
    %v4619 = vmul.f32 %v4579, 0.0625
    %v4620 = vmul.f32 %v4582, 0.0625
    %v4621 = vmul.f32 %v4585, 0.0625
    %v4622 = vmul.f32 %v4588, 0.0625
    %v4623 = vmul.f32 %v4591, 0.0625
    %v4624 = vmul.f32 %v4594, 0.0625
    %v4625 = vmul.f32 %v4597, 0.0625
    %v4626 = vmul.f32 %v4600, 0.0625
    %v4627 = vmul.f32 %v4603, 0.0625
    %v4628 = vmul.f32 %v4606, 0.0625
    %v4629 = vmul.f32 %v4609, 0.0625
    %v4630 = vmul.f32 %v4612, 0.0625
    %v4631 = vmul.f32 %v4615, 0.0625
    %v4632 = vmul.f32 %v4551, %v4551
    %v4633 = vmul.f32 %v4552, %v4552
    %v4634 = vmul.f32 %v4553, %v4553
    %v4635 = vmul.f32 %v4554, %v4554
    %v4636 = vmul.f32 %v4555, %v4555
    %v4637 = vmul.f32 %v4556, %v4556
    %v4638 = vmul.f32 %v4557, %v4557
    %v4639 = vmul.f32 %v4558, %v4558
    %v4640 = vmul.f32 %v4559, %v4559
    %v4641 = vmul.f32 %v4560, %v4560
    %v4642 = vmul.f32 %v4561, %v4561
    %v4643 = vmul.f32 %v4562, %v4562
    %v4644 = vmul.f32 %v4563, %v4563
    %v4645 = vmul.f32 %v4564, %v4564
    %v4646 = vmul.f32 %v4565, %v4565
    %v4647 = vmul.f32 %v4566, %v4566
    %v4648 = vsel %vm4567, %v4632, 0.0
    %4649 = vadd.xlane.f32.xlu0 %v4648
    %v4650 = vpop.xlane.xlu0 %4649
    %v4651 = vsel %vm4567, %v4633, 0.0
    %4652 = vadd.xlane.f32.xlu0 %v4651
    %v4653 = vpop.xlane.xlu0 %4652
    %v4654 = vsel %vm4567, %v4634, 0.0
    %4655 = vadd.xlane.f32.xlu0 %v4654
    %v4656 = vpop.xlane.xlu0 %4655
    %v4657 = vsel %vm4567, %v4635, 0.0
    %4658 = vadd.xlane.f32.xlu0 %v4657
    %v4659 = vpop.xlane.xlu0 %4658
    %v4660 = vsel %vm4567, %v4636, 0.0
    %4661 = vadd.xlane.f32.xlu0 %v4660
    %v4662 = vpop.xlane.xlu0 %4661
    %v4663 = vsel %vm4567, %v4637, 0.0
    %4664 = vadd.xlane.f32.xlu0 %v4663
    %v4665 = vpop.xlane.xlu0 %4664
    %v4666 = vsel %vm4567, %v4638, 0.0
    %4667 = vadd.xlane.f32.xlu0 %v4666
    %v4668 = vpop.xlane.xlu0 %4667
    %v4669 = vsel %vm4567, %v4639, 0.0
    %4670 = vadd.xlane.f32.xlu0 %v4669
    %v4671 = vpop.xlane.xlu0 %4670
    %v4672 = vsel %vm4567, %v4640, 0.0
    %4673 = vadd.xlane.f32.xlu0 %v4672
    %v4674 = vpop.xlane.xlu0 %4673
    %v4675 = vsel %vm4567, %v4641, 0.0
    %4676 = vadd.xlane.f32.xlu0 %v4675
    %v4677 = vpop.xlane.xlu0 %4676
    %v4678 = vsel %vm4567, %v4642, 0.0
    %4679 = vadd.xlane.f32.xlu0 %v4678
    %v4680 = vpop.xlane.xlu0 %4679
    %v4681 = vsel %vm4567, %v4643, 0.0
    %4682 = vadd.xlane.f32.xlu0 %v4681
    %v4683 = vpop.xlane.xlu0 %4682
    %v4684 = vsel %vm4567, %v4644, 0.0
    %4685 = vadd.xlane.f32.xlu0 %v4684
    %v4686 = vpop.xlane.xlu0 %4685
    %v4687 = vsel %vm4567, %v4645, 0.0
    %4688 = vadd.xlane.f32.xlu0 %v4687
    %v4689 = vpop.xlane.xlu0 %4688
    %v4690 = vsel %vm4567, %v4646, 0.0
    %4691 = vadd.xlane.f32.xlu0 %v4690
    %v4692 = vpop.xlane.xlu0 %4691
    %v4693 = vsel %vm4567, %v4647, 0.0
    %4694 = vadd.xlane.f32.xlu0 %v4693
    %v4695 = vpop.xlane.xlu0 %4694
    %v4696 = vmul.f32 %v4650, 0.0625
    %v4697 = vmul.f32 %v4653, 0.0625
    %v4698 = vmul.f32 %v4656, 0.0625
    %v4699 = vmul.f32 %v4659, 0.0625
    %v4700 = vmul.f32 %v4662, 0.0625
    %v4701 = vmul.f32 %v4665, 0.0625
    %v4702 = vmul.f32 %v4668, 0.0625
    %v4703 = vmul.f32 %v4671, 0.0625
    %v4704 = vmul.f32 %v4674, 0.0625
    %v4705 = vmul.f32 %v4677, 0.0625
    %v4706 = vmul.f32 %v4680, 0.0625
    %v4707 = vmul.f32 %v4683, 0.0625
    %v4708 = vmul.f32 %v4686, 0.0625
    %v4709 = vmul.f32 %v4689, 0.0625
    %v4710 = vmul.f32 %v4692, 0.0625
    %v4711 = vmul.f32 %v4695, 0.0625
    %v4712 = vmul.f32 %v4616, %v4616
    %v4713 = vmul.f32 %v4617, %v4617
    %v4714 = vmul.f32 %v4618, %v4618
    %v4715 = vmul.f32 %v4619, %v4619
    %v4716 = vmul.f32 %v4620, %v4620
    %v4717 = vmul.f32 %v4621, %v4621
    %v4718 = vmul.f32 %v4622, %v4622
    %v4719 = vmul.f32 %v4623, %v4623
    %v4720 = vmul.f32 %v4624, %v4624
    %v4721 = vmul.f32 %v4625, %v4625
    %v4722 = vmul.f32 %v4626, %v4626
    %v4723 = vmul.f32 %v4627, %v4627
    %v4724 = vmul.f32 %v4628, %v4628
    %v4725 = vmul.f32 %v4629, %v4629
    %v4726 = vmul.f32 %v4630, %v4630
    %v4727 = vmul.f32 %v4631, %v4631
    %v4728 = vsub.f32 %v4696, %v4712
    %v4729 = vsub.f32 %v4697, %v4713
    %v4730 = vsub.f32 %v4698, %v4714
    %v4731 = vsub.f32 %v4699, %v4715
    %v4732 = vsub.f32 %v4700, %v4716
    %v4733 = vsub.f32 %v4701, %v4717
    %v4734 = vsub.f32 %v4702, %v4718
    %v4735 = vsub.f32 %v4703, %v4719
    %v4736 = vsub.f32 %v4704, %v4720
    %v4737 = vsub.f32 %v4705, %v4721
    %v4738 = vsub.f32 %v4706, %v4722
    %v4739 = vsub.f32 %v4707, %v4723
    %v4740 = vsub.f32 %v4708, %v4724
    %v4741 = vsub.f32 %v4709, %v4725
    %v4742 = vsub.f32 %v4710, %v4726
    %v4743 = vsub.f32 %v4711, %v4727
    %v4744 = vmax.f32 %v4728, 0.0
    %v4745 = vmax.f32 %v4729, 0.0
    %v4746 = vmax.f32 %v4730, 0.0
    %v4747 = vmax.f32 %v4731, 0.0
    %v4748 = vmax.f32 %v4732, 0.0
    %v4749 = vmax.f32 %v4733, 0.0
    %v4750 = vmax.f32 %v4734, 0.0
    %v4751 = vmax.f32 %v4735, 0.0
    %v4752 = vmax.f32 %v4736, 0.0
    %v4753 = vmax.f32 %v4737, 0.0
    %v4754 = vmax.f32 %v4738, 0.0
    %v4755 = vmax.f32 %v4739, 0.0
    %v4756 = vmax.f32 %v4740, 0.0
    %v4757 = vmax.f32 %v4741, 0.0
    %v4758 = vmax.f32 %v4742, 0.0
    %v4759 = vmax.f32 %v4743, 0.0
    %v4760 = vadd.f32 %v4744, 1e-05
    %v4761 = vadd.f32 %v4745, 1e-05
    %v4762 = vadd.f32 %v4746, 1e-05
    %v4763 = vadd.f32 %v4747, 1e-05
    %v4764 = vadd.f32 %v4748, 1e-05
    %v4765 = vadd.f32 %v4749, 1e-05
    %v4766 = vadd.f32 %v4750, 1e-05
    %v4767 = vadd.f32 %v4751, 1e-05
    %v4768 = vadd.f32 %v4752, 1e-05
    %v4769 = vadd.f32 %v4753, 1e-05
    %v4770 = vadd.f32 %v4754, 1e-05
    %v4771 = vadd.f32 %v4755, 1e-05
    %v4772 = vadd.f32 %v4756, 1e-05
    %v4773 = vadd.f32 %v4757, 1e-05
    %v4774 = vadd.f32 %v4758, 1e-05
    %v4775 = vadd.f32 %v4759, 1e-05
    %v4776 = vrsqrt.pop %v4760
    %v4777 = vmul.f32 %v4776, %v4760
    %v4778 = vmul.f32 %v4777, %v4776
    %v4779 = vmul.f32 0.5, %v4778
    %v4780 = vsub.f32 1.5, %v4779
    %v4781 = vmul.f32 %v4776, %v4780
    %vm4782 = vweird.f32 %v4760
    %vm4783 = vweird.f32 %v4776
    %vm4784 = vmor %vm4782, %vm4783
    %v4785 = vsel %vm4784, %v4776, %v4781
    %v4786 = vrsqrt.pop %v4761
    %v4787 = vmul.f32 %v4786, %v4761
    %v4788 = vmul.f32 %v4787, %v4786
    %v4789 = vmul.f32 0.5, %v4788
    %v4790 = vsub.f32 1.5, %v4789
    %v4791 = vmul.f32 %v4786, %v4790
    %vm4792 = vweird.f32 %v4761
    %vm4793 = vweird.f32 %v4786
    %vm4794 = vmor %vm4792, %vm4793
    %v4795 = vsel %vm4794, %v4786, %v4791
    %v4796 = vrsqrt.pop %v4762
    %v4797 = vmul.f32 %v4796, %v4762
    %v4798 = vmul.f32 %v4797, %v4796
    %v4799 = vmul.f32 0.5, %v4798
    %v4800 = vsub.f32 1.5, %v4799
    %v4801 = vmul.f32 %v4796, %v4800
    %vm4802 = vweird.f32 %v4762
    %vm4803 = vweird.f32 %v4796
    %vm4804 = vmor %vm4802, %vm4803
    %v4805 = vsel %vm4804, %v4796, %v4801
    %v4806 = vrsqrt.pop %v4763
    %v4807 = vmul.f32 %v4806, %v4763
    %v4808 = vmul.f32 %v4807, %v4806
    %v4809 = vmul.f32 0.5, %v4808
    %v4810 = vsub.f32 1.5, %v4809
    %v4811 = vmul.f32 %v4806, %v4810
    %vm4812 = vweird.f32 %v4763
    %vm4813 = vweird.f32 %v4806
    %vm4814 = vmor %vm4812, %vm4813
    %v4815 = vsel %vm4814, %v4806, %v4811
    %v4816 = vrsqrt.pop %v4764
    %v4817 = vmul.f32 %v4816, %v4764
    %v4818 = vmul.f32 %v4817, %v4816
    %v4819 = vmul.f32 0.5, %v4818
    %v4820 = vsub.f32 1.5, %v4819
    %v4821 = vmul.f32 %v4816, %v4820
    %vm4822 = vweird.f32 %v4764
    %vm4823 = vweird.f32 %v4816
    %vm4824 = vmor %vm4822, %vm4823
    %v4825 = vsel %vm4824, %v4816, %v4821
    %v4826 = vrsqrt.pop %v4765
    %v4827 = vmul.f32 %v4826, %v4765
    %v4828 = vmul.f32 %v4827, %v4826
    %v4829 = vmul.f32 0.5, %v4828
    %v4830 = vsub.f32 1.5, %v4829
    %v4831 = vmul.f32 %v4826, %v4830
    %vm4832 = vweird.f32 %v4765
    %vm4833 = vweird.f32 %v4826
    %vm4834 = vmor %vm4832, %vm4833
    %v4835 = vsel %vm4834, %v4826, %v4831
    %v4836 = vrsqrt.pop %v4766
    %v4837 = vmul.f32 %v4836, %v4766
    %v4838 = vmul.f32 %v4837, %v4836
    %v4839 = vmul.f32 0.5, %v4838
    %v4840 = vsub.f32 1.5, %v4839
    %v4841 = vmul.f32 %v4836, %v4840
    %vm4842 = vweird.f32 %v4766
    %vm4843 = vweird.f32 %v4836
    %vm4844 = vmor %vm4842, %vm4843
    %v4845 = vsel %vm4844, %v4836, %v4841
    %v4846 = vrsqrt.pop %v4767
    %v4847 = vmul.f32 %v4846, %v4767
    %v4848 = vmul.f32 %v4847, %v4846
    %v4849 = vmul.f32 0.5, %v4848
    %v4850 = vsub.f32 1.5, %v4849
    %v4851 = vmul.f32 %v4846, %v4850
    %vm4852 = vweird.f32 %v4767
    %vm4853 = vweird.f32 %v4846
    %vm4854 = vmor %vm4852, %vm4853
    %v4855 = vsel %vm4854, %v4846, %v4851
    %v4856 = vrsqrt.pop %v4768
    %v4857 = vmul.f32 %v4856, %v4768
    %v4858 = vmul.f32 %v4857, %v4856
    %v4859 = vmul.f32 0.5, %v4858
    %v4860 = vsub.f32 1.5, %v4859
    %v4861 = vmul.f32 %v4856, %v4860
    %vm4862 = vweird.f32 %v4768
    %vm4863 = vweird.f32 %v4856
    %vm4864 = vmor %vm4862, %vm4863
    %v4865 = vsel %vm4864, %v4856, %v4861
    %v4866 = vrsqrt.pop %v4769
    %v4867 = vmul.f32 %v4866, %v4769
    %v4868 = vmul.f32 %v4867, %v4866
    %v4869 = vmul.f32 0.5, %v4868
    %v4870 = vsub.f32 1.5, %v4869
    %v4871 = vmul.f32 %v4866, %v4870
    %vm4872 = vweird.f32 %v4769
    %vm4873 = vweird.f32 %v4866
    %vm4874 = vmor %vm4872, %vm4873
    %v4875 = vsel %vm4874, %v4866, %v4871
    %v4876 = vrsqrt.pop %v4770
    %v4877 = vmul.f32 %v4876, %v4770
    %v4878 = vmul.f32 %v4877, %v4876
    %v4879 = vmul.f32 0.5, %v4878
    %v4880 = vsub.f32 1.5, %v4879
    %v4881 = vmul.f32 %v4876, %v4880
    %vm4882 = vweird.f32 %v4770
    %vm4883 = vweird.f32 %v4876
    %vm4884 = vmor %vm4882, %vm4883
    %v4885 = vsel %vm4884, %v4876, %v4881
    %v4886 = vrsqrt.pop %v4771
    %v4887 = vmul.f32 %v4886, %v4771
    %v4888 = vmul.f32 %v4887, %v4886
    %v4889 = vmul.f32 0.5, %v4888
    %v4890 = vsub.f32 1.5, %v4889
    %v4891 = vmul.f32 %v4886, %v4890
    %vm4892 = vweird.f32 %v4771
    %vm4893 = vweird.f32 %v4886
    %vm4894 = vmor %vm4892, %vm4893
    %v4895 = vsel %vm4894, %v4886, %v4891
    %v4896 = vrsqrt.pop %v4772
    %v4897 = vmul.f32 %v4896, %v4772
    %v4898 = vmul.f32 %v4897, %v4896
    %v4899 = vmul.f32 0.5, %v4898
    %v4900 = vsub.f32 1.5, %v4899
    %v4901 = vmul.f32 %v4896, %v4900
    %vm4902 = vweird.f32 %v4772
    %vm4903 = vweird.f32 %v4896
    %vm4904 = vmor %vm4902, %vm4903
    %v4905 = vsel %vm4904, %v4896, %v4901
    %v4906 = vrsqrt.pop %v4773
    %v4907 = vmul.f32 %v4906, %v4773
    %v4908 = vmul.f32 %v4907, %v4906
    %v4909 = vmul.f32 0.5, %v4908
    %v4910 = vsub.f32 1.5, %v4909
    %v4911 = vmul.f32 %v4906, %v4910
    %vm4912 = vweird.f32 %v4773
    %vm4913 = vweird.f32 %v4906
    %vm4914 = vmor %vm4912, %vm4913
    %v4915 = vsel %vm4914, %v4906, %v4911
    %v4916 = vrsqrt.pop %v4774
    %v4917 = vmul.f32 %v4916, %v4774
    %v4918 = vmul.f32 %v4917, %v4916
    %v4919 = vmul.f32 0.5, %v4918
    %v4920 = vsub.f32 1.5, %v4919
    %v4921 = vmul.f32 %v4916, %v4920
    %vm4922 = vweird.f32 %v4774
    %vm4923 = vweird.f32 %v4916
    %vm4924 = vmor %vm4922, %vm4923
    %v4925 = vsel %vm4924, %v4916, %v4921
    %v4926 = vrsqrt.pop %v4775
    %v4927 = vmul.f32 %v4926, %v4775
    %v4928 = vmul.f32 %v4927, %v4926
    %v4929 = vmul.f32 0.5, %v4928
    %v4930 = vsub.f32 1.5, %v4929
    %v4931 = vmul.f32 %v4926, %v4930
    %vm4932 = vweird.f32 %v4775
    %vm4933 = vweird.f32 %v4926
    %vm4934 = vmor %vm4932, %vm4933
    %v4935 = vsel %vm4934, %v4926, %v4931
    %v4936 = vsub.f32 %v4551, %v4616
    %v4937 = vsub.f32 %v4552, %v4617
    %v4938 = vsub.f32 %v4553, %v4618
    %v4939 = vsub.f32 %v4554, %v4619
    %v4940 = vsub.f32 %v4555, %v4620
    %v4941 = vsub.f32 %v4556, %v4621
    %v4942 = vsub.f32 %v4557, %v4622
    %v4943 = vsub.f32 %v4558, %v4623
    %v4944 = vsub.f32 %v4559, %v4624
    %v4945 = vsub.f32 %v4560, %v4625
    %v4946 = vsub.f32 %v4561, %v4626
    %v4947 = vsub.f32 %v4562, %v4627
    %v4948 = vsub.f32 %v4563, %v4628
    %v4949 = vsub.f32 %v4564, %v4629
    %v4950 = vsub.f32 %v4565, %v4630
    %v4951 = vsub.f32 %v4566, %v4631
    %v4952 = vmul.f32 %v4936, %v4785
    %v4953 = vmul.f32 %v4937, %v4795
    %v4954 = vmul.f32 %v4938, %v4805
    %v4955 = vmul.f32 %v4939, %v4815
    %v4956 = vmul.f32 %v4940, %v4825
    %v4957 = vmul.f32 %v4941, %v4835
    %v4958 = vmul.f32 %v4942, %v4845
    %v4959 = vmul.f32 %v4943, %v4855
    %v4960 = vmul.f32 %v4944, %v4865
    %v4961 = vmul.f32 %v4945, %v4875
    %v4962 = vmul.f32 %v4946, %v4885
    %v4963 = vmul.f32 %v4947, %v4895
    %v4964 = vmul.f32 %v4948, %v4905
    %v4965 = vmul.f32 %v4949, %v4915
    %v4966 = vmul.f32 %v4950, %v4925
    %v4967 = vmul.f32 %v4951, %v4935
    %v4968 = vld [vmem:[%s24] sm:$0x1]
    %v4970 = vperm.slane %v4968, 0
    %v4972 = vmul.f32 %v4952, %v4970
    %v4973 = vmul.f32 %v4953, %v4970
    %v4974 = vmul.f32 %v4954, %v4970
    %v4975 = vmul.f32 %v4955, %v4970
    %v4976 = vmul.f32 %v4956, %v4970
    %v4977 = vmul.f32 %v4957, %v4970
    %v4978 = vmul.f32 %v4958, %v4970
    %v4979 = vmul.f32 %v4959, %v4970
    %v4980 = vmul.f32 %v4960, %v4970
    %v4981 = vmul.f32 %v4961, %v4970
    %v4982 = vmul.f32 %v4962, %v4970
    %v4983 = vmul.f32 %v4963, %v4970
    %v4984 = vmul.f32 %v4964, %v4970
    %v4985 = vmul.f32 %v4965, %v4970
    %v4986 = vmul.f32 %v4966, %v4970
    %v4987 = vmul.f32 %v4967, %v4970
    %v4988 = vld [vmem:[%s25] sm:$0x1]
    %v4990 = vperm.slane %v4988, 0
    %v4992 = vadd.f32 %v4972, %v4990
    %v4993 = vadd.f32 %v4973, %v4990
    %v4994 = vadd.f32 %v4974, %v4990
    %v4995 = vadd.f32 %v4975, %v4990
    %v4996 = vadd.f32 %v4976, %v4990
    %v4997 = vadd.f32 %v4977, %v4990
    %v4998 = vadd.f32 %v4978, %v4990
    %v4999 = vadd.f32 %v4979, %v4990
    %v5000 = vadd.f32 %v4980, %v4990
    %v5001 = vadd.f32 %v4981, %v4990
    %v5002 = vadd.f32 %v4982, %v4990
    %v5003 = vadd.f32 %v4983, %v4990
    %v5004 = vadd.f32 %v4984, %v4990
    %v5005 = vadd.f32 %v4985, %v4990
    %v5006 = vadd.f32 %v4986, %v4990
    %v5007 = vadd.f32 %v4987, %v4990
    %v5008 = vpack.c.bf16 %v4993, %v4992
    %v5009 = vpack.c.bf16 %v4995, %v4994
    %v5010 = vpack.c.bf16 %v4997, %v4996
    %v5011 = vpack.c.bf16 %v4999, %v4998
    %v5012 = vpack.c.bf16 %v5001, %v5000
    %v5013 = vpack.c.bf16 %v5003, %v5002
    %v5014 = vpack.c.bf16 %v5005, %v5004
    %v5015 = vpack.c.bf16 %v5007, %v5006
    %v5016 = vld [vmem:[%s26] sm:$0xf]
    %v5017 = vld [vmem:[%s26 + $0x4] sm:$0xf]
    %v5018 = vld [vmem:[%s27] sm:$0x1]
    %v5020 = vperm.slane %v5018, 0
    %v5024 = vunpack.c.l.b16 %v5016
    %v5025 = vunpack.c.l.b16 %v5017
    %v5026 = vpack.c.b16 %v5025, %v5024
    %v5029 = vsel %vm4567, %v5008, 0
    %v5032 = vsel %vm4567, %v5009, 0
    %v5035 = vsel %vm4567, %v5010, 0
    %v5038 = vsel %vm4567, %v5011, 0
    %v5041 = vsel %vm4567, %v5012, 0
    %v5044 = vsel %vm4567, %v5013, 0
    %v5047 = vsel %vm4567, %v5014, 0
    %v5050 = vsel %vm4567, %v5015, 0
    %5052 = vmatpush.bf16.msra.mxu0 0
    %5053 = vmatpush.bf16.msra.mxu0 0
    %5054 = vmatpush.bf16.msra.mxu0 0
    %5055 = vmatpush.bf16.msra.mxu0 0
    %5056 = vmatpush.bf16.msra.mxu0 0
    %5057 = vmatpush.bf16.msra.mxu0 0
    %5058 = vmatpush.bf16.msra.mxu0 0
    %5059 = vmatpush.bf16.msra.mxu0 %v5026
    %5060 = vmatmul.bf16.gmra.mxu0 %v5029
    %v5061 = vpop.f32.mrf.mxu0
    %v5062 = vadd.f32 %v5020, %v5061
    %v5063 = vpop.f32.mrf.mxu0
    %v5064 = vadd.f32 %v5020, %v5063
    %5065 = vmatmul.bf16.gmra.mxu0 %v5032
    %v5066 = vpop.f32.mrf.mxu0
    %v5067 = vadd.f32 %v5020, %v5066
    %v5068 = vpop.f32.mrf.mxu0
    %v5069 = vadd.f32 %v5020, %v5068
    %5070 = vmatmul.bf16.gmra.mxu0 %v5035
    %v5071 = vpop.f32.mrf.mxu0
    %v5072 = vadd.f32 %v5020, %v5071
    %v5073 = vpop.f32.mrf.mxu0
    %v5074 = vadd.f32 %v5020, %v5073
    %5075 = vmatmul.bf16.gmra.mxu0 %v5038
    %v5076 = vpop.f32.mrf.mxu0
    %v5077 = vadd.f32 %v5020, %v5076
    %v5078 = vpop.f32.mrf.mxu0
    %v5079 = vadd.f32 %v5020, %v5078
    %5080 = vmatmul.bf16.gmra.mxu0 %v5041
    %v5081 = vpop.f32.mrf.mxu0
    %v5082 = vadd.f32 %v5020, %v5081
    %v5083 = vpop.f32.mrf.mxu0
    %v5084 = vadd.f32 %v5020, %v5083
    %5085 = vmatmul.bf16.gmra.mxu0 %v5044
    %v5086 = vpop.f32.mrf.mxu0
    %v5087 = vadd.f32 %v5020, %v5086
    %v5088 = vpop.f32.mrf.mxu0
    %v5089 = vadd.f32 %v5020, %v5088
    %5090 = vmatmul.bf16.gmra.mxu0 %v5047
    %v5091 = vpop.f32.mrf.mxu0
    %v5092 = vadd.f32 %v5020, %v5091
    %v5093 = vpop.f32.mrf.mxu0
    %v5094 = vadd.f32 %v5020, %v5093
    %5095 = vmatmul.bf16.gmra.mxu0 %v5050
    %v5096 = vpop.f32.mrf.mxu0
    %v5097 = vadd.f32 %v5020, %v5096
    %v5098 = vpop.f32.mrf.mxu0
    %v5099 = vadd.f32 %v5020, %v5098
    %5100 = vdwg.mxu0
    %5101 = vst [vmem:[#allocation7] sm:$0xff] %v5062
    %5102 = vst [vmem:[#allocation7 + $0x8] sm:$0xff] %v5064
    %5103 = vst [vmem:[#allocation7 + $0x10] sm:$0xff] %v5067
    %5104 = vst [vmem:[#allocation7 + $0x18] sm:$0xff] %v5069
    %5105 = vst [vmem:[#allocation7 + $0x20] sm:$0xff] %v5072
    %5106 = vst [vmem:[#allocation7 + $0x28] sm:$0xff] %v5074
    %5107 = vst [vmem:[#allocation7 + $0x30] sm:$0xff] %v5077
    %5108 = vst [vmem:[#allocation7 + $0x38] sm:$0xff] %v5079
    %5109 = vst [vmem:[#allocation7 + $0x40] sm:$0xff] %v5082
    %5110 = vst [vmem:[#allocation7 + $0x48] sm:$0xff] %v5084
    %5111 = vst [vmem:[#allocation7 + $0x50] sm:$0xff] %v5087
    %5112 = vst [vmem:[#allocation7 + $0x58] sm:$0xff] %v5089
    %5113 = vst [vmem:[#allocation7 + $0x60] sm:$0xff] %v5092
    %5114 = vst [vmem:[#allocation7 + $0x68] sm:$0xff] %v5094
    %5115 = vst [vmem:[#allocation7 + $0x70] sm:$0xff] %v5097
    %5116 = vst [vmem:[#allocation7 + $0x78] sm:$0xff] %v5099
    // Predicated region
    $region114: #{tpu_custom_call.1} parent=1 // pred_check
      _
    $region115: #{tpu_custom_call.1} parent=1 // pred_check_branch
      %5118 = sbr.rel (0) target = $region117
    $region116: #{tpu_custom_call.1} parent=1 // pred_region
      %5120 = vsyncadd [#allocation6], 0
      %s5121 = sshll.u32 [#allocation7], 4
      %s5122 = int_to_ptr.vmem [resolvable:$true] %s5121
      %s5123 = sshll.u32 %s28, 4
      %s5124 = int_to_ptr.hbm [resolvable:$true] %s5123
      %5129 = dma.vmem_to_hbm [thread:$0]  %s5122, 2048, %s5124, [#allocation6], 128, 128, 8
    $region117: #{tpu_custom_call.1} parent=1 // pred_fallthru
      _
    // Predicated region
    $region118: #{tpu_custom_call.1} parent=1 // pred_check
      _
    $region119: #{tpu_custom_call.1} parent=1 // pred_check_branch
      %5131 = sbr.rel (0) target = $region121
    $region120: #{tpu_custom_call.1} parent=1 // pred_region
      %5133 = dma.done [#allocation6], 2048
    $region121: #{tpu_custom_call.1} parent=1 // pred_fallthru
      _
    %5134 = vsyncpa [#allocation5], 1
    %5135 = vsyncpa [#allocation6], 1

</llo_original>
